<compile_context>
chip_gen: v5e
topology: v5e:2x2
jax: 0.10.0
libtpu: 0.0.40
codegen_flags: <defaults>
</compile_context>

<pallas_src>
import math
from functools import partial

import jax
import jax.numpy as jnp
import numpy as np
from jax.experimental import pallas as pl
from jax.experimental.pallas import tpu as pltpu

GROUPS = 16
GN_EPS = 1e-5


def _bf16_round(x):
    """Round an f32 array to bf16-representable values (keeps dtype f32)."""
    return x.astype(jnp.bfloat16).astype(jnp.float32)


# =====================================================================
# Kernel
# =====================================================================
def conv_gn_elu_kernel(x_ref, w_ref, b_ref, gamma_ref, beta_ref, out_ref,
                       xpad_ref, cols_ref, *, k, h, w, pad, groups, eps):
    """Fused pad -> Conv2d(kxk, stride 1) -> GroupNorm(groups) -> ELU for one image.

    x_ref    : (1, h, w, cin)           bf16 unpadded NHWC image
    w_ref    : (k*k*cin, cout)          bf16, rows ordered (kh, kw, ci)
    b/gamma/beta : (1, cout)            f32
    out_ref  : (1, h*w, cout)           f32
    xpad_ref : (h+2p, w+2p, cin)        bf16 scratch (zero-padded image)
    cols_ref : (h*w, k*k*cin)           bf16 scratch (in-VMEM im2col)
    """
    cin = x_ref.shape[-1]
    cout = w_ref.shape[-1]
    s = h * w
    cg = cout // groups

    # ---- in-kernel zero padding (bf16 scratch, re-zeroed every step: safe when the
    #      batch axis is sharded across TensorCores) ----
    if pad > 0:
        xpad_ref[...] = jnp.zeros(xpad_ref.shape, xpad_ref.dtype)
        xpad_ref[pad:pad + h, pad:pad + w, :] = x_ref[0]
    else:
        xpad_ref[...] = x_ref[0]

    # ---- in-VMEM im2col pack: bf16 window slices, no upcasts, no per-tap casts ----
    for kh in range(k):
        for kw in range(k):
            t = kh * k + kw
            cols_ref[:, t * cin:(t + 1) * cin] = (
                xpad_ref[kh:kh + h, kw:kw + w, :].reshape(s, cin))

    # ---- single long-K MXU matmul with f32 accumulation ----
    acc = jnp.dot(cols_ref[...], w_ref[...], preferred_element_type=jnp.float32)

    # ---- GroupNorm statistics in f32; the conv bias is folded in analytically so no
    #      full-size (s,cout) bias add is ever materialized ----
    bias = b_ref[...]                                    # (1, cout)
    col_sum = jnp.sum(acc, axis=0, keepdims=True)        # (1, cout)
    col_sq = jnp.sum(acc * acc, axis=0, keepdims=True)   # (1, cout)
    ns = float(s)
    col_sq = col_sq + bias * (2.0 * col_sum + ns * bias)
    col_sum = col_sum + ns * bias

    # Per-group reduce + broadcast back to channels via a tiny same-group matrix built
    # from 2-D iota (1/count folded in); kept at full f32 precision.
    gi = jax.lax.broadcasted_iota(jnp.int32, (cout, cout), 0)
    gj = jax.lax.broadcasted_iota(jnp.int32, (cout, cout), 1)
    if cg & (cg - 1) == 0:
        shift = cg.bit_length() - 1
        same = (gi >> shift) == (gj >> shift)
    else:
        same = (gi // cg) == (gj // cg)
    gmat = jnp.where(same, 1.0 / float(s * cg), 0.0)      # (cout, cout) f32
    mean = jnp.dot(col_sum, gmat, preferred_element_type=jnp.float32,
                   precision=jax.lax.Precision.HIGHEST)
    ex2 = jnp.dot(col_sq, gmat, preferred_element_type=jnp.float32,
                  precision=jax.lax.Precision.HIGHEST)
    var = jnp.maximum(ex2 - mean * mean, 0.0)             # clamp: cancellation guard

    # Fold bias + normalization + affine: y = acc * a + c  (2 full-size VPU ops).
    a = gamma_ref[...] * jax.lax.rsqrt(var + eps)
    c = (bias - mean) * a + beta_ref[...]
    y = acc * a + c

    # ELU(alpha=1); the exp of the clamped negative branch runs on the EUP.
    y = jnp.where(y > 0.0, y, jnp.exp(jnp.minimum(y, 0.0)) - 1.0)
    out_ref[0] = y.astype(out_ref.dtype)


# =====================================================================
# Wrapper
# =====================================================================
def _vmem_limit_bytes(h, w, cin, cout, k):
    """Computed scoped-VMEM budget (2x headroom), clamped to [4 MiB, 96 MiB]."""
    pad = k // 2
    s, kk = h * w, k * k
    need = (2 * h * w * cin * 2            # double-buffered bf16 input block
            + 2 * s * cout * 4             # double-buffered f32 output block
            + kk * cin * cout * 2          # resident bf16 weight
            + (h + 2 * pad) * (w + 2 * pad) * cin * 2   # padded-image scratch
            + s * kk * cin * 2             # im2col scratch
            + 8 * cout * 4)                # small per-channel vectors
    return int(min(max(2 * need, 4 * 1024 * 1024), 96 * 1024 * 1024))


def conv_forward(x, params, *, stride=1):
    """Forward of the torch `conv` module on an NHWC tensor.

    x      : (N, H, W, Cin) float array
    params : dict with 'w' (k, k, Cin, Cout) [HWIO], 'b'/'gamma'/'beta' (Cout,)
    returns: (N, H, W, Cout) float32
    """
    if stride != 1:
        # TODO(synk): stride > 1 of the generic `conv` module is not implemented.
        raise NotImplementedError("stride > 1 not implemented (Packnet uses stride=1)")

    n, h, w, cin = x.shape
    k = params['w'].shape[0]
    cout = params['w'].shape[-1]
    pad = k // 2
    kk = k * k
    s = h * w
    assert k % 2 == 1, "only odd kernel sizes ('same' padding) are supported"
    assert cout % GROUPS == 0, "GroupNorm(16) requires out_planes % 16 == 0"
    assert w % 8 == 0, "W must be a multiple of 8 (sublane-aligned window collapse)"

    xb = x.astype(jnp.bfloat16)
    w2d = params['w'].reshape(kk * cin, cout).astype(jnp.bfloat16)
    b_row = params['b'].reshape(1, cout).astype(jnp.float32)
    g_row = params['gamma'].reshape(1, cout).astype(jnp.float32)
    be_row = params['beta'].reshape(1, cout).astype(jnp.float32)

    out = pl.pallas_call(
        partial(conv_gn_elu_kernel, k=k, h=h, w=w, pad=pad, groups=GROUPS, eps=GN_EPS),
        out_shape=jax.ShapeDtypeStruct((n, s, cout), jnp.float32),
        grid=(n,),
        in_specs=[
            pl.BlockSpec((1, h, w, cin), lambda i: (i, 0, 0, 0)),
            pl.BlockSpec((kk * cin, cout), lambda i: (0, 0)),
            pl.BlockSpec((1, cout), lambda i: (0, 0)),
            pl.BlockSpec((1, cout), lambda i: (0, 0)),
            pl.BlockSpec((1, cout), lambda i: (0, 0)),
        ],
        out_specs=pl.BlockSpec((1, s, cout), lambda i: (i, 0, 0)),
        scratch_shapes=[
            pltpu.VMEM((h + 2 * pad, w + 2 * pad, cin), jnp.bfloat16),
            pltpu.VMEM((s, kk * cin), jnp.bfloat16),
        ],
        compiler_params=pltpu.CompilerParams(
            dimension_semantics=("parallel",),
            vmem_limit_bytes=_vmem_limit_bytes(h, w, cin, cout, k)),
    )(xb, w2d, b_row, g_row, be_row)

    return out.reshape(n, h, w, cout)


# =====================================================================
# Deterministic parameter init (torch Conv2d / GroupNorm defaults)
# =====================================================================
def init_conv_params(key, cin, cout, k):
    kw, kb = jax.random.split(key)
    bound = 1.0 / math.sqrt(cin * k * k)
    return dict(
        # bf16-representable so the in-kernel bf16 operands are exact and the f32
        # reference checks the kernel, not the quantization.
        w=_bf16_round(jax.random.uniform(kw, (k, k, cin, cout), jnp.float32,
                                         -bound, bound)),
        b=jax.random.uniform(kb, (cout,), jnp.float32, -bound, bound),
        gamma=jnp.ones((cout,), jnp.float32),
        beta=jnp.zeros((cout,), jnp.float32),
    )


# =====================================================================
# Pure-JAX f32 reference
# =====================================================================
def conv_forward_ref(x, params):
    k = params['w'].shape[0]
    pad = k // 2
    y = jax.lax.conv_general_dilated(
        x.astype(jnp.float32), params['w'].astype(jnp.float32),
        window_strides=(1, 1), padding=[(pad, pad), (pad, pad)],
        dimension_numbers=('NHWC', 'HWIO', 'NHWC'),
        precision=jax.lax.Precision.HIGHEST)
    y = y + params['b'].reshape(1, 1, 1, -1)
    n, h, w, c = y.shape
    cg = c // GROUPS
    yg = y.reshape(n, h, w, GROUPS, cg)
    mean = yg.mean(axis=(1, 2, 4), keepdims=True)
    var = ((yg - mean) ** 2).mean(axis=(1, 2, 4), keepdims=True)
    y = ((yg - mean) * jax.lax.rsqrt(var + GN_EPS)).reshape(n, h, w, c)
    y = y * params['gamma'].reshape(1, 1, 1, -1) + params['beta'].reshape(1, 1, 1, -1)
    return jnp.where(y > 0, y, jnp.exp(jnp.minimum(y, 0.0)) - 1.0)


# =====================================================================
# Main
# =====================================================================
if __name__ == "__main__":
    key = jax.random.PRNGKey(0)
    kx1, kp1, kx2, kp2 = jax.random.split(key, 4)

    # Config A: Packnet iconv3-style block: 128 -> 64 channels, 3x3, stride 1.
    B, H, W, CIN, COUT, K = 2, 16, 16, 128, 64, 3
    x1 = _bf16_round(jax.random.normal(kx1, (B, H, W, CIN), jnp.float32))
    p1 = init_conv_params(kp1, CIN, COUT, K)
    out1 = jax.block_until_ready(jax.jit(conv_forward)(x1, p1))
    assert out1.shape == (B, H, W, COUT), out1.shape
    ref1 = conv_forward_ref(x1, p1)
    np.testing.assert_allclose(np.asarray(out1), np.asarray(ref1),
                               atol=5e-3, rtol=5e-3)

    # Config B: Packnet iconv2/iconv1-style input width: 96 -> 32 channels, 3x3.
    B2, H2, W2, CIN2, COUT2, K2 = 2, 8, 8, 96, 32, 3
    x2 = _bf16_round(jax.random.normal(kx2, (B2, H2, W2, CIN2), jnp.float32))
    p2 = init_conv_params(kp2, CIN2, COUT2, K2)
    out2 = jax.block_until_ready(jax.jit(conv_forward)(x2, p2))
    assert out2.shape == (B2, H2, W2, COUT2), out2.shape
    ref2 = conv_forward_ref(x2, p2)
    np.testing.assert_allclose(np.asarray(out2), np.asarray(ref2),
                               atol=5e-3, rtol=5e-3)

    print("KERNEL_OK")
</pallas_src>

<mosaic_0001>
module attributes {stable_mosaic.version = 11 : i64} {
  func.func @conv_gn_elu_kernel(%arg0: i32, %arg1: memref<1x16x16x128xbf16, #tpu.memory_space<vmem>>, %arg2: memref<1152x64xbf16, #tpu.memory_space<vmem>>, %arg3: memref<1x64xf32, #tpu.memory_space<vmem>>, %arg4: memref<1x64xf32, #tpu.memory_space<vmem>>, %arg5: memref<1x64xf32, #tpu.memory_space<vmem>>, %arg6: memref<1x256x64xf32, #tpu.memory_space<vmem>>, %arg7: memref<18x18x128xbf16, #tpu.memory_space<vmem>>, %arg8: memref<256x1152xbf16, #tpu.memory_space<vmem>>) attributes {dimension_semantics = [#tpu.dimension_semantics<parallel>], iteration_bounds = array<i64: 2>, scalar_prefetch = 0 : i64, scratch_operands = 2 : i64, tpu.core_type = #tpu.core_type<tc>, window_params = [{transform_indices = @transform_0, window_bounds = array<i64: 1, 16, 16, 128>}, {pipeline_mode = #tpu.pipeline_mode<synchronous>, transform_indices = @transform_1, window_bounds = array<i64: 1152, 64>}, {pipeline_mode = #tpu.pipeline_mode<synchronous>, transform_indices = @transform_2, window_bounds = array<i64: 1, 64>}, {pipeline_mode = #tpu.pipeline_mode<synchronous>, transform_indices = @transform_3, window_bounds = array<i64: 1, 64>}, {pipeline_mode = #tpu.pipeline_mode<synchronous>, transform_indices = @transform_4, window_bounds = array<i64: 1, 64>}, {transform_indices = @transform_5, window_bounds = array<i64: 1, 256, 64>}]} {
    %cst = arith.constant 0.000000e+00 : bf16
    %0 = vector.broadcast %cst : bf16 to vector<18x18x128xbf16>
    %c0 = arith.constant 0 : index
    %c0_0 = arith.constant 0 : index
    %c0_1 = arith.constant 0 : index
    %1 = vector.load %arg7[%c0, %c0_0, %c0_1] : memref<18x18x128xbf16, #tpu.memory_space<vmem>>, vector<18x18x128xbf16>
    tpu.vector_store %arg7[%c0, %c0_0, %c0_1], %0 {strides = array<i32>} : memref<18x18x128xbf16, #tpu.memory_space<vmem>>, vector<18x18x128xbf16>,
    %c0_2 = arith.constant 0 : index
    %c0_3 = arith.constant 0 : index
    %c0_4 = arith.constant 0 : index
    %c0_5 = arith.constant 0 : index
    %2 = vector.load %arg1[%c0_2, %c0_3, %c0_4, %c0_5] : memref<1x16x16x128xbf16, #tpu.memory_space<vmem>>, vector<1x16x16x128xbf16>
    %3 = vector.shape_cast %2 : vector<1x16x16x128xbf16> to vector<16x16x128xbf16>
    %c1 = arith.constant 1 : index
    %c1_6 = arith.constant 1 : index
    %c0_7 = arith.constant 0 : index
    %4 = vector.load %arg7[%c1, %c1_6, %c0_7] : memref<18x18x128xbf16, #tpu.memory_space<vmem>>, vector<16x16x128xbf16>
    tpu.vector_store %arg7[%c1, %c1_6, %c0_7], %3 {strides = array<i32>} : memref<18x18x128xbf16, #tpu.memory_space<vmem>>, vector<16x16x128xbf16>,
    %c0_8 = arith.constant 0 : index
    %c0_9 = arith.constant 0 : index
    %c0_10 = arith.constant 0 : index
    %5 = vector.load %arg7[%c0_8, %c0_9, %c0_10] : memref<18x18x128xbf16, #tpu.memory_space<vmem>>, vector<16x16x128xbf16>
    %6 = vector.shape_cast %5 : vector<16x16x128xbf16> to vector<256x128xbf16>
    %c0_11 = arith.constant 0 : index
    %c0_12 = arith.constant 0 : index
    %7 = vector.load %arg8[%c0_11, %c0_12] : memref<256x1152xbf16, #tpu.memory_space<vmem>>, vector<256x128xbf16>
    tpu.vector_store %arg8[%c0_11, %c0_12], %6 {strides = array<i32>} : memref<256x1152xbf16, #tpu.memory_space<vmem>>, vector<256x128xbf16>,
    %c0_13 = arith.constant 0 : index
    %c1_14 = arith.constant 1 : index
    %c0_15 = arith.constant 0 : index
    %8 = vector.load %arg7[%c0_13, %c1_14, %c0_15] : memref<18x18x128xbf16, #tpu.memory_space<vmem>>, vector<16x16x128xbf16>
    %9 = vector.shape_cast %8 : vector<16x16x128xbf16> to vector<256x128xbf16>
    %c0_16 = arith.constant 0 : index
    %c128 = arith.constant 128 : index
    %10 = vector.load %arg8[%c0_16, %c128] : memref<256x1152xbf16, #tpu.memory_space<vmem>>, vector<256x128xbf16>
    tpu.vector_store %arg8[%c0_16, %c128], %9 {strides = array<i32>} : memref<256x1152xbf16, #tpu.memory_space<vmem>>, vector<256x128xbf16>,
    %c0_17 = arith.constant 0 : index
    %c2 = arith.constant 2 : index
    %c0_18 = arith.constant 0 : index
    %11 = vector.load %arg7[%c0_17, %c2, %c0_18] : memref<18x18x128xbf16, #tpu.memory_space<vmem>>, vector<16x16x128xbf16>
    %12 = vector.shape_cast %11 : vector<16x16x128xbf16> to vector<256x128xbf16>
    %c0_19 = arith.constant 0 : index
    %c256 = arith.constant 256 : index
    %13 = vector.load %arg8[%c0_19, %c256] : memref<256x1152xbf16, #tpu.memory_space<vmem>>, vector<256x128xbf16>
    tpu.vector_store %arg8[%c0_19, %c256], %12 {strides = array<i32>} : memref<256x1152xbf16, #tpu.memory_space<vmem>>, vector<256x128xbf16>,
    %c1_20 = arith.constant 1 : index
    %c0_21 = arith.constant 0 : index
    %c0_22 = arith.constant 0 : index
    %14 = vector.load %arg7[%c1_20, %c0_21, %c0_22] : memref<18x18x128xbf16, #tpu.memory_space<vmem>>, vector<16x16x128xbf16>
    %15 = vector.shape_cast %14 : vector<16x16x128xbf16> to vector<256x128xbf16>
    %c0_23 = arith.constant 0 : index
    %c384 = arith.constant 384 : index
    %16 = vector.load %arg8[%c0_23, %c384] : memref<256x1152xbf16, #tpu.memory_space<vmem>>, vector<256x128xbf16>
    tpu.vector_store %arg8[%c0_23, %c384], %15 {strides = array<i32>} : memref<256x1152xbf16, #tpu.memory_space<vmem>>, vector<256x128xbf16>,
    %c1_24 = arith.constant 1 : index
    %c1_25 = arith.constant 1 : index
    %c0_26 = arith.constant 0 : index
    %17 = vector.load %arg7[%c1_24, %c1_25, %c0_26] : memref<18x18x128xbf16, #tpu.memory_space<vmem>>, vector<16x16x128xbf16>
    %18 = vector.shape_cast %17 : vector<16x16x128xbf16> to vector<256x128xbf16>
    %c0_27 = arith.constant 0 : index
    %c512 = arith.constant 512 : index
    %19 = vector.load %arg8[%c0_27, %c512] : memref<256x1152xbf16, #tpu.memory_space<vmem>>, vector<256x128xbf16>
    tpu.vector_store %arg8[%c0_27, %c512], %18 {strides = array<i32>} : memref<256x1152xbf16, #tpu.memory_space<vmem>>, vector<256x128xbf16>,
    %c1_28 = arith.constant 1 : index
    %c2_29 = arith.constant 2 : index
    %c0_30 = arith.constant 0 : index
    %20 = vector.load %arg7[%c1_28, %c2_29, %c0_30] : memref<18x18x128xbf16, #tpu.memory_space<vmem>>, vector<16x16x128xbf16>
    %21 = vector.shape_cast %20 : vector<16x16x128xbf16> to vector<256x128xbf16>
    %c0_31 = arith.constant 0 : index
    %c640 = arith.constant 640 : index
    %22 = vector.load %arg8[%c0_31, %c640] : memref<256x1152xbf16, #tpu.memory_space<vmem>>, vector<256x128xbf16>
    tpu.vector_store %arg8[%c0_31, %c640], %21 {strides = array<i32>} : memref<256x1152xbf16, #tpu.memory_space<vmem>>, vector<256x128xbf16>,
    %c2_32 = arith.constant 2 : index
    %c0_33 = arith.constant 0 : index
    %c0_34 = arith.constant 0 : index
    %23 = vector.load %arg7[%c2_32, %c0_33, %c0_34] : memref<18x18x128xbf16, #tpu.memory_space<vmem>>, vector<16x16x128xbf16>
    %24 = vector.shape_cast %23 : vector<16x16x128xbf16> to vector<256x128xbf16>
    %c0_35 = arith.constant 0 : index
    %c768 = arith.constant 768 : index
    %25 = vector.load %arg8[%c0_35, %c768] : memref<256x1152xbf16, #tpu.memory_space<vmem>>, vector<256x128xbf16>
    tpu.vector_store %arg8[%c0_35, %c768], %24 {strides = array<i32>} : memref<256x1152xbf16, #tpu.memory_space<vmem>>, vector<256x128xbf16>,
    %c2_36 = arith.constant 2 : index
    %c1_37 = arith.constant 1 : index
    %c0_38 = arith.constant 0 : index
    %26 = vector.load %arg7[%c2_36, %c1_37, %c0_38] : memref<18x18x128xbf16, #tpu.memory_space<vmem>>, vector<16x16x128xbf16>
    %27 = vector.shape_cast %26 : vector<16x16x128xbf16> to vector<256x128xbf16>
    %c0_39 = arith.constant 0 : index
    %c896 = arith.constant 896 : index
    %28 = vector.load %arg8[%c0_39, %c896] : memref<256x1152xbf16, #tpu.memory_space<vmem>>, vector<256x128xbf16>
    tpu.vector_store %arg8[%c0_39, %c896], %27 {strides = array<i32>} : memref<256x1152xbf16, #tpu.memory_space<vmem>>, vector<256x128xbf16>,
    %c2_40 = arith.constant 2 : index
    %c2_41 = arith.constant 2 : index
    %c0_42 = arith.constant 0 : index
    %29 = vector.load %arg7[%c2_40, %c2_41, %c0_42] : memref<18x18x128xbf16, #tpu.memory_space<vmem>>, vector<16x16x128xbf16>
    %30 = vector.shape_cast %29 : vector<16x16x128xbf16> to vector<256x128xbf16>
    %c0_43 = arith.constant 0 : index
    %c1024 = arith.constant 1024 : index
    %31 = vector.load %arg8[%c0_43, %c1024] : memref<256x1152xbf16, #tpu.memory_space<vmem>>, vector<256x128xbf16>
    tpu.vector_store %arg8[%c0_43, %c1024], %30 {strides = array<i32>} : memref<256x1152xbf16, #tpu.memory_space<vmem>>, vector<256x128xbf16>,
    %c0_44 = arith.constant 0 : index
    %c0_45 = arith.constant 0 : index
    %32 = vector.load %arg8[%c0_44, %c0_45] : memref<256x1152xbf16, #tpu.memory_space<vmem>>, vector<256x1152xbf16>
    %c0_46 = arith.constant 0 : index
    %c0_47 = arith.constant 0 : index
    %33 = vector.load %arg2[%c0_46, %c0_47] : memref<1152x64xbf16, #tpu.memory_space<vmem>>, vector<1152x64xbf16>
    %cst_48 = arith.constant dense<0.000000e+00> : vector<256x64xf32>
    %34 = tpu.matmul %32, %33, %cst_48 {dimension_numbers = #tpu.dot_dimension_numbers<[1], [0], [0], [1], [0, 0, 1, 1], [], []>} : vector<256x1152xbf16>, vector<1152x64xbf16>, vector<256x64xf32> -> vector<256x64xf32>
    %c0_49 = arith.constant 0 : index
    %c0_50 = arith.constant 0 : index
    %35 = vector.load %arg3[%c0_49, %c0_50] : memref<1x64xf32, #tpu.memory_space<vmem>>, vector<1x64xf32>
    %cst_51 = arith.constant dense<0.000000e+00> : vector<64xf32>
    %36 = vector.multi_reduction <add>, %34, %cst_51 [0] : vector<256x64xf32> to vector<64xf32>
    %37 = vector.shape_cast %36 : vector<64xf32> to vector<1x64xf32>
    %38 = arith.mulf %34, %34 : vector<256x64xf32>
    %cst_52 = arith.constant dense<0.000000e+00> : vector<64xf32>
    %39 = vector.multi_reduction <add>, %38, %cst_52 [0] : vector<256x64xf32> to vector<64xf32>
    %40 = vector.shape_cast %39 : vector<64xf32> to vector<1x64xf32>
    %cst_53 = arith.constant 2.000000e+00 : f32
    %41 = vector.broadcast %cst_53 : f32 to vector<1x64xf32>
    %42 = arith.mulf %41, %37 : vector<1x64xf32>
    %cst_54 = arith.constant 2.560000e+02 : f32
    %43 = vector.broadcast %cst_54 : f32 to vector<1x64xf32>
    %44 = arith.mulf %43, %35 : vector<1x64xf32>
    %45 = arith.addf %42, %44 : vector<1x64xf32>
    %46 = arith.mulf %35, %45 : vector<1x64xf32>
    %47 = arith.addf %40, %46 : vector<1x64xf32>
    %cst_55 = arith.constant 2.560000e+02 : f32
    %48 = vector.broadcast %cst_55 : f32 to vector<1x64xf32>
    %49 = arith.mulf %48, %35 : vector<1x64xf32>
    %50 = arith.addf %37, %49 : vector<1x64xf32>
    %51 = tpu.iota {dimensions = array<i32: 0>} : vector<64x64xi32>
    %52 = tpu.iota {dimensions = array<i32: 1>} : vector<64x64xi32>
    %c2_i32 = arith.constant 2 : i32
    %53 = vector.broadcast %c2_i32 : i32 to vector<64x64xi32>
    %54 = arith.shrsi %51, %53 : vector<64x64xi32>
    %c2_i32_56 = arith.constant 2 : i32
    %55 = vector.broadcast %c2_i32_56 : i32 to vector<64x64xi32>
    %56 = arith.shrsi %52, %55 : vector<64x64xi32>
    %57 = arith.cmpi eq, %54, %56 : vector<64x64xi32>
    %cst_57 = arith.constant 9.765625E-4 : f32
    %cst_58 = arith.constant 0.000000e+00 : f32
    %58 = vector.broadcast %cst_57 : f32 to vector<64x64xf32>
    %59 = vector.broadcast %cst_58 : f32 to vector<64x64xf32>
    %60 = arith.select %57, %58, %59 : vector<64x64xi1>, vector<64x64xf32>
    %cst_59 = arith.constant dense<0.000000e+00> : vector<1x64xf32>
    %61 = tpu.matmul %50, %60, %cst_59 {dimension_numbers = #tpu.dot_dimension_numbers<[1], [0], [0], [1], [0, 0, 1, 1], [], []>, precision = #tpu.contract_precision<fp32>} : vector<1x64xf32>, vector<64x64xf32>, vector<1x64xf32> -> vector<1x64xf32>
    %cst_60 = arith.constant dense<0.000000e+00> : vector<1x64xf32>
    %62 = tpu.matmul %47, %60, %cst_60 {dimension_numbers = #tpu.dot_dimension_numbers<[1], [0], [0], [1], [0, 0, 1, 1], [], []>, precision = #tpu.contract_precision<fp32>} : vector<1x64xf32>, vector<64x64xf32>, vector<1x64xf32> -> vector<1x64xf32>
    %63 = arith.mulf %61, %61 : vector<1x64xf32>
    %64 = arith.subf %62, %63 : vector<1x64xf32>
    %cst_61 = arith.constant 0.000000e+00 : f32
    %65 = vector.broadcast %cst_61 : f32 to vector<1x64xf32>
    %66 = arith.maximumf %64, %65 : vector<1x64xf32>
    %c0_62 = arith.constant 0 : index
    %c0_63 = arith.constant 0 : index
    %67 = vector.load %arg4[%c0_62, %c0_63] : memref<1x64xf32, #tpu.memory_space<vmem>>, vector<1x64xf32>
    %cst_64 = arith.constant 9.99999974E-6 : f32
    %68 = vector.broadcast %cst_64 : f32 to vector<1x64xf32>
    %69 = arith.addf %66, %68 : vector<1x64xf32>
    %70 = math.rsqrt %69 : vector<1x64xf32>
    %71 = arith.mulf %67, %70 : vector<1x64xf32>
    %72 = arith.subf %35, %61 : vector<1x64xf32>
    %73 = arith.mulf %72, %71 : vector<1x64xf32>
    %c0_65 = arith.constant 0 : index
    %c0_66 = arith.constant 0 : index
    %74 = vector.load %arg5[%c0_65, %c0_66] : memref<1x64xf32, #tpu.memory_space<vmem>>, vector<1x64xf32>
    %75 = arith.addf %73, %74 : vector<1x64xf32>
    %76 = vector.broadcast %71 : vector<1x64xf32> to vector<256x64xf32>
    %77 = arith.mulf %34, %76 : vector<256x64xf32>
    %78 = vector.broadcast %75 : vector<1x64xf32> to vector<256x64xf32>
    %79 = arith.addf %77, %78 : vector<256x64xf32>
    %cst_67 = arith.constant 0.000000e+00 : f32
    %80 = vector.broadcast %cst_67 : f32 to vector<256x64xf32>
    %81 = arith.cmpf ogt, %79, %80 : vector<256x64xf32>
    %cst_68 = arith.constant 0.000000e+00 : f32
    %82 = vector.broadcast %cst_68 : f32 to vector<256x64xf32>
    %83 = arith.minimumf %79, %82 : vector<256x64xf32>
    %84 = math.exp %83 : vector<256x64xf32>
    %cst_69 = arith.constant 1.000000e+00 : f32
    %85 = vector.broadcast %cst_69 : f32 to vector<256x64xf32>
    %86 = arith.subf %84, %85 : vector<256x64xf32>
    %87 = arith.select %81, %79, %86 : vector<256x64xi1>, vector<256x64xf32>
    %c0_70 = arith.constant 0 : index
    %c0_71 = arith.constant 0 : index
    %c0_72 = arith.constant 0 : index
    %88 = vector.load %arg6[%c0_70, %c0_71, %c0_72] : memref<1x256x64xf32, #tpu.memory_space<vmem>>, vector<1x256x64xf32>
    %89 = vector.shape_cast %88 : vector<1x256x64xf32> to vector<256x64xf32>
    %90 = vector.shape_cast %87 : vector<256x64xf32> to vector<1x256x64xf32>
    tpu.vector_store %arg6[%c0_70, %c0_71, %c0_72], %90 {strides = array<i32>} : memref<1x256x64xf32, #tpu.memory_space<vmem>>, vector<1x256x64xf32>,
    return
  }
  func.func @transform_0(%arg0: i32) -> (i32, i32, i32, i32) {
    %c0_i32 = arith.constant 0 : i32
    %c0_i32_0 = arith.constant 0 : i32
    %c0_i32_1 = arith.constant 0 : i32
    %c0_i32_2 = arith.constant 0 : i32
    return %arg0, %c0_i32, %c0_i32_0, %c0_i32_1 : i32, i32, i32, i32
  }
  func.func @transform_1(%arg0: i32) -> (i32, i32) {
    %c0_i32 = arith.constant 0 : i32
    %c0_i32_0 = arith.constant 0 : i32
    %c0_i32_1 = arith.constant 0 : i32
    return %c0_i32, %c0_i32_0 : i32, i32
  }
  func.func @transform_2(%arg0: i32) -> (i32, i32) {
    %c0_i32 = arith.constant 0 : i32
    %c0_i32_0 = arith.constant 0 : i32
    %c0_i32_1 = arith.constant 0 : i32
    return %c0_i32, %c0_i32_0 : i32, i32
  }
  func.func @transform_3(%arg0: i32) -> (i32, i32) {
    %c0_i32 = arith.constant 0 : i32
    %c0_i32_0 = arith.constant 0 : i32
    %c0_i32_1 = arith.constant 0 : i32
    return %c0_i32, %c0_i32_0 : i32, i32
  }
  func.func @transform_4(%arg0: i32) -> (i32, i32) {
    %c0_i32 = arith.constant 0 : i32
    %c0_i32_0 = arith.constant 0 : i32
    %c0_i32_1 = arith.constant 0 : i32
    return %c0_i32, %c0_i32_0 : i32, i32
  }
  func.func @transform_5(%arg0: i32) -> (i32, i32, i32) {
    %c0_i32 = arith.constant 0 : i32
    %c0_i32_0 = arith.constant 0 : i32
    %c0_i32_1 = arith.constant 0 : i32
    return %arg0, %c0_i32, %c0_i32_0 : i32, i32, i32
  }
}

</mosaic_0001>

<llo_original>
// kernel: conv_forward.1
$region0: #{conv_forward.1}
  #allocation0 [shape = 'u32[]', space=smem, size = 0x4, offset = 0x4, fixed_abs, tag = 'smem constant byte address 0x4 - core index']
  #allocation1 [shape = 'u32[72,128]{1,0:T(1,128)}', space=vmem, size = 0x9000, scoped, tag = 'internal scratch']
  #allocation2 [shape = 'bf16[18,18,128]{2,1,0:T(8,128)(2,1)}', space=vmem, size = 0x1b000, scoped, tag = 'scratch operand']
  #allocation3 [shape = 'bf16[256,1152]{1,0:T(8,128)(2,1)}', space=vmem, size = 0x90000, scoped, tag = 'scratch operand']
  %s0 = inlined_call_operand.vmem [shape: bf16[2,16,16,128], index: 0, kind: input, shape index: {}]
  %s1 = inlined_call_operand.vmem [shape: bf16[1152,64], index: 1, kind: input, shape index: {}]
  %s2 = inlined_call_operand.vmem [shape: f32[1,64], index: 2, kind: input, shape index: {}]
  %s3 = inlined_call_operand.vmem [shape: f32[1,64], index: 3, kind: input, shape index: {}]
  %s4 = inlined_call_operand.vmem [shape: f32[1,64], index: 4, kind: input, shape index: {}]
  %s5 = inlined_call_operand.hbm [shape: f32[2,256,64], index: 5, kind: output, shape index: {}]
  %s6 = sld [smem:[#allocation0]]
  $region53: #{conv_forward.1} parent=0
    _
  %s8 = ssub.s32 1, %s6
  %s9 = scalar_select 0, %s8, %s6
  $region1: #{conv_forward.1} parent=0
    #allocation4 [shape = 'u8[262144]{0}', space=vmem, size = 0x40000, scoped, tag = 'output window, operand 0']
    #allocation5 [shape = 's32[2]{0}', space=sflag, size = 0x8, scoped, tag = 'scoped memory for conv_forward.1']
    %10 = vsyncpa [#allocation5], 0
    %s11 = scalar_lea.sflag [#allocation5], 1
    %12 = vsyncpa %s11, 0
    loop: start=0, step=1, limit=4
    $region2: #{conv_forward.1} parent=1 // loop_pre_header
      _
    $region3: #{conv_forward.1} parent=1 // loop_header
      %s14 = sphi 0, %s18
      %p15 = scmp.ge.s32.totalorder %s14, 4
      %s24 = sphi 0, %s26
      %s27 = sphi 0, %s24
      %s28 = sphi 0, %s27
      %s44 = sphi 0, %s28
      %s48 = sphi 0, %s48
      %s50 = sphi 0, %s48
      %s51 = sphi 0, %s50
      %s65 = sphi 0, %s51
      %s69 = sphi 0, %s69
      %s71 = sphi 0, %s69
      %s72 = sphi 0, %s71
      %s86 = sphi 0, %s72
      %s90 = sphi 0, %s90
      %s92 = sphi 0, %s90
      %s93 = sphi 0, %s92
      %s107 = sphi 0, %s93
      %s111 = sphi 0, %s111
      %s113 = sphi 0, %s111
      %s114 = sphi 0, %s113
      %s128 = sphi 0, %s114
      %s134 = sphi 0, %s136
      %s137 = sphi 0, %s134
      %s138 = sphi 0, %s137
      %s154 = sphi 0, %s138
    $region4: #{conv_forward.1} parent=1 // loop_header_branch
      %17 = sbr.rel (%p15) target = $region8
    $region5: #{conv_forward.1} parent=1 // loop_body
      %s19 = ssub.s32 %s14, 1
      %s20 = ssub.s32 %s14, 2
      %s21 = sadd.s32 %s14, 1
      %s22 = ssub.s32 %s14, %s21
      %p23 = scmp.eq.s32.totalorder %s22, 0
      %s25 = sadd.s32 %s24, 1
      %s26 = scalar_select %p23, %s24, %s25
      %p29 = pneg %p23
      %p30 = scmp.eq.s32.totalorder %s14, 1
      %p31 = por %p29, %p30
      %p32 = scmp.ne.s32.totalorder %s24, %s27
      %p33 = scmp.eq.s32.totalorder %s14, 0
      %p34 = por %p32, %p33
      %p35 = scmp.ne.s32.totalorder %s24, %s27
      %p36 = scmp.eq.s32.totalorder %s19, 1
      %p37 = por %p35, %p36
      %p38 = scmp.ne.s32.totalorder %s27, %s28
      %p39 = scmp.eq.s32.totalorder %s19, 0
      %p40 = por %p38, %p39
      %p41 = scmp.ne.s32.totalorder %s27, %s28
      %p42 = scmp.eq.s32.totalorder %s20, 1
      %p43 = por %p41, %p42
      %p45 = scmp.ne.s32.totalorder %s28, %s44
      %p46 = scmp.eq.s32.totalorder %s20, 0
      %p47 = por %p45, %p46
      %s49 = sadd.s32 %s48, 1
      %p52 = scmp.eq.s32.totalorder %s14, 1
      %p53 = scmp.ne.s32.totalorder %s48, %s50
      %p54 = scmp.eq.s32.totalorder %s14, 0
      %p55 = por %p53, %p54
      %p56 = scmp.ne.s32.totalorder %s48, %s50
      %p57 = scmp.eq.s32.totalorder %s19, 1
      %p58 = por %p56, %p57
      %p59 = scmp.ne.s32.totalorder %s50, %s51
      %p60 = scmp.eq.s32.totalorder %s19, 0
      %p61 = por %p59, %p60
      %p62 = scmp.ne.s32.totalorder %s50, %s51
      %p63 = scmp.eq.s32.totalorder %s20, 1
      %p64 = por %p62, %p63
      %p66 = scmp.ne.s32.totalorder %s51, %s65
      %p67 = scmp.eq.s32.totalorder %s20, 0
      %p68 = por %p66, %p67
      %s70 = sadd.s32 %s69, 1
      %p73 = scmp.eq.s32.totalorder %s14, 1
      %p74 = scmp.ne.s32.totalorder %s69, %s71
      %p75 = scmp.eq.s32.totalorder %s14, 0
      %p76 = por %p74, %p75
      %p77 = scmp.ne.s32.totalorder %s69, %s71
      %p78 = scmp.eq.s32.totalorder %s19, 1
      %p79 = por %p77, %p78
      %p80 = scmp.ne.s32.totalorder %s71, %s72
      %p81 = scmp.eq.s32.totalorder %s19, 0
      %p82 = por %p80, %p81
      %p83 = scmp.ne.s32.totalorder %s71, %s72
      %p84 = scmp.eq.s32.totalorder %s20, 1
      %p85 = por %p83, %p84
      %p87 = scmp.ne.s32.totalorder %s72, %s86
      %p88 = scmp.eq.s32.totalorder %s20, 0
      %p89 = por %p87, %p88
      %s91 = sadd.s32 %s90, 1
      %p94 = scmp.eq.s32.totalorder %s14, 1
      %p95 = scmp.ne.s32.totalorder %s90, %s92
      %p96 = scmp.eq.s32.totalorder %s14, 0
      %p97 = por %p95, %p96
      %p98 = scmp.ne.s32.totalorder %s90, %s92
      %p99 = scmp.eq.s32.totalorder %s19, 1
      %p100 = por %p98, %p99
      %p101 = scmp.ne.s32.totalorder %s92, %s93
      %p102 = scmp.eq.s32.totalorder %s19, 0
      %p103 = por %p101, %p102
      %p104 = scmp.ne.s32.totalorder %s92, %s93
      %p105 = scmp.eq.s32.totalorder %s20, 1
      %p106 = por %p104, %p105
      %p108 = scmp.ne.s32.totalorder %s93, %s107
      %p109 = scmp.eq.s32.totalorder %s20, 0
      %p110 = por %p108, %p109
      %s112 = sadd.s32 %s111, 1
      %p115 = scmp.eq.s32.totalorder %s14, 1
      %p116 = scmp.ne.s32.totalorder %s111, %s113
      %p117 = scmp.eq.s32.totalorder %s14, 0
      %p118 = por %p116, %p117
      %p119 = scmp.ne.s32.totalorder %s111, %s113
      %p120 = scmp.eq.s32.totalorder %s19, 1
      %p121 = por %p119, %p120
      %p122 = scmp.ne.s32.totalorder %s113, %s114
      %p123 = scmp.eq.s32.totalorder %s19, 0
      %p124 = por %p122, %p123
      %p125 = scmp.ne.s32.totalorder %s113, %s114
      %p126 = scmp.eq.s32.totalorder %s20, 1
      %p127 = por %p125, %p126
      %p129 = scmp.ne.s32.totalorder %s114, %s128
      %p130 = scmp.eq.s32.totalorder %s20, 0
      %p131 = por %p129, %p130
      %s132 = ssub.s32 %s14, %s21
      %p133 = scmp.eq.s32.totalorder %s132, 0
      %s135 = sadd.s32 %s134, 1
      %s136 = scalar_select %p133, %s134, %s135
      %p139 = pneg %p133
      %p140 = scmp.eq.s32.totalorder %s14, 1
      %p141 = por %p139, %p140
      %p142 = scmp.ne.s32.totalorder %s134, %s137
      %p143 = scmp.eq.s32.totalorder %s14, 0
      %p144 = por %p142, %p143
      %p145 = scmp.ne.s32.totalorder %s134, %s137
      %p146 = scmp.eq.s32.totalorder %s19, 1
      %p147 = por %p145, %p146
      %p148 = scmp.ne.s32.totalorder %s137, %s138
      %p149 = scmp.eq.s32.totalorder %s19, 0
      %p150 = por %p148, %p149
      %p151 = scmp.ne.s32.totalorder %s137, %s138
      %p152 = scmp.eq.s32.totalorder %s20, 1
      %p153 = por %p151, %p152
      %p155 = scmp.ne.s32.totalorder %s138, %s154
      %p156 = scmp.eq.s32.totalorder %s20, 0
      %p157 = por %p155, %p156
      %p158 = scmp.le.s32.totalorder 1, %s14
      %p159 = scmp.lt.s32.totalorder %s14, 3
      %p160 = pnand %p158, %p159
      %p161 = pneg %p160
      // Predicated region
      $region9: #{conv_forward.1} parent=5 // pred_check
        _
      $region10: #{conv_forward.1} parent=5 // pred_check_branch
        %163 = sbr.rel (%p160) target = $region12
      $region11: #{conv_forward.1} parent=5 // pred_region
        %s164 = ssub.s32 %s14, 1
        // Predicated region
        $region13: #{conv_forward.1} parent=11 // pred_check
          %p165 = pneg %p61
        $region14: #{conv_forward.1} parent=11 // pred_check_branch
          %167 = sbr.rel (%p165) target = $region16
        $region15: #{conv_forward.1} parent=11 // pred_region
          _
        $region16: #{conv_forward.1} parent=11 // pred_fallthru
          _
        // Predicated region
        $region17: #{conv_forward.1} parent=11 // pred_check
          %p168 = pneg %p82
        $region18: #{conv_forward.1} parent=11 // pred_check_branch
          %170 = sbr.rel (%p168) target = $region20
        $region19: #{conv_forward.1} parent=11 // pred_region
          _
        $region20: #{conv_forward.1} parent=11 // pred_fallthru
          _
        // Predicated region
        $region21: #{conv_forward.1} parent=11 // pred_check
          %p171 = pneg %p103
        $region22: #{conv_forward.1} parent=11 // pred_check_branch
          %173 = sbr.rel (%p171) target = $region24
        $region23: #{conv_forward.1} parent=11 // pred_region
          _
        $region24: #{conv_forward.1} parent=11 // pred_fallthru
          _
        // Predicated region
        $region25: #{conv_forward.1} parent=11 // pred_check
          %p174 = pneg %p124
        $region26: #{conv_forward.1} parent=11 // pred_check_branch
          %176 = sbr.rel (%p174) target = $region28
        $region27: #{conv_forward.1} parent=11 // pred_region
          _
        $region28: #{conv_forward.1} parent=11 // pred_fallthru
          _
      $region12: #{conv_forward.1} parent=5 // pred_fallthru
        _
      %p177 = scmp.lt.s32.totalorder %s14, 2
      // Predicated region
      $region29: #{conv_forward.1} parent=5 // pred_check
        %p178 = pneg %p177
      $region30: #{conv_forward.1} parent=5 // pred_check_branch
        %180 = sbr.rel (%p178) target = $region32
      $region31: #{conv_forward.1} parent=5 // pred_region
        // Predicated region
        $region33: #{conv_forward.1} parent=31 // pred_check
          %p181 = pneg %p34
        $region34: #{conv_forward.1} parent=31 // pred_check_branch
          %183 = sbr.rel (%p181) target = $region36
        $region35: #{conv_forward.1} parent=31 // pred_region
          %p184 = scmp.lt.s32.totalorder %s14, 1
          %s185 = scalar_select %p184, %s14, 1
          %s186 = smul.addr %s185, 32
          %s187 = smul.addr %s186, 4
          %s188 = scalar_lea.vmem %s0, %s187
        $region36: #{conv_forward.1} parent=31 // pred_fallthru
          _
      $region32: #{conv_forward.1} parent=5 // pred_fallthru
        _
      %p189 = scmp.le.s32.totalorder 1, %s14
      %p190 = scmp.lt.s32.totalorder %s14, 3
      %p191 = pnand %p189, %p190
      %p192 = pneg %p191
      // Predicated region
      $region37: #{conv_forward.1} parent=5 // pred_check
        _
      $region38: #{conv_forward.1} parent=5 // pred_check_branch
        %194 = sbr.rel (%p191) target = $region40
      $region39: #{conv_forward.1} parent=5 // pred_region
        %s195 = ssub.s32 %s14, 1
        %p196 = scmp.lt.s32.totalorder %s19, 1
        %s197 = scalar_select %p196, %s19, 1
        %s198 = smul.addr %s197, 32
        %s199 = smul.addr %s198, 4
        %s200 = scalar_lea.vmem %s0, %s199
        %p201 = pneg %p40
        %p202 = pneg %p37
        %p203 = pneg %p61
        %p204 = pneg %p58
        %p205 = pneg %p82
        %p206 = pneg %p79
        %p207 = pneg %p103
        %p208 = pneg %p100
        %p209 = pneg %p124
        %p210 = pneg %p121
        %p211 = pneg %p150
        %p212 = pneg %p147
        %s213 = sand.u32 %s137, 1
        %s214 = scalar_lea.sflag [#allocation5], %s213
        %s215 = sand.u32 %s137, 1
        %s216 = smul.addr %s215, 256
        %s217 = scalar_lea.vmem [#allocation4], %s216
        %p218 = scmp.lt.s32.totalorder %s19, 1
        %s219 = scalar_select %p218, %s19, 1
        %s220 = smul.addr %s219, 32
        %s221 = smul.addr %s220, 4
        %s222 = scalar_lea.vmem %s0, %s221
        %224 = vst [vmem:[#allocation2] sm:$0xf] 0
        %225 = vst [vmem:[#allocation2 + $0x4] sm:$0xf] 0
        %226 = vst [vmem:[#allocation2 + $0x8] sm:$0x1] 0
        %227 = vst [vmem:[#allocation2 + $0xc] sm:$0xf] 0
        %228 = vst [vmem:[#allocation2 + $0x10] sm:$0xf] 0
        %229 = vst [vmem:[#allocation2 + $0x14] sm:$0x1] 0
        %230 = vst [vmem:[#allocation2 + $0x18] sm:$0xf] 0
        %231 = vst [vmem:[#allocation2 + $0x1c] sm:$0xf] 0
        %232 = vst [vmem:[#allocation2 + $0x20] sm:$0x1] 0
        %233 = vst [vmem:[#allocation2 + $0x24] sm:$0xf] 0
        %234 = vst [vmem:[#allocation2 + $0x28] sm:$0xf] 0
        %235 = vst [vmem:[#allocation2 + $0x2c] sm:$0x1] 0
        %236 = vst [vmem:[#allocation2 + $0x30] sm:$0xf] 0
        %237 = vst [vmem:[#allocation2 + $0x34] sm:$0xf] 0
        %238 = vst [vmem:[#allocation2 + $0x38] sm:$0x1] 0
        %239 = vst [vmem:[#allocation2 + $0x3c] sm:$0xf] 0
        %240 = vst [vmem:[#allocation2 + $0x40] sm:$0xf] 0
        %241 = vst [vmem:[#allocation2 + $0x44] sm:$0x1] 0
        %242 = vst [vmem:[#allocation2 + $0x48] sm:$0xf] 0
        %243 = vst [vmem:[#allocation2 + $0x4c] sm:$0xf] 0
        %244 = vst [vmem:[#allocation2 + $0x50] sm:$0x1] 0
        %245 = vst [vmem:[#allocation2 + $0x54] sm:$0xf] 0
        %246 = vst [vmem:[#allocation2 + $0x58] sm:$0xf] 0
        %247 = vst [vmem:[#allocation2 + $0x5c] sm:$0x1] 0
        %248 = vst [vmem:[#allocation2 + $0x60] sm:$0xf] 0
        %249 = vst [vmem:[#allocation2 + $0x64] sm:$0xf] 0
        %250 = vst [vmem:[#allocation2 + $0x68] sm:$0x1] 0
        %251 = vst [vmem:[#allocation2 + $0x6c] sm:$0xf] 0
        %252 = vst [vmem:[#allocation2 + $0x70] sm:$0xf] 0
        %253 = vst [vmem:[#allocation2 + $0x74] sm:$0x1] 0
        %254 = vst [vmem:[#allocation2 + $0x78] sm:$0xf] 0
        %255 = vst [vmem:[#allocation2 + $0x7c] sm:$0xf] 0
        %256 = vst [vmem:[#allocation2 + $0x80] sm:$0x1] 0
        %257 = vst [vmem:[#allocation2 + $0x84] sm:$0xf] 0
        %258 = vst [vmem:[#allocation2 + $0x88] sm:$0xf] 0
        %259 = vst [vmem:[#allocation2 + $0x8c] sm:$0x1] 0
        %260 = vst [vmem:[#allocation2 + $0x90] sm:$0xf] 0
        %261 = vst [vmem:[#allocation2 + $0x94] sm:$0xf] 0
        %262 = vst [vmem:[#allocation2 + $0x98] sm:$0x1] 0
        %263 = vst [vmem:[#allocation2 + $0x9c] sm:$0xf] 0
        %264 = vst [vmem:[#allocation2 + $0xa0] sm:$0xf] 0
        %265 = vst [vmem:[#allocation2 + $0xa4] sm:$0x1] 0
        %266 = vst [vmem:[#allocation2 + $0xa8] sm:$0xf] 0
        %267 = vst [vmem:[#allocation2 + $0xac] sm:$0xf] 0
        %268 = vst [vmem:[#allocation2 + $0xb0] sm:$0x1] 0
        %269 = vst [vmem:[#allocation2 + $0xb4] sm:$0xf] 0
        %270 = vst [vmem:[#allocation2 + $0xb8] sm:$0xf] 0
        %271 = vst [vmem:[#allocation2 + $0xbc] sm:$0x1] 0
        %272 = vst [vmem:[#allocation2 + $0xc0] sm:$0xf] 0
        %273 = vst [vmem:[#allocation2 + $0xc4] sm:$0xf] 0
        %274 = vst [vmem:[#allocation2 + $0xc8] sm:$0x1] 0
        %275 = vst [vmem:[#allocation2 + $0xcc] sm:$0xf] 0
        %276 = vst [vmem:[#allocation2 + $0xd0] sm:$0xf] 0
        %277 = vst [vmem:[#allocation2 + $0xd4] sm:$0x1] 0
        %v278 = vld [vmem:[%s222] sm:$0xf]
        %v279 = vld [vmem:[%s222 + $0x4] sm:$0xf]
        %v280 = vld [vmem:[%s222 + $0x8] sm:$0xf]
        %v281 = vld [vmem:[%s222 + $0xc] sm:$0xf]
        %v282 = vld [vmem:[%s222 + $0x10] sm:$0xf]
        %v283 = vld [vmem:[%s222 + $0x14] sm:$0xf]
        %v284 = vld [vmem:[%s222 + $0x18] sm:$0xf]
        %v285 = vld [vmem:[%s222 + $0x1c] sm:$0xf]
        %v286 = vld [vmem:[%s222 + $0x20] sm:$0xf]
        %v287 = vld [vmem:[%s222 + $0x24] sm:$0xf]
        %v288 = vld [vmem:[%s222 + $0x28] sm:$0xf]
        %v289 = vld [vmem:[%s222 + $0x2c] sm:$0xf]
        %v290 = vld [vmem:[%s222 + $0x30] sm:$0xf]
        %v291 = vld [vmem:[%s222 + $0x34] sm:$0xf]
        %v292 = vld [vmem:[%s222 + $0x38] sm:$0xf]
        %v293 = vld [vmem:[%s222 + $0x3c] sm:$0xf]
        %v294 = vld [vmem:[%s222 + $0x40] sm:$0xf]
        %v295 = vld [vmem:[%s222 + $0x44] sm:$0xf]
        %v296 = vld [vmem:[%s222 + $0x48] sm:$0xf]
        %v297 = vld [vmem:[%s222 + $0x4c] sm:$0xf]
        %v298 = vld [vmem:[%s222 + $0x50] sm:$0xf]
        %v299 = vld [vmem:[%s222 + $0x54] sm:$0xf]
        %v300 = vld [vmem:[%s222 + $0x58] sm:$0xf]
        %v301 = vld [vmem:[%s222 + $0x5c] sm:$0xf]
        %v302 = vld [vmem:[%s222 + $0x60] sm:$0xf]
        %v303 = vld [vmem:[%s222 + $0x64] sm:$0xf]
        %v304 = vld [vmem:[%s222 + $0x68] sm:$0xf]
        %v305 = vld [vmem:[%s222 + $0x6c] sm:$0xf]
        %v306 = vld [vmem:[%s222 + $0x70] sm:$0xf]
        %v307 = vld [vmem:[%s222 + $0x74] sm:$0xf]
        %v308 = vld [vmem:[%s222 + $0x78] sm:$0xf]
        %v309 = vld [vmem:[%s222 + $0x7c] sm:$0xf]
        %vm310 = vsmask.f32 256
        %vm311 = vsmask.f32 4368
        %vm312 = vmor %vm310, %vm311
        %v314 = vshrl.u32 %v278, 16
        %v316 = vrot.slane %v314, 7
        %v317 = vshll.u32 %v278, 16
        %v319 = vor.u32 %v316, %v317
        %v320 = vrot.slane %v316, 4
        %v322 = vshrl.u32 %v279, 16
        %v324 = vrot.slane %v322, 7
        %v325 = vshll.u32 %v279, 16
        %v327 = vor.u32 %v324, %v325
        %v328 = vsel %vm312, %v320, %v327
        %v329 = vrot.slane %v324, 4
        %v331 = vshrl.u32 %v280, 16
        %v333 = vrot.slane %v331, 7
        %v334 = vshll.u32 %v280, 16
        %v336 = vor.u32 %v333, %v334
        %v337 = vrot.slane %v333, 4
        %v339 = vshrl.u32 %v281, 16
        %v341 = vrot.slane %v339, 7
        %v342 = vshll.u32 %v281, 16
        %v344 = vor.u32 %v341, %v342
        %v345 = vsel %vm312, %v337, %v344
        %v346 = vrot.slane %v341, 4
        %v348 = vshrl.u32 %v282, 16
        %v350 = vrot.slane %v348, 7
        %v351 = vshll.u32 %v282, 16
        %v353 = vor.u32 %v350, %v351
        %v354 = vrot.slane %v350, 4
        %v356 = vshrl.u32 %v283, 16
        %v358 = vrot.slane %v356, 7
        %v359 = vshll.u32 %v283, 16
        %v361 = vor.u32 %v358, %v359
        %v362 = vsel %vm312, %v354, %v361
        %v363 = vrot.slane %v358, 4
        %v365 = vshrl.u32 %v284, 16
        %v367 = vrot.slane %v365, 7
        %v368 = vshll.u32 %v284, 16
        %v370 = vor.u32 %v367, %v368
        %v371 = vrot.slane %v367, 4
        %v373 = vshrl.u32 %v285, 16
        %v375 = vrot.slane %v373, 7
        %v376 = vshll.u32 %v285, 16
        %v378 = vor.u32 %v375, %v376
        %v379 = vsel %vm312, %v371, %v378
        %v380 = vrot.slane %v375, 4
        %v382 = vshrl.u32 %v286, 16
        %v384 = vrot.slane %v382, 7
        %v385 = vshll.u32 %v286, 16
        %v387 = vor.u32 %v384, %v385
        %v388 = vrot.slane %v384, 4
        %v390 = vshrl.u32 %v287, 16
        %v392 = vrot.slane %v390, 7
        %v393 = vshll.u32 %v287, 16
        %v395 = vor.u32 %v392, %v393
        %v396 = vsel %vm312, %v388, %v395
        %v397 = vrot.slane %v392, 4
        %v399 = vshrl.u32 %v288, 16
        %v401 = vrot.slane %v399, 7
        %v402 = vshll.u32 %v288, 16
        %v404 = vor.u32 %v401, %v402
        %v405 = vrot.slane %v401, 4
        %v407 = vshrl.u32 %v289, 16
        %v409 = vrot.slane %v407, 7
        %v410 = vshll.u32 %v289, 16
        %v412 = vor.u32 %v409, %v410
        %v413 = vsel %vm312, %v405, %v412
        %v414 = vrot.slane %v409, 4
        %v416 = vshrl.u32 %v290, 16
        %v418 = vrot.slane %v416, 7
        %v419 = vshll.u32 %v290, 16
        %v421 = vor.u32 %v418, %v419
        %v422 = vrot.slane %v418, 4
        %v424 = vshrl.u32 %v291, 16
        %v426 = vrot.slane %v424, 7
        %v427 = vshll.u32 %v291, 16
        %v429 = vor.u32 %v426, %v427
        %v430 = vsel %vm312, %v422, %v429
        %v431 = vrot.slane %v426, 4
        %v433 = vshrl.u32 %v292, 16
        %v435 = vrot.slane %v433, 7
        %v436 = vshll.u32 %v292, 16
        %v438 = vor.u32 %v435, %v436
        %v439 = vrot.slane %v435, 4
        %v441 = vshrl.u32 %v293, 16
        %v443 = vrot.slane %v441, 7
        %v444 = vshll.u32 %v293, 16
        %v446 = vor.u32 %v443, %v444
        %v447 = vsel %vm312, %v439, %v446
        %v448 = vrot.slane %v443, 4
        %v450 = vshrl.u32 %v294, 16
        %v452 = vrot.slane %v450, 7
        %v453 = vshll.u32 %v294, 16
        %v455 = vor.u32 %v452, %v453
        %v456 = vrot.slane %v452, 4
        %v458 = vshrl.u32 %v295, 16
        %v460 = vrot.slane %v458, 7
        %v461 = vshll.u32 %v295, 16
        %v463 = vor.u32 %v460, %v461
        %v464 = vsel %vm312, %v456, %v463
        %v465 = vrot.slane %v460, 4
        %v467 = vshrl.u32 %v296, 16
        %v469 = vrot.slane %v467, 7
        %v470 = vshll.u32 %v296, 16
        %v472 = vor.u32 %v469, %v470
        %v473 = vrot.slane %v469, 4
        %v475 = vshrl.u32 %v297, 16
        %v477 = vrot.slane %v475, 7
        %v478 = vshll.u32 %v297, 16
        %v480 = vor.u32 %v477, %v478
        %v481 = vsel %vm312, %v473, %v480
        %v482 = vrot.slane %v477, 4
        %v484 = vshrl.u32 %v298, 16
        %v486 = vrot.slane %v484, 7
        %v487 = vshll.u32 %v298, 16
        %v489 = vor.u32 %v486, %v487
        %v490 = vrot.slane %v486, 4
        %v492 = vshrl.u32 %v299, 16
        %v494 = vrot.slane %v492, 7
        %v495 = vshll.u32 %v299, 16
        %v497 = vor.u32 %v494, %v495
        %v498 = vsel %vm312, %v490, %v497
        %v499 = vrot.slane %v494, 4
        %v501 = vshrl.u32 %v300, 16
        %v503 = vrot.slane %v501, 7
        %v504 = vshll.u32 %v300, 16
        %v506 = vor.u32 %v503, %v504
        %v507 = vrot.slane %v503, 4
        %v509 = vshrl.u32 %v301, 16
        %v511 = vrot.slane %v509, 7
        %v512 = vshll.u32 %v301, 16
        %v514 = vor.u32 %v511, %v512
        %v515 = vsel %vm312, %v507, %v514
        %v516 = vrot.slane %v511, 4
        %v518 = vshrl.u32 %v302, 16
        %v520 = vrot.slane %v518, 7
        %v521 = vshll.u32 %v302, 16
        %v523 = vor.u32 %v520, %v521
        %v524 = vrot.slane %v520, 4
        %v526 = vshrl.u32 %v303, 16
        %v528 = vrot.slane %v526, 7
        %v529 = vshll.u32 %v303, 16
        %v531 = vor.u32 %v528, %v529
        %v532 = vsel %vm312, %v524, %v531
        %v533 = vrot.slane %v528, 4
        %v535 = vshrl.u32 %v304, 16
        %v537 = vrot.slane %v535, 7
        %v538 = vshll.u32 %v304, 16
        %v540 = vor.u32 %v537, %v538
        %v541 = vrot.slane %v537, 4
        %v543 = vshrl.u32 %v305, 16
        %v545 = vrot.slane %v543, 7
        %v546 = vshll.u32 %v305, 16
        %v548 = vor.u32 %v545, %v546
        %v549 = vsel %vm312, %v541, %v548
        %v550 = vrot.slane %v545, 4
        %v552 = vshrl.u32 %v306, 16
        %v554 = vrot.slane %v552, 7
        %v555 = vshll.u32 %v306, 16
        %v557 = vor.u32 %v554, %v555
        %v558 = vrot.slane %v554, 4
        %v560 = vshrl.u32 %v307, 16
        %v562 = vrot.slane %v560, 7
        %v563 = vshll.u32 %v307, 16
        %v565 = vor.u32 %v562, %v563
        %v566 = vsel %vm312, %v558, %v565
        %v567 = vrot.slane %v562, 4
        %v569 = vshrl.u32 %v308, 16
        %v571 = vrot.slane %v569, 7
        %v572 = vshll.u32 %v308, 16
        %v574 = vor.u32 %v571, %v572
        %v575 = vrot.slane %v571, 4
        %v577 = vshrl.u32 %v309, 16
        %v579 = vrot.slane %v577, 7
        %v580 = vshll.u32 %v309, 16
        %v582 = vor.u32 %v579, %v580
        %v583 = vsel %vm312, %v575, %v582
        %v584 = vrot.slane %v579, 4
        %s633 = scalar_lea.vmem [#allocation2], 12
        %vm634 = vcmask 1043456
        %vm635 = vsmask.f32 7938
        %vm636 = vmand %vm634, %vm635
        %v637 = vld [vmem:[%s633] sm:$0xf]
        %v638 = vsel %vm636, %v319, %v637
        %639 = vst [vmem:[%s633] sm:$0xf] %v638
        %640 = vst [vmem:[%s633 + $0x4] sm:$0xf] %v328
        %vm641 = vcmask 1040384
        %vm642 = vmand %vm641, %vm310
        %v643 = vld [vmem:[%s633 + $0x8] sm:$0x1]
        %v644 = vsel %vm642, %v329, %v643
        %645 = vst [vmem:[%s633 + $0x8] sm:$0x1] %v644
        %v646 = vld [vmem:[%s633 + $0xc] sm:$0xf]
        %v647 = vsel %vm636, %v336, %v646
        %648 = vst [vmem:[%s633 + $0xc] sm:$0xf] %v647
        %649 = vst [vmem:[%s633 + $0x10] sm:$0xf] %v345
        %v650 = vld [vmem:[%s633 + $0x14] sm:$0x1]
        %v651 = vsel %vm642, %v346, %v650
        %652 = vst [vmem:[%s633 + $0x14] sm:$0x1] %v651
        %v653 = vld [vmem:[%s633 + $0x18] sm:$0xf]
        %v654 = vsel %vm636, %v353, %v653
        %655 = vst [vmem:[%s633 + $0x18] sm:$0xf] %v654
        %656 = vst [vmem:[%s633 + $0x1c] sm:$0xf] %v362
        %v657 = vld [vmem:[%s633 + $0x20] sm:$0x1]
        %v658 = vsel %vm642, %v363, %v657
        %659 = vst [vmem:[%s633 + $0x20] sm:$0x1] %v658
        %v660 = vld [vmem:[%s633 + $0x24] sm:$0xf]
        %v661 = vsel %vm636, %v370, %v660
        %662 = vst [vmem:[%s633 + $0x24] sm:$0xf] %v661
        %663 = vst [vmem:[%s633 + $0x28] sm:$0xf] %v379
        %v664 = vld [vmem:[%s633 + $0x2c] sm:$0x1]
        %v665 = vsel %vm642, %v380, %v664
        %666 = vst [vmem:[%s633 + $0x2c] sm:$0x1] %v665
        %v667 = vld [vmem:[%s633 + $0x30] sm:$0xf]
        %v668 = vsel %vm636, %v387, %v667
        %669 = vst [vmem:[%s633 + $0x30] sm:$0xf] %v668
        %670 = vst [vmem:[%s633 + $0x34] sm:$0xf] %v396
        %v671 = vld [vmem:[%s633 + $0x38] sm:$0x1]
        %v672 = vsel %vm642, %v397, %v671
        %673 = vst [vmem:[%s633 + $0x38] sm:$0x1] %v672
        %v674 = vld [vmem:[%s633 + $0x3c] sm:$0xf]
        %v675 = vsel %vm636, %v404, %v674
        %676 = vst [vmem:[%s633 + $0x3c] sm:$0xf] %v675
        %677 = vst [vmem:[%s633 + $0x40] sm:$0xf] %v413
        %v678 = vld [vmem:[%s633 + $0x44] sm:$0x1]
        %v679 = vsel %vm642, %v414, %v678
        %680 = vst [vmem:[%s633 + $0x44] sm:$0x1] %v679
        %v681 = vld [vmem:[%s633 + $0x48] sm:$0xf]
        %v682 = vsel %vm636, %v421, %v681
        %683 = vst [vmem:[%s633 + $0x48] sm:$0xf] %v682
        %684 = vst [vmem:[%s633 + $0x4c] sm:$0xf] %v430
        %v685 = vld [vmem:[%s633 + $0x50] sm:$0x1]
        %v686 = vsel %vm642, %v431, %v685
        %687 = vst [vmem:[%s633 + $0x50] sm:$0x1] %v686
        %v688 = vld [vmem:[%s633 + $0x54] sm:$0xf]
        %v689 = vsel %vm636, %v438, %v688
        %690 = vst [vmem:[%s633 + $0x54] sm:$0xf] %v689
        %691 = vst [vmem:[%s633 + $0x58] sm:$0xf] %v447
        %v692 = vld [vmem:[%s633 + $0x5c] sm:$0x1]
        %v693 = vsel %vm642, %v448, %v692
        %694 = vst [vmem:[%s633 + $0x5c] sm:$0x1] %v693
        %v695 = vld [vmem:[%s633 + $0x60] sm:$0xf]
        %v696 = vsel %vm636, %v455, %v695
        %697 = vst [vmem:[%s633 + $0x60] sm:$0xf] %v696
        %698 = vst [vmem:[%s633 + $0x64] sm:$0xf] %v464
        %v699 = vld [vmem:[%s633 + $0x68] sm:$0x1]
        %v700 = vsel %vm642, %v465, %v699
        %701 = vst [vmem:[%s633 + $0x68] sm:$0x1] %v700
        %v702 = vld [vmem:[%s633 + $0x6c] sm:$0xf]
        %v703 = vsel %vm636, %v472, %v702
        %704 = vst [vmem:[%s633 + $0x6c] sm:$0xf] %v703
        %705 = vst [vmem:[%s633 + $0x70] sm:$0xf] %v481
        %v706 = vld [vmem:[%s633 + $0x74] sm:$0x1]
        %v707 = vsel %vm642, %v482, %v706
        %708 = vst [vmem:[%s633 + $0x74] sm:$0x1] %v707
        %v709 = vld [vmem:[%s633 + $0x78] sm:$0xf]
        %v710 = vsel %vm636, %v489, %v709
        %711 = vst [vmem:[%s633 + $0x78] sm:$0xf] %v710
        %712 = vst [vmem:[%s633 + $0x7c] sm:$0xf] %v498
        %v713 = vld [vmem:[%s633 + $0x80] sm:$0x1]
        %v714 = vsel %vm642, %v499, %v713
        %715 = vst [vmem:[%s633 + $0x80] sm:$0x1] %v714
        %v716 = vld [vmem:[%s633 + $0x84] sm:$0xf]
        %v717 = vsel %vm636, %v506, %v716
        %718 = vst [vmem:[%s633 + $0x84] sm:$0xf] %v717
        %719 = vst [vmem:[%s633 + $0x88] sm:$0xf] %v515
        %v720 = vld [vmem:[%s633 + $0x8c] sm:$0x1]
        %v721 = vsel %vm642, %v516, %v720
        %722 = vst [vmem:[%s633 + $0x8c] sm:$0x1] %v721
        %v723 = vld [vmem:[%s633 + $0x90] sm:$0xf]
        %v724 = vsel %vm636, %v523, %v723
        %725 = vst [vmem:[%s633 + $0x90] sm:$0xf] %v724
        %726 = vst [vmem:[%s633 + $0x94] sm:$0xf] %v532
        %v727 = vld [vmem:[%s633 + $0x98] sm:$0x1]
        %v728 = vsel %vm642, %v533, %v727
        %729 = vst [vmem:[%s633 + $0x98] sm:$0x1] %v728
        %v730 = vld [vmem:[%s633 + $0x9c] sm:$0xf]
        %v731 = vsel %vm636, %v540, %v730
        %732 = vst [vmem:[%s633 + $0x9c] sm:$0xf] %v731
        %733 = vst [vmem:[%s633 + $0xa0] sm:$0xf] %v549
        %v734 = vld [vmem:[%s633 + $0xa4] sm:$0x1]
        %v735 = vsel %vm642, %v550, %v734
        %736 = vst [vmem:[%s633 + $0xa4] sm:$0x1] %v735
        %v737 = vld [vmem:[%s633 + $0xa8] sm:$0xf]
        %v738 = vsel %vm636, %v557, %v737
        %739 = vst [vmem:[%s633 + $0xa8] sm:$0xf] %v738
        %740 = vst [vmem:[%s633 + $0xac] sm:$0xf] %v566
        %v741 = vld [vmem:[%s633 + $0xb0] sm:$0x1]
        %v742 = vsel %vm642, %v567, %v741
        %743 = vst [vmem:[%s633 + $0xb0] sm:$0x1] %v742
        %v744 = vld [vmem:[%s633 + $0xb4] sm:$0xf]
        %v745 = vsel %vm636, %v574, %v744
        %746 = vst [vmem:[%s633 + $0xb4] sm:$0xf] %v745
        %747 = vst [vmem:[%s633 + $0xb8] sm:$0xf] %v583
        %v748 = vld [vmem:[%s633 + $0xbc] sm:$0x1]
        %v749 = vsel %vm642, %v584, %v748
        %750 = vst [vmem:[%s633 + $0xbc] sm:$0x1] %v749
        %v751 = vld [vmem:[#allocation2] sm:$0xf]
        %v752 = vld [vmem:[#allocation2 + $0x4] sm:$0xf]
        %v753 = vld [vmem:[#allocation2 + $0xc] sm:$0xf]
        %v754 = vld [vmem:[#allocation2 + $0x10] sm:$0xf]
        %v755 = vld [vmem:[#allocation2 + $0x18] sm:$0xf]
        %v756 = vld [vmem:[#allocation2 + $0x1c] sm:$0xf]
        %v757 = vld [vmem:[#allocation2 + $0x24] sm:$0xf]
        %v758 = vld [vmem:[#allocation2 + $0x28] sm:$0xf]
        %v759 = vld [vmem:[#allocation2 + $0x30] sm:$0xf]
        %v760 = vld [vmem:[#allocation2 + $0x34] sm:$0xf]
        %v761 = vld [vmem:[#allocation2 + $0x3c] sm:$0xf]
        %v762 = vld [vmem:[#allocation2 + $0x40] sm:$0xf]
        %v763 = vld [vmem:[#allocation2 + $0x48] sm:$0xf]
        %v764 = vld [vmem:[#allocation2 + $0x4c] sm:$0xf]
        %v765 = vld [vmem:[#allocation2 + $0x54] sm:$0xf]
        %v766 = vld [vmem:[#allocation2 + $0x58] sm:$0xf]
        %v767 = vld [vmem:[#allocation2 + $0x60] sm:$0xf]
        %v768 = vld [vmem:[#allocation2 + $0x64] sm:$0xf]
        %v769 = vld [vmem:[#allocation2 + $0x6c] sm:$0xf]
        %v770 = vld [vmem:[#allocation2 + $0x70] sm:$0xf]
        %v771 = vld [vmem:[#allocation2 + $0x78] sm:$0xf]
        %v772 = vld [vmem:[#allocation2 + $0x7c] sm:$0xf]
        %v773 = vld [vmem:[#allocation2 + $0x84] sm:$0xf]
        %v774 = vld [vmem:[#allocation2 + $0x88] sm:$0xf]
        %v775 = vld [vmem:[#allocation2 + $0x90] sm:$0xf]
        %v776 = vld [vmem:[#allocation2 + $0x94] sm:$0xf]
        %v777 = vld [vmem:[#allocation2 + $0x9c] sm:$0xf]
        %v778 = vld [vmem:[#allocation2 + $0xa0] sm:$0xf]
        %v779 = vld [vmem:[#allocation2 + $0xa8] sm:$0xf]
        %v780 = vld [vmem:[#allocation2 + $0xac] sm:$0xf]
        %v781 = vld [vmem:[#allocation2 + $0xb4] sm:$0xf]
        %v782 = vld [vmem:[#allocation2 + $0xb8] sm:$0xf]
        %783 = vst [vmem:[#allocation3] sm:$0xf] %v751
        %784 = vst [vmem:[#allocation3 + $0x24] sm:$0xf] %v752
        %785 = vst [vmem:[#allocation3 + $0x48] sm:$0xf] %v753
        %786 = vst [vmem:[#allocation3 + $0x6c] sm:$0xf] %v754
        %787 = vst [vmem:[#allocation3 + $0x90] sm:$0xf] %v755
        %788 = vst [vmem:[#allocation3 + $0xb4] sm:$0xf] %v756
        %789 = vst [vmem:[#allocation3 + $0xd8] sm:$0xf] %v757
        %790 = vst [vmem:[#allocation3 + $0xfc] sm:$0xf] %v758
        %791 = vst [vmem:[#allocation3 + $0x120] sm:$0xf] %v759
        %792 = vst [vmem:[#allocation3 + $0x144] sm:$0xf] %v760
        %793 = vst [vmem:[#allocation3 + $0x168] sm:$0xf] %v761
        %794 = vst [vmem:[#allocation3 + $0x18c] sm:$0xf] %v762
        %795 = vst [vmem:[#allocation3 + $0x1b0] sm:$0xf] %v763
        %796 = vst [vmem:[#allocation3 + $0x1d4] sm:$0xf] %v764
        %797 = vst [vmem:[#allocation3 + $0x1f8] sm:$0xf] %v765
        %798 = vst [vmem:[#allocation3 + $0x21c] sm:$0xf] %v766
        %799 = vst [vmem:[#allocation3 + $0x240] sm:$0xf] %v767
        %800 = vst [vmem:[#allocation3 + $0x264] sm:$0xf] %v768
        %801 = vst [vmem:[#allocation3 + $0x288] sm:$0xf] %v769
        %802 = vst [vmem:[#allocation3 + $0x2ac] sm:$0xf] %v770
        %803 = vst [vmem:[#allocation3 + $0x2d0] sm:$0xf] %v771
        %804 = vst [vmem:[#allocation3 + $0x2f4] sm:$0xf] %v772
        %805 = vst [vmem:[#allocation3 + $0x318] sm:$0xf] %v773
        %806 = vst [vmem:[#allocation3 + $0x33c] sm:$0xf] %v774
        %807 = vst [vmem:[#allocation3 + $0x360] sm:$0xf] %v775
        %808 = vst [vmem:[#allocation3 + $0x384] sm:$0xf] %v776
        %809 = vst [vmem:[#allocation3 + $0x3a8] sm:$0xf] %v777
        %810 = vst [vmem:[#allocation3 + $0x3cc] sm:$0xf] %v778
        %811 = vst [vmem:[#allocation3 + $0x3f0] sm:$0xf] %v779
        %812 = vst [vmem:[#allocation3 + $0x414] sm:$0xf] %v780
        %813 = vst [vmem:[#allocation3 + $0x438] sm:$0xf] %v781
        %814 = vst [vmem:[#allocation3 + $0x45c] sm:$0xf] %v782
        %v815 = vld [vmem:[#allocation2] sm:$0xf]
        %v816 = vld [vmem:[#allocation2 + $0x4] sm:$0xf]
        %v817 = vld [vmem:[#allocation2 + $0x8] sm:$0x1]
        %v818 = vld [vmem:[#allocation2 + $0xc] sm:$0xf]
        %v819 = vld [vmem:[#allocation2 + $0x10] sm:$0xf]
        %v820 = vld [vmem:[#allocation2 + $0x14] sm:$0x1]
        %v821 = vld [vmem:[#allocation2 + $0x18] sm:$0xf]
        %v822 = vld [vmem:[#allocation2 + $0x1c] sm:$0xf]
        %v823 = vld [vmem:[#allocation2 + $0x20] sm:$0x1]
        %v824 = vld [vmem:[#allocation2 + $0x24] sm:$0xf]
        %v825 = vld [vmem:[#allocation2 + $0x28] sm:$0xf]
        %v826 = vld [vmem:[#allocation2 + $0x2c] sm:$0x1]
        %v827 = vld [vmem:[#allocation2 + $0x30] sm:$0xf]
        %v828 = vld [vmem:[#allocation2 + $0x34] sm:$0xf]
        %v829 = vld [vmem:[#allocation2 + $0x38] sm:$0x1]
        %v830 = vld [vmem:[#allocation2 + $0x3c] sm:$0xf]
        %v831 = vld [vmem:[#allocation2 + $0x40] sm:$0xf]
        %v832 = vld [vmem:[#allocation2 + $0x44] sm:$0x1]
        %v833 = vld [vmem:[#allocation2 + $0x48] sm:$0xf]
        %v834 = vld [vmem:[#allocation2 + $0x4c] sm:$0xf]
        %v835 = vld [vmem:[#allocation2 + $0x50] sm:$0x1]
        %v836 = vld [vmem:[#allocation2 + $0x54] sm:$0xf]
        %v837 = vld [vmem:[#allocation2 + $0x58] sm:$0xf]
        %v838 = vld [vmem:[#allocation2 + $0x5c] sm:$0x1]
        %v839 = vld [vmem:[#allocation2 + $0x60] sm:$0xf]
        %v840 = vld [vmem:[#allocation2 + $0x64] sm:$0xf]
        %v841 = vld [vmem:[#allocation2 + $0x68] sm:$0x1]
        %v842 = vld [vmem:[#allocation2 + $0x6c] sm:$0xf]
        %v843 = vld [vmem:[#allocation2 + $0x70] sm:$0xf]
        %v844 = vld [vmem:[#allocation2 + $0x74] sm:$0x1]
        %v845 = vld [vmem:[#allocation2 + $0x78] sm:$0xf]
        %v846 = vld [vmem:[#allocation2 + $0x7c] sm:$0xf]
        %v847 = vld [vmem:[#allocation2 + $0x80] sm:$0x1]
        %v848 = vld [vmem:[#allocation2 + $0x84] sm:$0xf]
        %v849 = vld [vmem:[#allocation2 + $0x88] sm:$0xf]
        %v850 = vld [vmem:[#allocation2 + $0x8c] sm:$0x1]
        %v851 = vld [vmem:[#allocation2 + $0x90] sm:$0xf]
        %v852 = vld [vmem:[#allocation2 + $0x94] sm:$0xf]
        %v853 = vld [vmem:[#allocation2 + $0x98] sm:$0x1]
        %v854 = vld [vmem:[#allocation2 + $0x9c] sm:$0xf]
        %v855 = vld [vmem:[#allocation2 + $0xa0] sm:$0xf]
        %v856 = vld [vmem:[#allocation2 + $0xa4] sm:$0x1]
        %v857 = vld [vmem:[#allocation2 + $0xa8] sm:$0xf]
        %v858 = vld [vmem:[#allocation2 + $0xac] sm:$0xf]
        %v859 = vld [vmem:[#allocation2 + $0xb0] sm:$0x1]
        %v860 = vld [vmem:[#allocation2 + $0xb4] sm:$0xf]
        %v861 = vld [vmem:[#allocation2 + $0xb8] sm:$0xf]
        %v862 = vld [vmem:[#allocation2 + $0xbc] sm:$0x1]
        %vm863 = vsmask.f32 3328
        %vm864 = vsmask.f32 7440
        %vm865 = vmor %vm863, %vm864
        %v867 = vshrl.u32 %v815, 16
        %v869 = vrot.slane %v867, 4
        %v870 = vshll.u32 %v815, 16
        %v872 = vrot.slane %v870, 5
        %v873 = vor.u32 %v869, %v872
        %v874 = vrot.slane %v873, 4
        %v876 = vshll.u32 %v816, 16
        %v878 = vrot.slane %v876, 5
        %v879 = vsel %vm865, %v874, %v878
        %v880 = vshrl.u32 %v816, 16
        %v882 = vrot.slane %v880, 4
        %v883 = vor.u32 %v882, %v878
        %v884 = vrot.slane %v883, 4
        %v886 = vshll.u32 %v817, 16
        %v888 = vrot.slane %v886, 5
        %v889 = vsel %vm865, %v884, %v888
        %v891 = vshrl.u32 %v818, 16
        %v893 = vrot.slane %v891, 4
        %v894 = vshll.u32 %v818, 16
        %v896 = vrot.slane %v894, 5
        %v897 = vor.u32 %v893, %v896
        %v898 = vrot.slane %v897, 4
        %v900 = vshll.u32 %v819, 16
        %v902 = vrot.slane %v900, 5
        %v903 = vsel %vm865, %v898, %v902
        %v904 = vshrl.u32 %v819, 16
        %v906 = vrot.slane %v904, 4
        %v907 = vor.u32 %v906, %v902
        %v908 = vrot.slane %v907, 4
        %v910 = vshll.u32 %v820, 16
        %v912 = vrot.slane %v910, 5
        %v913 = vsel %vm865, %v908, %v912
        %v915 = vshrl.u32 %v821, 16
        %v917 = vrot.slane %v915, 4
        %v918 = vshll.u32 %v821, 16
        %v920 = vrot.slane %v918, 5
        %v921 = vor.u32 %v917, %v920
        %v922 = vrot.slane %v921, 4
        %v924 = vshll.u32 %v822, 16
        %v926 = vrot.slane %v924, 5
        %v927 = vsel %vm865, %v922, %v926
        %v928 = vshrl.u32 %v822, 16
        %v930 = vrot.slane %v928, 4
        %v931 = vor.u32 %v930, %v926
        %v932 = vrot.slane %v931, 4
        %v934 = vshll.u32 %v823, 16
        %v936 = vrot.slane %v934, 5
        %v937 = vsel %vm865, %v932, %v936
        %v939 = vshrl.u32 %v824, 16
        %v941 = vrot.slane %v939, 4
        %v942 = vshll.u32 %v824, 16
        %v944 = vrot.slane %v942, 5
        %v945 = vor.u32 %v941, %v944
        %v946 = vrot.slane %v945, 4
        %v948 = vshll.u32 %v825, 16
        %v950 = vrot.slane %v948, 5
        %v951 = vsel %vm865, %v946, %v950
        %v952 = vshrl.u32 %v825, 16
        %v954 = vrot.slane %v952, 4
        %v955 = vor.u32 %v954, %v950
        %v956 = vrot.slane %v955, 4
        %v958 = vshll.u32 %v826, 16
        %v960 = vrot.slane %v958, 5
        %v961 = vsel %vm865, %v956, %v960
        %v963 = vshrl.u32 %v827, 16
        %v965 = vrot.slane %v963, 4
        %v966 = vshll.u32 %v827, 16
        %v968 = vrot.slane %v966, 5
        %v969 = vor.u32 %v965, %v968
        %v970 = vrot.slane %v969, 4
        %v972 = vshll.u32 %v828, 16
        %v974 = vrot.slane %v972, 5
        %v975 = vsel %vm865, %v970, %v974
        %v976 = vshrl.u32 %v828, 16
        %v978 = vrot.slane %v976, 4
        %v979 = vor.u32 %v978, %v974
        %v980 = vrot.slane %v979, 4
        %v982 = vshll.u32 %v829, 16
        %v984 = vrot.slane %v982, 5
        %v985 = vsel %vm865, %v980, %v984
        %v987 = vshrl.u32 %v830, 16
        %v989 = vrot.slane %v987, 4
        %v990 = vshll.u32 %v830, 16
        %v992 = vrot.slane %v990, 5
        %v993 = vor.u32 %v989, %v992
        %v994 = vrot.slane %v993, 4
        %v996 = vshll.u32 %v831, 16
        %v998 = vrot.slane %v996, 5
        %v999 = vsel %vm865, %v994, %v998
        %v1000 = vshrl.u32 %v831, 16
        %v1002 = vrot.slane %v1000, 4
        %v1003 = vor.u32 %v1002, %v998
        %v1004 = vrot.slane %v1003, 4
        %v1006 = vshll.u32 %v832, 16
        %v1008 = vrot.slane %v1006, 5
        %v1009 = vsel %vm865, %v1004, %v1008
        %v1011 = vshrl.u32 %v833, 16
        %v1013 = vrot.slane %v1011, 4
        %v1014 = vshll.u32 %v833, 16
        %v1016 = vrot.slane %v1014, 5
        %v1017 = vor.u32 %v1013, %v1016
        %v1018 = vrot.slane %v1017, 4
        %v1020 = vshll.u32 %v834, 16
        %v1022 = vrot.slane %v1020, 5
        %v1023 = vsel %vm865, %v1018, %v1022
        %v1024 = vshrl.u32 %v834, 16
        %v1026 = vrot.slane %v1024, 4
        %v1027 = vor.u32 %v1026, %v1022
        %v1028 = vrot.slane %v1027, 4
        %v1030 = vshll.u32 %v835, 16
        %v1032 = vrot.slane %v1030, 5
        %v1033 = vsel %vm865, %v1028, %v1032
        %v1035 = vshrl.u32 %v836, 16
        %v1037 = vrot.slane %v1035, 4
        %v1038 = vshll.u32 %v836, 16
        %v1040 = vrot.slane %v1038, 5
        %v1041 = vor.u32 %v1037, %v1040
        %v1042 = vrot.slane %v1041, 4
        %v1044 = vshll.u32 %v837, 16
        %v1046 = vrot.slane %v1044, 5
        %v1047 = vsel %vm865, %v1042, %v1046
        %v1048 = vshrl.u32 %v837, 16
        %v1050 = vrot.slane %v1048, 4
        %v1051 = vor.u32 %v1050, %v1046
        %v1052 = vrot.slane %v1051, 4
        %v1054 = vshll.u32 %v838, 16
        %v1056 = vrot.slane %v1054, 5
        %v1057 = vsel %vm865, %v1052, %v1056
        %v1059 = vshrl.u32 %v839, 16
        %v1061 = vrot.slane %v1059, 4
        %v1062 = vshll.u32 %v839, 16
        %v1064 = vrot.slane %v1062, 5
        %v1065 = vor.u32 %v1061, %v1064
        %v1066 = vrot.slane %v1065, 4
        %v1068 = vshll.u32 %v840, 16
        %v1070 = vrot.slane %v1068, 5
        %v1071 = vsel %vm865, %v1066, %v1070
        %v1072 = vshrl.u32 %v840, 16
        %v1074 = vrot.slane %v1072, 4
        %v1075 = vor.u32 %v1074, %v1070
        %v1076 = vrot.slane %v1075, 4
        %v1078 = vshll.u32 %v841, 16
        %v1080 = vrot.slane %v1078, 5
        %v1081 = vsel %vm865, %v1076, %v1080
        %v1083 = vshrl.u32 %v842, 16
        %v1085 = vrot.slane %v1083, 4
        %v1086 = vshll.u32 %v842, 16
        %v1088 = vrot.slane %v1086, 5
        %v1089 = vor.u32 %v1085, %v1088
        %v1090 = vrot.slane %v1089, 4
        %v1092 = vshll.u32 %v843, 16
        %v1094 = vrot.slane %v1092, 5
        %v1095 = vsel %vm865, %v1090, %v1094
        %v1096 = vshrl.u32 %v843, 16
        %v1098 = vrot.slane %v1096, 4
        %v1099 = vor.u32 %v1098, %v1094
        %v1100 = vrot.slane %v1099, 4
        %v1102 = vshll.u32 %v844, 16
        %v1104 = vrot.slane %v1102, 5
        %v1105 = vsel %vm865, %v1100, %v1104
        %v1107 = vshrl.u32 %v845, 16
        %v1109 = vrot.slane %v1107, 4
        %v1110 = vshll.u32 %v845, 16
        %v1112 = vrot.slane %v1110, 5
        %v1113 = vor.u32 %v1109, %v1112
        %v1114 = vrot.slane %v1113, 4
        %v1116 = vshll.u32 %v846, 16
        %v1118 = vrot.slane %v1116, 5
        %v1119 = vsel %vm865, %v1114, %v1118
        %v1120 = vshrl.u32 %v846, 16
        %v1122 = vrot.slane %v1120, 4
        %v1123 = vor.u32 %v1122, %v1118
        %v1124 = vrot.slane %v1123, 4
        %v1126 = vshll.u32 %v847, 16
        %v1128 = vrot.slane %v1126, 5
        %v1129 = vsel %vm865, %v1124, %v1128
        %v1131 = vshrl.u32 %v848, 16
        %v1133 = vrot.slane %v1131, 4
        %v1134 = vshll.u32 %v848, 16
        %v1136 = vrot.slane %v1134, 5
        %v1137 = vor.u32 %v1133, %v1136
        %v1138 = vrot.slane %v1137, 4
        %v1140 = vshll.u32 %v849, 16
        %v1142 = vrot.slane %v1140, 5
        %v1143 = vsel %vm865, %v1138, %v1142
        %v1144 = vshrl.u32 %v849, 16
        %v1146 = vrot.slane %v1144, 4
        %v1147 = vor.u32 %v1146, %v1142
        %v1148 = vrot.slane %v1147, 4
        %v1150 = vshll.u32 %v850, 16
        %v1152 = vrot.slane %v1150, 5
        %v1153 = vsel %vm865, %v1148, %v1152
        %v1155 = vshrl.u32 %v851, 16
        %v1157 = vrot.slane %v1155, 4
        %v1158 = vshll.u32 %v851, 16
        %v1160 = vrot.slane %v1158, 5
        %v1161 = vor.u32 %v1157, %v1160
        %v1162 = vrot.slane %v1161, 4
        %v1164 = vshll.u32 %v852, 16
        %v1166 = vrot.slane %v1164, 5
        %v1167 = vsel %vm865, %v1162, %v1166
        %v1168 = vshrl.u32 %v852, 16
        %v1170 = vrot.slane %v1168, 4
        %v1171 = vor.u32 %v1170, %v1166
        %v1172 = vrot.slane %v1171, 4
        %v1174 = vshll.u32 %v853, 16
        %v1176 = vrot.slane %v1174, 5
        %v1177 = vsel %vm865, %v1172, %v1176
        %v1179 = vshrl.u32 %v854, 16
        %v1181 = vrot.slane %v1179, 4
        %v1182 = vshll.u32 %v854, 16
        %v1184 = vrot.slane %v1182, 5
        %v1185 = vor.u32 %v1181, %v1184
        %v1186 = vrot.slane %v1185, 4
        %v1188 = vshll.u32 %v855, 16
        %v1190 = vrot.slane %v1188, 5
        %v1191 = vsel %vm865, %v1186, %v1190
        %v1192 = vshrl.u32 %v855, 16
        %v1194 = vrot.slane %v1192, 4
        %v1195 = vor.u32 %v1194, %v1190
        %v1196 = vrot.slane %v1195, 4
        %v1198 = vshll.u32 %v856, 16
        %v1200 = vrot.slane %v1198, 5
        %v1201 = vsel %vm865, %v1196, %v1200
        %v1203 = vshrl.u32 %v857, 16
        %v1205 = vrot.slane %v1203, 4
        %v1206 = vshll.u32 %v857, 16
        %v1208 = vrot.slane %v1206, 5
        %v1209 = vor.u32 %v1205, %v1208
        %v1210 = vrot.slane %v1209, 4
        %v1212 = vshll.u32 %v858, 16
        %v1214 = vrot.slane %v1212, 5
        %v1215 = vsel %vm865, %v1210, %v1214
        %v1216 = vshrl.u32 %v858, 16
        %v1218 = vrot.slane %v1216, 4
        %v1219 = vor.u32 %v1218, %v1214
        %v1220 = vrot.slane %v1219, 4
        %v1222 = vshll.u32 %v859, 16
        %v1224 = vrot.slane %v1222, 5
        %v1225 = vsel %vm865, %v1220, %v1224
        %v1227 = vshrl.u32 %v860, 16
        %v1229 = vrot.slane %v1227, 4
        %v1230 = vshll.u32 %v860, 16
        %v1232 = vrot.slane %v1230, 5
        %v1233 = vor.u32 %v1229, %v1232
        %v1234 = vrot.slane %v1233, 4
        %v1236 = vshll.u32 %v861, 16
        %v1238 = vrot.slane %v1236, 5
        %v1239 = vsel %vm865, %v1234, %v1238
        %v1240 = vshrl.u32 %v861, 16
        %v1242 = vrot.slane %v1240, 4
        %v1243 = vor.u32 %v1242, %v1238
        %v1244 = vrot.slane %v1243, 4
        %v1246 = vshll.u32 %v862, 16
        %v1248 = vrot.slane %v1246, 5
        %v1249 = vsel %vm865, %v1244, %v1248
        %1282 = vst [vmem:[#allocation3 + $0x4] sm:$0xf] %v879
        %1283 = vst [vmem:[#allocation3 + $0x28] sm:$0xf] %v889
        %1284 = vst [vmem:[#allocation3 + $0x4c] sm:$0xf] %v903
        %1285 = vst [vmem:[#allocation3 + $0x70] sm:$0xf] %v913
        %1286 = vst [vmem:[#allocation3 + $0x94] sm:$0xf] %v927
        %1287 = vst [vmem:[#allocation3 + $0xb8] sm:$0xf] %v937
        %1288 = vst [vmem:[#allocation3 + $0xdc] sm:$0xf] %v951
        %1289 = vst [vmem:[#allocation3 + $0x100] sm:$0xf] %v961
        %1290 = vst [vmem:[#allocation3 + $0x124] sm:$0xf] %v975
        %1291 = vst [vmem:[#allocation3 + $0x148] sm:$0xf] %v985
        %1292 = vst [vmem:[#allocation3 + $0x16c] sm:$0xf] %v999
        %1293 = vst [vmem:[#allocation3 + $0x190] sm:$0xf] %v1009
        %1294 = vst [vmem:[#allocation3 + $0x1b4] sm:$0xf] %v1023
        %1295 = vst [vmem:[#allocation3 + $0x1d8] sm:$0xf] %v1033
        %1296 = vst [vmem:[#allocation3 + $0x1fc] sm:$0xf] %v1047
        %1297 = vst [vmem:[#allocation3 + $0x220] sm:$0xf] %v1057
        %1298 = vst [vmem:[#allocation3 + $0x244] sm:$0xf] %v1071
        %1299 = vst [vmem:[#allocation3 + $0x268] sm:$0xf] %v1081
        %1300 = vst [vmem:[#allocation3 + $0x28c] sm:$0xf] %v1095
        %1301 = vst [vmem:[#allocation3 + $0x2b0] sm:$0xf] %v1105
        %1302 = vst [vmem:[#allocation3 + $0x2d4] sm:$0xf] %v1119
        %1303 = vst [vmem:[#allocation3 + $0x2f8] sm:$0xf] %v1129
        %1304 = vst [vmem:[#allocation3 + $0x31c] sm:$0xf] %v1143
        %1305 = vst [vmem:[#allocation3 + $0x340] sm:$0xf] %v1153
        %1306 = vst [vmem:[#allocation3 + $0x364] sm:$0xf] %v1167
        %1307 = vst [vmem:[#allocation3 + $0x388] sm:$0xf] %v1177
        %1308 = vst [vmem:[#allocation3 + $0x3ac] sm:$0xf] %v1191
        %1309 = vst [vmem:[#allocation3 + $0x3d0] sm:$0xf] %v1201
        %1310 = vst [vmem:[#allocation3 + $0x3f4] sm:$0xf] %v1215
        %1311 = vst [vmem:[#allocation3 + $0x418] sm:$0xf] %v1225
        %1312 = vst [vmem:[#allocation3 + $0x43c] sm:$0xf] %v1239
        %1313 = vst [vmem:[#allocation3 + $0x460] sm:$0xf] %v1249
        %v1314 = vld [vmem:[#allocation2] sm:$0xe]
        %v1315 = vld [vmem:[#allocation2 + $0x4] sm:$0xf]
        %v1316 = vld [vmem:[#allocation2 + $0x8] sm:$0x1]
        %v1317 = vld [vmem:[#allocation2 + $0xc] sm:$0xe]
        %v1318 = vld [vmem:[#allocation2 + $0x10] sm:$0xf]
        %v1319 = vld [vmem:[#allocation2 + $0x14] sm:$0x1]
        %v1320 = vld [vmem:[#allocation2 + $0x18] sm:$0xe]
        %v1321 = vld [vmem:[#allocation2 + $0x1c] sm:$0xf]
        %v1322 = vld [vmem:[#allocation2 + $0x20] sm:$0x1]
        %v1323 = vld [vmem:[#allocation2 + $0x24] sm:$0xe]
        %v1324 = vld [vmem:[#allocation2 + $0x28] sm:$0xf]
        %v1325 = vld [vmem:[#allocation2 + $0x2c] sm:$0x1]
        %v1326 = vld [vmem:[#allocation2 + $0x30] sm:$0xe]
        %v1327 = vld [vmem:[#allocation2 + $0x34] sm:$0xf]
        %v1328 = vld [vmem:[#allocation2 + $0x38] sm:$0x1]
        %v1329 = vld [vmem:[#allocation2 + $0x3c] sm:$0xe]
        %v1330 = vld [vmem:[#allocation2 + $0x40] sm:$0xf]
        %v1331 = vld [vmem:[#allocation2 + $0x44] sm:$0x1]
        %v1332 = vld [vmem:[#allocation2 + $0x48] sm:$0xe]
        %v1333 = vld [vmem:[#allocation2 + $0x4c] sm:$0xf]
        %v1334 = vld [vmem:[#allocation2 + $0x50] sm:$0x1]
        %v1335 = vld [vmem:[#allocation2 + $0x54] sm:$0xe]
        %v1336 = vld [vmem:[#allocation2 + $0x58] sm:$0xf]
        %v1337 = vld [vmem:[#allocation2 + $0x5c] sm:$0x1]
        %v1338 = vld [vmem:[#allocation2 + $0x60] sm:$0xe]
        %v1339 = vld [vmem:[#allocation2 + $0x64] sm:$0xf]
        %v1340 = vld [vmem:[#allocation2 + $0x68] sm:$0x1]
        %v1341 = vld [vmem:[#allocation2 + $0x6c] sm:$0xe]
        %v1342 = vld [vmem:[#allocation2 + $0x70] sm:$0xf]
        %v1343 = vld [vmem:[#allocation2 + $0x74] sm:$0x1]
        %v1344 = vld [vmem:[#allocation2 + $0x78] sm:$0xe]
        %v1345 = vld [vmem:[#allocation2 + $0x7c] sm:$0xf]
        %v1346 = vld [vmem:[#allocation2 + $0x80] sm:$0x1]
        %v1347 = vld [vmem:[#allocation2 + $0x84] sm:$0xe]
        %v1348 = vld [vmem:[#allocation2 + $0x88] sm:$0xf]
        %v1349 = vld [vmem:[#allocation2 + $0x8c] sm:$0x1]
        %v1350 = vld [vmem:[#allocation2 + $0x90] sm:$0xe]
        %v1351 = vld [vmem:[#allocation2 + $0x94] sm:$0xf]
        %v1352 = vld [vmem:[#allocation2 + $0x98] sm:$0x1]
        %v1353 = vld [vmem:[#allocation2 + $0x9c] sm:$0xe]
        %v1354 = vld [vmem:[#allocation2 + $0xa0] sm:$0xf]
        %v1355 = vld [vmem:[#allocation2 + $0xa4] sm:$0x1]
        %v1356 = vld [vmem:[#allocation2 + $0xa8] sm:$0xe]
        %v1357 = vld [vmem:[#allocation2 + $0xac] sm:$0xf]
        %v1358 = vld [vmem:[#allocation2 + $0xb0] sm:$0x1]
        %v1359 = vld [vmem:[#allocation2 + $0xb4] sm:$0xe]
        %v1360 = vld [vmem:[#allocation2 + $0xb8] sm:$0xf]
        %v1361 = vld [vmem:[#allocation2 + $0xbc] sm:$0x1]
        %vm1410 = vcmask 1042432
        %vm1411 = vcmask 1046532
        %vm1412 = vmor %vm1410, %vm1411
        %v1413 = vrot.slane %v1314, 5
        %v1414 = vrot.slane %v1413, 4
        %v1415 = vrot.slane %v1315, 5
        %v1416 = vsel %vm1412, %v1414, %v1415
        %v1417 = vrot.slane %v1415, 4
        %v1418 = vrot.slane %v1316, 5
        %v1419 = vsel %vm1412, %v1417, %v1418
        %v1420 = vrot.slane %v1317, 5
        %v1421 = vrot.slane %v1420, 4
        %v1422 = vrot.slane %v1318, 5
        %v1423 = vsel %vm1412, %v1421, %v1422
        %v1424 = vrot.slane %v1422, 4
        %v1425 = vrot.slane %v1319, 5
        %v1426 = vsel %vm1412, %v1424, %v1425
        %v1427 = vrot.slane %v1320, 5
        %v1428 = vrot.slane %v1427, 4
        %v1429 = vrot.slane %v1321, 5
        %v1430 = vsel %vm1412, %v1428, %v1429
        %v1431 = vrot.slane %v1429, 4
        %v1432 = vrot.slane %v1322, 5
        %v1433 = vsel %vm1412, %v1431, %v1432
        %v1434 = vrot.slane %v1323, 5
        %v1435 = vrot.slane %v1434, 4
        %v1436 = vrot.slane %v1324, 5
        %v1437 = vsel %vm1412, %v1435, %v1436
        %v1438 = vrot.slane %v1436, 4
        %v1439 = vrot.slane %v1325, 5
        %v1440 = vsel %vm1412, %v1438, %v1439
        %v1441 = vrot.slane %v1326, 5
        %v1442 = vrot.slane %v1441, 4
        %v1443 = vrot.slane %v1327, 5
        %v1444 = vsel %vm1412, %v1442, %v1443
        %v1445 = vrot.slane %v1443, 4
        %v1446 = vrot.slane %v1328, 5
        %v1447 = vsel %vm1412, %v1445, %v1446
        %v1448 = vrot.slane %v1329, 5
        %v1449 = vrot.slane %v1448, 4
        %v1450 = vrot.slane %v1330, 5
        %v1451 = vsel %vm1412, %v1449, %v1450
        %v1452 = vrot.slane %v1450, 4
        %v1453 = vrot.slane %v1331, 5
        %v1454 = vsel %vm1412, %v1452, %v1453
        %v1455 = vrot.slane %v1332, 5
        %v1456 = vrot.slane %v1455, 4
        %v1457 = vrot.slane %v1333, 5
        %v1458 = vsel %vm1412, %v1456, %v1457
        %v1459 = vrot.slane %v1457, 4
        %v1460 = vrot.slane %v1334, 5
        %v1461 = vsel %vm1412, %v1459, %v1460
        %v1462 = vrot.slane %v1335, 5
        %v1463 = vrot.slane %v1462, 4
        %v1464 = vrot.slane %v1336, 5
        %v1465 = vsel %vm1412, %v1463, %v1464
        %v1466 = vrot.slane %v1464, 4
        %v1467 = vrot.slane %v1337, 5
        %v1468 = vsel %vm1412, %v1466, %v1467
        %v1469 = vrot.slane %v1338, 5
        %v1470 = vrot.slane %v1469, 4
        %v1471 = vrot.slane %v1339, 5
        %v1472 = vsel %vm1412, %v1470, %v1471
        %v1473 = vrot.slane %v1471, 4
        %v1474 = vrot.slane %v1340, 5
        %v1475 = vsel %vm1412, %v1473, %v1474
        %v1476 = vrot.slane %v1341, 5
        %v1477 = vrot.slane %v1476, 4
        %v1478 = vrot.slane %v1342, 5
        %v1479 = vsel %vm1412, %v1477, %v1478
        %v1480 = vrot.slane %v1478, 4
        %v1481 = vrot.slane %v1343, 5
        %v1482 = vsel %vm1412, %v1480, %v1481
        %v1483 = vrot.slane %v1344, 5
        %v1484 = vrot.slane %v1483, 4
        %v1485 = vrot.slane %v1345, 5
        %v1486 = vsel %vm1412, %v1484, %v1485
        %v1487 = vrot.slane %v1485, 4
        %v1488 = vrot.slane %v1346, 5
        %v1489 = vsel %vm1412, %v1487, %v1488
        %v1490 = vrot.slane %v1347, 5
        %v1491 = vrot.slane %v1490, 4
        %v1492 = vrot.slane %v1348, 5
        %v1493 = vsel %vm1412, %v1491, %v1492
        %v1494 = vrot.slane %v1492, 4
        %v1495 = vrot.slane %v1349, 5
        %v1496 = vsel %vm1412, %v1494, %v1495
        %v1497 = vrot.slane %v1350, 5
        %v1498 = vrot.slane %v1497, 4
        %v1499 = vrot.slane %v1351, 5
        %v1500 = vsel %vm1412, %v1498, %v1499
        %v1501 = vrot.slane %v1499, 4
        %v1502 = vrot.slane %v1352, 5
        %v1503 = vsel %vm1412, %v1501, %v1502
        %v1504 = vrot.slane %v1353, 5
        %v1505 = vrot.slane %v1504, 4
        %v1506 = vrot.slane %v1354, 5
        %v1507 = vsel %vm1412, %v1505, %v1506
        %v1508 = vrot.slane %v1506, 4
        %v1509 = vrot.slane %v1355, 5
        %v1510 = vsel %vm1412, %v1508, %v1509
        %v1511 = vrot.slane %v1356, 5
        %v1512 = vrot.slane %v1511, 4
        %v1513 = vrot.slane %v1357, 5
        %v1514 = vsel %vm1412, %v1512, %v1513
        %v1515 = vrot.slane %v1513, 4
        %v1516 = vrot.slane %v1358, 5
        %v1517 = vsel %vm1412, %v1515, %v1516
        %v1518 = vrot.slane %v1359, 5
        %v1519 = vrot.slane %v1518, 4
        %v1520 = vrot.slane %v1360, 5
        %v1521 = vsel %vm1412, %v1519, %v1520
        %v1522 = vrot.slane %v1520, 4
        %v1523 = vrot.slane %v1361, 5
        %v1524 = vsel %vm1412, %v1522, %v1523
        %1557 = vst [vmem:[#allocation3 + $0x8] sm:$0xf] %v1416
        %1558 = vst [vmem:[#allocation3 + $0x2c] sm:$0xf] %v1419
        %1559 = vst [vmem:[#allocation3 + $0x50] sm:$0xf] %v1423
        %1560 = vst [vmem:[#allocation3 + $0x74] sm:$0xf] %v1426
        %1561 = vst [vmem:[#allocation3 + $0x98] sm:$0xf] %v1430
        %1562 = vst [vmem:[#allocation3 + $0xbc] sm:$0xf] %v1433
        %1563 = vst [vmem:[#allocation3 + $0xe0] sm:$0xf] %v1437
        %1564 = vst [vmem:[#allocation3 + $0x104] sm:$0xf] %v1440
        %1565 = vst [vmem:[#allocation3 + $0x128] sm:$0xf] %v1444
        %1566 = vst [vmem:[#allocation3 + $0x14c] sm:$0xf] %v1447
        %1567 = vst [vmem:[#allocation3 + $0x170] sm:$0xf] %v1451
        %1568 = vst [vmem:[#allocation3 + $0x194] sm:$0xf] %v1454
        %1569 = vst [vmem:[#allocation3 + $0x1b8] sm:$0xf] %v1458
        %1570 = vst [vmem:[#allocation3 + $0x1dc] sm:$0xf] %v1461
        %1571 = vst [vmem:[#allocation3 + $0x200] sm:$0xf] %v1465
        %1572 = vst [vmem:[#allocation3 + $0x224] sm:$0xf] %v1468
        %1573 = vst [vmem:[#allocation3 + $0x248] sm:$0xf] %v1472
        %1574 = vst [vmem:[#allocation3 + $0x26c] sm:$0xf] %v1475
        %1575 = vst [vmem:[#allocation3 + $0x290] sm:$0xf] %v1479
        %1576 = vst [vmem:[#allocation3 + $0x2b4] sm:$0xf] %v1482
        %1577 = vst [vmem:[#allocation3 + $0x2d8] sm:$0xf] %v1486
        %1578 = vst [vmem:[#allocation3 + $0x2fc] sm:$0xf] %v1489
        %1579 = vst [vmem:[#allocation3 + $0x320] sm:$0xf] %v1493
        %1580 = vst [vmem:[#allocation3 + $0x344] sm:$0xf] %v1496
        %1581 = vst [vmem:[#allocation3 + $0x368] sm:$0xf] %v1500
        %1582 = vst [vmem:[#allocation3 + $0x38c] sm:$0xf] %v1503
        %1583 = vst [vmem:[#allocation3 + $0x3b0] sm:$0xf] %v1507
        %1584 = vst [vmem:[#allocation3 + $0x3d4] sm:$0xf] %v1510
        %1585 = vst [vmem:[#allocation3 + $0x3f8] sm:$0xf] %v1514
        %1586 = vst [vmem:[#allocation3 + $0x41c] sm:$0xf] %v1517
        %1587 = vst [vmem:[#allocation3 + $0x440] sm:$0xf] %v1521
        %1588 = vst [vmem:[#allocation3 + $0x464] sm:$0xf] %v1524
        %v1589 = vld [vmem:[%s633] sm:$0xf]
        %v1590 = vld [vmem:[%s633 + $0x4] sm:$0xf]
        %v1591 = vld [vmem:[%s633 + $0xc] sm:$0xf]
        %v1592 = vld [vmem:[%s633 + $0x10] sm:$0xf]
        %v1593 = vld [vmem:[%s633 + $0x18] sm:$0xf]
        %v1594 = vld [vmem:[%s633 + $0x1c] sm:$0xf]
        %v1595 = vld [vmem:[%s633 + $0x24] sm:$0xf]
        %v1596 = vld [vmem:[%s633 + $0x28] sm:$0xf]
        %v1597 = vld [vmem:[%s633 + $0x30] sm:$0xf]
        %v1598 = vld [vmem:[%s633 + $0x34] sm:$0xf]
        %v1599 = vld [vmem:[%s633 + $0x3c] sm:$0xf]
        %v1600 = vld [vmem:[%s633 + $0x40] sm:$0xf]
        %v1601 = vld [vmem:[%s633 + $0x48] sm:$0xf]
        %v1602 = vld [vmem:[%s633 + $0x4c] sm:$0xf]
        %v1603 = vld [vmem:[%s633 + $0x54] sm:$0xf]
        %v1604 = vld [vmem:[%s633 + $0x58] sm:$0xf]
        %v1605 = vld [vmem:[%s633 + $0x60] sm:$0xf]
        %v1606 = vld [vmem:[%s633 + $0x64] sm:$0xf]
        %v1607 = vld [vmem:[%s633 + $0x6c] sm:$0xf]
        %v1608 = vld [vmem:[%s633 + $0x70] sm:$0xf]
        %v1609 = vld [vmem:[%s633 + $0x78] sm:$0xf]
        %v1610 = vld [vmem:[%s633 + $0x7c] sm:$0xf]
        %v1611 = vld [vmem:[%s633 + $0x84] sm:$0xf]
        %v1612 = vld [vmem:[%s633 + $0x88] sm:$0xf]
        %v1613 = vld [vmem:[%s633 + $0x90] sm:$0xf]
        %v1614 = vld [vmem:[%s633 + $0x94] sm:$0xf]
        %v1615 = vld [vmem:[%s633 + $0x9c] sm:$0xf]
        %v1616 = vld [vmem:[%s633 + $0xa0] sm:$0xf]
        %v1617 = vld [vmem:[%s633 + $0xa8] sm:$0xf]
        %v1618 = vld [vmem:[%s633 + $0xac] sm:$0xf]
        %v1619 = vld [vmem:[%s633 + $0xb4] sm:$0xf]
        %v1620 = vld [vmem:[%s633 + $0xb8] sm:$0xf]
        %1621 = vst [vmem:[#allocation3 + $0xc] sm:$0xf] %v1589
        %1622 = vst [vmem:[#allocation3 + $0x30] sm:$0xf] %v1590
        %1623 = vst [vmem:[#allocation3 + $0x54] sm:$0xf] %v1591
        %1624 = vst [vmem:[#allocation3 + $0x78] sm:$0xf] %v1592
        %1625 = vst [vmem:[#allocation3 + $0x9c] sm:$0xf] %v1593
        %1626 = vst [vmem:[#allocation3 + $0xc0] sm:$0xf] %v1594
        %1627 = vst [vmem:[#allocation3 + $0xe4] sm:$0xf] %v1595
        %1628 = vst [vmem:[#allocation3 + $0x108] sm:$0xf] %v1596
        %1629 = vst [vmem:[#allocation3 + $0x12c] sm:$0xf] %v1597
        %1630 = vst [vmem:[#allocation3 + $0x150] sm:$0xf] %v1598
        %1631 = vst [vmem:[#allocation3 + $0x174] sm:$0xf] %v1599
        %1632 = vst [vmem:[#allocation3 + $0x198] sm:$0xf] %v1600
        %1633 = vst [vmem:[#allocation3 + $0x1bc] sm:$0xf] %v1601
        %1634 = vst [vmem:[#allocation3 + $0x1e0] sm:$0xf] %v1602
        %1635 = vst [vmem:[#allocation3 + $0x204] sm:$0xf] %v1603
        %1636 = vst [vmem:[#allocation3 + $0x228] sm:$0xf] %v1604
        %1637 = vst [vmem:[#allocation3 + $0x24c] sm:$0xf] %v1605
        %1638 = vst [vmem:[#allocation3 + $0x270] sm:$0xf] %v1606
        %1639 = vst [vmem:[#allocation3 + $0x294] sm:$0xf] %v1607
        %1640 = vst [vmem:[#allocation3 + $0x2b8] sm:$0xf] %v1608
        %1641 = vst [vmem:[#allocation3 + $0x2dc] sm:$0xf] %v1609
        %1642 = vst [vmem:[#allocation3 + $0x300] sm:$0xf] %v1610
        %1643 = vst [vmem:[#allocation3 + $0x324] sm:$0xf] %v1611
        %1644 = vst [vmem:[#allocation3 + $0x348] sm:$0xf] %v1612
        %1645 = vst [vmem:[#allocation3 + $0x36c] sm:$0xf] %v1613
        %1646 = vst [vmem:[#allocation3 + $0x390] sm:$0xf] %v1614
        %1647 = vst [vmem:[#allocation3 + $0x3b4] sm:$0xf] %v1615
        %1648 = vst [vmem:[#allocation3 + $0x3d8] sm:$0xf] %v1616
        %1649 = vst [vmem:[#allocation3 + $0x3fc] sm:$0xf] %v1617
        %1650 = vst [vmem:[#allocation3 + $0x420] sm:$0xf] %v1618
        %1651 = vst [vmem:[#allocation3 + $0x444] sm:$0xf] %v1619
        %1652 = vst [vmem:[#allocation3 + $0x468] sm:$0xf] %v1620
        %v1653 = vld [vmem:[%s633] sm:$0xf]
        %v1654 = vld [vmem:[%s633 + $0x4] sm:$0xf]
        %v1655 = vld [vmem:[%s633 + $0x8] sm:$0x1]
        %v1656 = vld [vmem:[%s633 + $0xc] sm:$0xf]
        %v1657 = vld [vmem:[%s633 + $0x10] sm:$0xf]
        %v1658 = vld [vmem:[%s633 + $0x14] sm:$0x1]
        %v1659 = vld [vmem:[%s633 + $0x18] sm:$0xf]
        %v1660 = vld [vmem:[%s633 + $0x1c] sm:$0xf]
        %v1661 = vld [vmem:[%s633 + $0x20] sm:$0x1]
        %v1662 = vld [vmem:[%s633 + $0x24] sm:$0xf]
        %v1663 = vld [vmem:[%s633 + $0x28] sm:$0xf]
        %v1664 = vld [vmem:[%s633 + $0x2c] sm:$0x1]
        %v1665 = vld [vmem:[%s633 + $0x30] sm:$0xf]
        %v1666 = vld [vmem:[%s633 + $0x34] sm:$0xf]
        %v1667 = vld [vmem:[%s633 + $0x38] sm:$0x1]
        %v1668 = vld [vmem:[%s633 + $0x3c] sm:$0xf]
        %v1669 = vld [vmem:[%s633 + $0x40] sm:$0xf]
        %v1670 = vld [vmem:[%s633 + $0x44] sm:$0x1]
        %v1671 = vld [vmem:[%s633 + $0x48] sm:$0xf]
        %v1672 = vld [vmem:[%s633 + $0x4c] sm:$0xf]
        %v1673 = vld [vmem:[%s633 + $0x50] sm:$0x1]
        %v1674 = vld [vmem:[%s633 + $0x54] sm:$0xf]
        %v1675 = vld [vmem:[%s633 + $0x58] sm:$0xf]
        %v1676 = vld [vmem:[%s633 + $0x5c] sm:$0x1]
        %v1677 = vld [vmem:[%s633 + $0x60] sm:$0xf]
        %v1678 = vld [vmem:[%s633 + $0x64] sm:$0xf]
        %v1679 = vld [vmem:[%s633 + $0x68] sm:$0x1]
        %v1680 = vld [vmem:[%s633 + $0x6c] sm:$0xf]
        %v1681 = vld [vmem:[%s633 + $0x70] sm:$0xf]
        %v1682 = vld [vmem:[%s633 + $0x74] sm:$0x1]
        %v1683 = vld [vmem:[%s633 + $0x78] sm:$0xf]
        %v1684 = vld [vmem:[%s633 + $0x7c] sm:$0xf]
        %v1685 = vld [vmem:[%s633 + $0x80] sm:$0x1]
        %v1686 = vld [vmem:[%s633 + $0x84] sm:$0xf]
        %v1687 = vld [vmem:[%s633 + $0x88] sm:$0xf]
        %v1688 = vld [vmem:[%s633 + $0x8c] sm:$0x1]
        %v1689 = vld [vmem:[%s633 + $0x90] sm:$0xf]
        %v1690 = vld [vmem:[%s633 + $0x94] sm:$0xf]
        %v1691 = vld [vmem:[%s633 + $0x98] sm:$0x1]
        %v1692 = vld [vmem:[%s633 + $0x9c] sm:$0xf]
        %v1693 = vld [vmem:[%s633 + $0xa0] sm:$0xf]
        %v1694 = vld [vmem:[%s633 + $0xa4] sm:$0x1]
        %v1695 = vld [vmem:[%s633 + $0xa8] sm:$0xf]
        %v1696 = vld [vmem:[%s633 + $0xac] sm:$0xf]
        %v1697 = vld [vmem:[%s633 + $0xb0] sm:$0x1]
        %v1698 = vld [vmem:[%s633 + $0xb4] sm:$0xf]
        %v1699 = vld [vmem:[%s633 + $0xb8] sm:$0xf]
        %v1700 = vld [vmem:[%s633 + $0xbc] sm:$0x1]
        %v1702 = vshrl.u32 %v1653, 16
        %v1704 = vrot.slane %v1702, 4
        %v1705 = vshll.u32 %v1653, 16
        %v1707 = vrot.slane %v1705, 5
        %v1708 = vor.u32 %v1704, %v1707
        %v1709 = vrot.slane %v1708, 4
        %v1711 = vshll.u32 %v1654, 16
        %v1713 = vrot.slane %v1711, 5
        %v1714 = vsel %vm865, %v1709, %v1713
        %v1715 = vshrl.u32 %v1654, 16
        %v1717 = vrot.slane %v1715, 4
        %v1718 = vor.u32 %v1717, %v1713
        %v1719 = vrot.slane %v1718, 4
        %v1721 = vshll.u32 %v1655, 16
        %v1723 = vrot.slane %v1721, 5
        %v1724 = vsel %vm865, %v1719, %v1723
        %v1726 = vshrl.u32 %v1656, 16
        %v1728 = vrot.slane %v1726, 4
        %v1729 = vshll.u32 %v1656, 16
        %v1731 = vrot.slane %v1729, 5
        %v1732 = vor.u32 %v1728, %v1731
        %v1733 = vrot.slane %v1732, 4
        %v1735 = vshll.u32 %v1657, 16
        %v1737 = vrot.slane %v1735, 5
        %v1738 = vsel %vm865, %v1733, %v1737
        %v1739 = vshrl.u32 %v1657, 16
        %v1741 = vrot.slane %v1739, 4
        %v1742 = vor.u32 %v1741, %v1737
        %v1743 = vrot.slane %v1742, 4
        %v1745 = vshll.u32 %v1658, 16
        %v1747 = vrot.slane %v1745, 5
        %v1748 = vsel %vm865, %v1743, %v1747
        %v1750 = vshrl.u32 %v1659, 16
        %v1752 = vrot.slane %v1750, 4
        %v1753 = vshll.u32 %v1659, 16
        %v1755 = vrot.slane %v1753, 5
        %v1756 = vor.u32 %v1752, %v1755
        %v1757 = vrot.slane %v1756, 4
        %v1759 = vshll.u32 %v1660, 16
        %v1761 = vrot.slane %v1759, 5
        %v1762 = vsel %vm865, %v1757, %v1761
        %v1763 = vshrl.u32 %v1660, 16
        %v1765 = vrot.slane %v1763, 4
        %v1766 = vor.u32 %v1765, %v1761
        %v1767 = vrot.slane %v1766, 4
        %v1769 = vshll.u32 %v1661, 16
        %v1771 = vrot.slane %v1769, 5
        %v1772 = vsel %vm865, %v1767, %v1771
        %v1774 = vshrl.u32 %v1662, 16
        %v1776 = vrot.slane %v1774, 4
        %v1777 = vshll.u32 %v1662, 16
        %v1779 = vrot.slane %v1777, 5
        %v1780 = vor.u32 %v1776, %v1779
        %v1781 = vrot.slane %v1780, 4
        %v1783 = vshll.u32 %v1663, 16
        %v1785 = vrot.slane %v1783, 5
        %v1786 = vsel %vm865, %v1781, %v1785
        %v1787 = vshrl.u32 %v1663, 16
        %v1789 = vrot.slane %v1787, 4
        %v1790 = vor.u32 %v1789, %v1785
        %v1791 = vrot.slane %v1790, 4
        %v1793 = vshll.u32 %v1664, 16
        %v1795 = vrot.slane %v1793, 5
        %v1796 = vsel %vm865, %v1791, %v1795
        %v1798 = vshrl.u32 %v1665, 16
        %v1800 = vrot.slane %v1798, 4
        %v1801 = vshll.u32 %v1665, 16
        %v1803 = vrot.slane %v1801, 5
        %v1804 = vor.u32 %v1800, %v1803
        %v1805 = vrot.slane %v1804, 4
        %v1807 = vshll.u32 %v1666, 16
        %v1809 = vrot.slane %v1807, 5
        %v1810 = vsel %vm865, %v1805, %v1809
        %v1811 = vshrl.u32 %v1666, 16
        %v1813 = vrot.slane %v1811, 4
        %v1814 = vor.u32 %v1813, %v1809
        %v1815 = vrot.slane %v1814, 4
        %v1817 = vshll.u32 %v1667, 16
        %v1819 = vrot.slane %v1817, 5
        %v1820 = vsel %vm865, %v1815, %v1819
        %v1822 = vshrl.u32 %v1668, 16
        %v1824 = vrot.slane %v1822, 4
        %v1825 = vshll.u32 %v1668, 16
        %v1827 = vrot.slane %v1825, 5
        %v1828 = vor.u32 %v1824, %v1827
        %v1829 = vrot.slane %v1828, 4
        %v1831 = vshll.u32 %v1669, 16
        %v1833 = vrot.slane %v1831, 5
        %v1834 = vsel %vm865, %v1829, %v1833
        %v1835 = vshrl.u32 %v1669, 16
        %v1837 = vrot.slane %v1835, 4
        %v1838 = vor.u32 %v1837, %v1833
        %v1839 = vrot.slane %v1838, 4
        %v1841 = vshll.u32 %v1670, 16
        %v1843 = vrot.slane %v1841, 5
        %v1844 = vsel %vm865, %v1839, %v1843
        %v1846 = vshrl.u32 %v1671, 16
        %v1848 = vrot.slane %v1846, 4
        %v1849 = vshll.u32 %v1671, 16
        %v1851 = vrot.slane %v1849, 5
        %v1852 = vor.u32 %v1848, %v1851
        %v1853 = vrot.slane %v1852, 4
        %v1855 = vshll.u32 %v1672, 16
        %v1857 = vrot.slane %v1855, 5
        %v1858 = vsel %vm865, %v1853, %v1857
        %v1859 = vshrl.u32 %v1672, 16
        %v1861 = vrot.slane %v1859, 4
        %v1862 = vor.u32 %v1861, %v1857
        %v1863 = vrot.slane %v1862, 4
        %v1865 = vshll.u32 %v1673, 16
        %v1867 = vrot.slane %v1865, 5
        %v1868 = vsel %vm865, %v1863, %v1867
        %v1870 = vshrl.u32 %v1674, 16
        %v1872 = vrot.slane %v1870, 4
        %v1873 = vshll.u32 %v1674, 16
        %v1875 = vrot.slane %v1873, 5
        %v1876 = vor.u32 %v1872, %v1875
        %v1877 = vrot.slane %v1876, 4
        %v1879 = vshll.u32 %v1675, 16
        %v1881 = vrot.slane %v1879, 5
        %v1882 = vsel %vm865, %v1877, %v1881
        %v1883 = vshrl.u32 %v1675, 16
        %v1885 = vrot.slane %v1883, 4
        %v1886 = vor.u32 %v1885, %v1881
        %v1887 = vrot.slane %v1886, 4
        %v1889 = vshll.u32 %v1676, 16
        %v1891 = vrot.slane %v1889, 5
        %v1892 = vsel %vm865, %v1887, %v1891
        %v1894 = vshrl.u32 %v1677, 16
        %v1896 = vrot.slane %v1894, 4
        %v1897 = vshll.u32 %v1677, 16
        %v1899 = vrot.slane %v1897, 5
        %v1900 = vor.u32 %v1896, %v1899
        %v1901 = vrot.slane %v1900, 4
        %v1903 = vshll.u32 %v1678, 16
        %v1905 = vrot.slane %v1903, 5
        %v1906 = vsel %vm865, %v1901, %v1905
        %v1907 = vshrl.u32 %v1678, 16
        %v1909 = vrot.slane %v1907, 4
        %v1910 = vor.u32 %v1909, %v1905
        %v1911 = vrot.slane %v1910, 4
        %v1913 = vshll.u32 %v1679, 16
        %v1915 = vrot.slane %v1913, 5
        %v1916 = vsel %vm865, %v1911, %v1915
        %v1918 = vshrl.u32 %v1680, 16
        %v1920 = vrot.slane %v1918, 4
        %v1921 = vshll.u32 %v1680, 16
        %v1923 = vrot.slane %v1921, 5
        %v1924 = vor.u32 %v1920, %v1923
        %v1925 = vrot.slane %v1924, 4
        %v1927 = vshll.u32 %v1681, 16
        %v1929 = vrot.slane %v1927, 5
        %v1930 = vsel %vm865, %v1925, %v1929
        %v1931 = vshrl.u32 %v1681, 16
        %v1933 = vrot.slane %v1931, 4
        %v1934 = vor.u32 %v1933, %v1929
        %v1935 = vrot.slane %v1934, 4
        %v1937 = vshll.u32 %v1682, 16
        %v1939 = vrot.slane %v1937, 5
        %v1940 = vsel %vm865, %v1935, %v1939
        %v1942 = vshrl.u32 %v1683, 16
        %v1944 = vrot.slane %v1942, 4
        %v1945 = vshll.u32 %v1683, 16
        %v1947 = vrot.slane %v1945, 5
        %v1948 = vor.u32 %v1944, %v1947
        %v1949 = vrot.slane %v1948, 4
        %v1951 = vshll.u32 %v1684, 16
        %v1953 = vrot.slane %v1951, 5
        %v1954 = vsel %vm865, %v1949, %v1953
        %v1955 = vshrl.u32 %v1684, 16
        %v1957 = vrot.slane %v1955, 4
        %v1958 = vor.u32 %v1957, %v1953
        %v1959 = vrot.slane %v1958, 4
        %v1961 = vshll.u32 %v1685, 16
        %v1963 = vrot.slane %v1961, 5
        %v1964 = vsel %vm865, %v1959, %v1963
        %v1966 = vshrl.u32 %v1686, 16
        %v1968 = vrot.slane %v1966, 4
        %v1969 = vshll.u32 %v1686, 16
        %v1971 = vrot.slane %v1969, 5
        %v1972 = vor.u32 %v1968, %v1971
        %v1973 = vrot.slane %v1972, 4
        %v1975 = vshll.u32 %v1687, 16
        %v1977 = vrot.slane %v1975, 5
        %v1978 = vsel %vm865, %v1973, %v1977
        %v1979 = vshrl.u32 %v1687, 16
        %v1981 = vrot.slane %v1979, 4
        %v1982 = vor.u32 %v1981, %v1977
        %v1983 = vrot.slane %v1982, 4
        %v1985 = vshll.u32 %v1688, 16
        %v1987 = vrot.slane %v1985, 5
        %v1988 = vsel %vm865, %v1983, %v1987
        %v1990 = vshrl.u32 %v1689, 16
        %v1992 = vrot.slane %v1990, 4
        %v1993 = vshll.u32 %v1689, 16
        %v1995 = vrot.slane %v1993, 5
        %v1996 = vor.u32 %v1992, %v1995
        %v1997 = vrot.slane %v1996, 4
        %v1999 = vshll.u32 %v1690, 16
        %v2001 = vrot.slane %v1999, 5
        %v2002 = vsel %vm865, %v1997, %v2001
        %v2003 = vshrl.u32 %v1690, 16
        %v2005 = vrot.slane %v2003, 4
        %v2006 = vor.u32 %v2005, %v2001
        %v2007 = vrot.slane %v2006, 4
        %v2009 = vshll.u32 %v1691, 16
        %v2011 = vrot.slane %v2009, 5
        %v2012 = vsel %vm865, %v2007, %v2011
        %v2014 = vshrl.u32 %v1692, 16
        %v2016 = vrot.slane %v2014, 4
        %v2017 = vshll.u32 %v1692, 16
        %v2019 = vrot.slane %v2017, 5
        %v2020 = vor.u32 %v2016, %v2019
        %v2021 = vrot.slane %v2020, 4
        %v2023 = vshll.u32 %v1693, 16
        %v2025 = vrot.slane %v2023, 5
        %v2026 = vsel %vm865, %v2021, %v2025
        %v2027 = vshrl.u32 %v1693, 16
        %v2029 = vrot.slane %v2027, 4
        %v2030 = vor.u32 %v2029, %v2025
        %v2031 = vrot.slane %v2030, 4
        %v2033 = vshll.u32 %v1694, 16
        %v2035 = vrot.slane %v2033, 5
        %v2036 = vsel %vm865, %v2031, %v2035
        %v2038 = vshrl.u32 %v1695, 16
        %v2040 = vrot.slane %v2038, 4
        %v2041 = vshll.u32 %v1695, 16
        %v2043 = vrot.slane %v2041, 5
        %v2044 = vor.u32 %v2040, %v2043
        %v2045 = vrot.slane %v2044, 4
        %v2047 = vshll.u32 %v1696, 16
        %v2049 = vrot.slane %v2047, 5
        %v2050 = vsel %vm865, %v2045, %v2049
        %v2051 = vshrl.u32 %v1696, 16
        %v2053 = vrot.slane %v2051, 4
        %v2054 = vor.u32 %v2053, %v2049
        %v2055 = vrot.slane %v2054, 4
        %v2057 = vshll.u32 %v1697, 16
        %v2059 = vrot.slane %v2057, 5
        %v2060 = vsel %vm865, %v2055, %v2059
        %v2062 = vshrl.u32 %v1698, 16
        %v2064 = vrot.slane %v2062, 4
        %v2065 = vshll.u32 %v1698, 16
        %v2067 = vrot.slane %v2065, 5
        %v2068 = vor.u32 %v2064, %v2067
        %v2069 = vrot.slane %v2068, 4
        %v2071 = vshll.u32 %v1699, 16
        %v2073 = vrot.slane %v2071, 5
        %v2074 = vsel %vm865, %v2069, %v2073
        %v2075 = vshrl.u32 %v1699, 16
        %v2077 = vrot.slane %v2075, 4
        %v2078 = vor.u32 %v2077, %v2073
        %v2079 = vrot.slane %v2078, 4
        %v2081 = vshll.u32 %v1700, 16
        %v2083 = vrot.slane %v2081, 5
        %v2084 = vsel %vm865, %v2079, %v2083
        %2117 = vst [vmem:[#allocation3 + $0x10] sm:$0xf] %v1714
        %2118 = vst [vmem:[#allocation3 + $0x34] sm:$0xf] %v1724
        %2119 = vst [vmem:[#allocation3 + $0x58] sm:$0xf] %v1738
        %2120 = vst [vmem:[#allocation3 + $0x7c] sm:$0xf] %v1748
        %2121 = vst [vmem:[#allocation3 + $0xa0] sm:$0xf] %v1762
        %2122 = vst [vmem:[#allocation3 + $0xc4] sm:$0xf] %v1772
        %2123 = vst [vmem:[#allocation3 + $0xe8] sm:$0xf] %v1786
        %2124 = vst [vmem:[#allocation3 + $0x10c] sm:$0xf] %v1796
        %2125 = vst [vmem:[#allocation3 + $0x130] sm:$0xf] %v1810
        %2126 = vst [vmem:[#allocation3 + $0x154] sm:$0xf] %v1820
        %2127 = vst [vmem:[#allocation3 + $0x178] sm:$0xf] %v1834
        %2128 = vst [vmem:[#allocation3 + $0x19c] sm:$0xf] %v1844
        %2129 = vst [vmem:[#allocation3 + $0x1c0] sm:$0xf] %v1858
        %2130 = vst [vmem:[#allocation3 + $0x1e4] sm:$0xf] %v1868
        %2131 = vst [vmem:[#allocation3 + $0x208] sm:$0xf] %v1882
        %2132 = vst [vmem:[#allocation3 + $0x22c] sm:$0xf] %v1892
        %2133 = vst [vmem:[#allocation3 + $0x250] sm:$0xf] %v1906
        %2134 = vst [vmem:[#allocation3 + $0x274] sm:$0xf] %v1916
        %2135 = vst [vmem:[#allocation3 + $0x298] sm:$0xf] %v1930
        %2136 = vst [vmem:[#allocation3 + $0x2bc] sm:$0xf] %v1940
        %2137 = vst [vmem:[#allocation3 + $0x2e0] sm:$0xf] %v1954
        %2138 = vst [vmem:[#allocation3 + $0x304] sm:$0xf] %v1964
        %2139 = vst [vmem:[#allocation3 + $0x328] sm:$0xf] %v1978
        %2140 = vst [vmem:[#allocation3 + $0x34c] sm:$0xf] %v1988
        %2141 = vst [vmem:[#allocation3 + $0x370] sm:$0xf] %v2002
        %2142 = vst [vmem:[#allocation3 + $0x394] sm:$0xf] %v2012
        %2143 = vst [vmem:[#allocation3 + $0x3b8] sm:$0xf] %v2026
        %2144 = vst [vmem:[#allocation3 + $0x3dc] sm:$0xf] %v2036
        %2145 = vst [vmem:[#allocation3 + $0x400] sm:$0xf] %v2050
        %2146 = vst [vmem:[#allocation3 + $0x424] sm:$0xf] %v2060
        %2147 = vst [vmem:[#allocation3 + $0x448] sm:$0xf] %v2074
        %2148 = vst [vmem:[#allocation3 + $0x46c] sm:$0xf] %v2084
        %v2149 = vld [vmem:[%s633] sm:$0xe]
        %v2150 = vld [vmem:[%s633 + $0x4] sm:$0xf]
        %v2151 = vld [vmem:[%s633 + $0x8] sm:$0x1]
        %v2152 = vld [vmem:[%s633 + $0xc] sm:$0xe]
        %v2153 = vld [vmem:[%s633 + $0x10] sm:$0xf]
        %v2154 = vld [vmem:[%s633 + $0x14] sm:$0x1]
        %v2155 = vld [vmem:[%s633 + $0x18] sm:$0xe]
        %v2156 = vld [vmem:[%s633 + $0x1c] sm:$0xf]
        %v2157 = vld [vmem:[%s633 + $0x20] sm:$0x1]
        %v2158 = vld [vmem:[%s633 + $0x24] sm:$0xe]
        %v2159 = vld [vmem:[%s633 + $0x28] sm:$0xf]
        %v2160 = vld [vmem:[%s633 + $0x2c] sm:$0x1]
        %v2161 = vld [vmem:[%s633 + $0x30] sm:$0xe]
        %v2162 = vld [vmem:[%s633 + $0x34] sm:$0xf]
        %v2163 = vld [vmem:[%s633 + $0x38] sm:$0x1]
        %v2164 = vld [vmem:[%s633 + $0x3c] sm:$0xe]
        %v2165 = vld [vmem:[%s633 + $0x40] sm:$0xf]
        %v2166 = vld [vmem:[%s633 + $0x44] sm:$0x1]
        %v2167 = vld [vmem:[%s633 + $0x48] sm:$0xe]
        %v2168 = vld [vmem:[%s633 + $0x4c] sm:$0xf]
        %v2169 = vld [vmem:[%s633 + $0x50] sm:$0x1]
        %v2170 = vld [vmem:[%s633 + $0x54] sm:$0xe]
        %v2171 = vld [vmem:[%s633 + $0x58] sm:$0xf]
        %v2172 = vld [vmem:[%s633 + $0x5c] sm:$0x1]
        %v2173 = vld [vmem:[%s633 + $0x60] sm:$0xe]
        %v2174 = vld [vmem:[%s633 + $0x64] sm:$0xf]
        %v2175 = vld [vmem:[%s633 + $0x68] sm:$0x1]
        %v2176 = vld [vmem:[%s633 + $0x6c] sm:$0xe]
        %v2177 = vld [vmem:[%s633 + $0x70] sm:$0xf]
        %v2178 = vld [vmem:[%s633 + $0x74] sm:$0x1]
        %v2179 = vld [vmem:[%s633 + $0x78] sm:$0xe]
        %v2180 = vld [vmem:[%s633 + $0x7c] sm:$0xf]
        %v2181 = vld [vmem:[%s633 + $0x80] sm:$0x1]
        %v2182 = vld [vmem:[%s633 + $0x84] sm:$0xe]
        %v2183 = vld [vmem:[%s633 + $0x88] sm:$0xf]
        %v2184 = vld [vmem:[%s633 + $0x8c] sm:$0x1]
        %v2185 = vld [vmem:[%s633 + $0x90] sm:$0xe]
        %v2186 = vld [vmem:[%s633 + $0x94] sm:$0xf]
        %v2187 = vld [vmem:[%s633 + $0x98] sm:$0x1]
        %v2188 = vld [vmem:[%s633 + $0x9c] sm:$0xe]
        %v2189 = vld [vmem:[%s633 + $0xa0] sm:$0xf]
        %v2190 = vld [vmem:[%s633 + $0xa4] sm:$0x1]
        %v2191 = vld [vmem:[%s633 + $0xa8] sm:$0xe]
        %v2192 = vld [vmem:[%s633 + $0xac] sm:$0xf]
        %v2193 = vld [vmem:[%s633 + $0xb0] sm:$0x1]
        %v2194 = vld [vmem:[%s633 + $0xb4] sm:$0xe]
        %v2195 = vld [vmem:[%s633 + $0xb8] sm:$0xf]
        %v2196 = vld [vmem:[%s633 + $0xbc] sm:$0x1]
        %v2245 = vrot.slane %v2149, 5
        %v2246 = vrot.slane %v2245, 4
        %v2247 = vrot.slane %v2150, 5
        %v2248 = vsel %vm1412, %v2246, %v2247
        %v2249 = vrot.slane %v2247, 4
        %v2250 = vrot.slane %v2151, 5
        %v2251 = vsel %vm1412, %v2249, %v2250
        %v2252 = vrot.slane %v2152, 5
        %v2253 = vrot.slane %v2252, 4
        %v2254 = vrot.slane %v2153, 5
        %v2255 = vsel %vm1412, %v2253, %v2254
        %v2256 = vrot.slane %v2254, 4
        %v2257 = vrot.slane %v2154, 5
        %v2258 = vsel %vm1412, %v2256, %v2257
        %v2259 = vrot.slane %v2155, 5
        %v2260 = vrot.slane %v2259, 4
        %v2261 = vrot.slane %v2156, 5
        %v2262 = vsel %vm1412, %v2260, %v2261
        %v2263 = vrot.slane %v2261, 4
        %v2264 = vrot.slane %v2157, 5
        %v2265 = vsel %vm1412, %v2263, %v2264
        %v2266 = vrot.slane %v2158, 5
        %v2267 = vrot.slane %v2266, 4
        %v2268 = vrot.slane %v2159, 5
        %v2269 = vsel %vm1412, %v2267, %v2268
        %v2270 = vrot.slane %v2268, 4
        %v2271 = vrot.slane %v2160, 5
        %v2272 = vsel %vm1412, %v2270, %v2271
        %v2273 = vrot.slane %v2161, 5
        %v2274 = vrot.slane %v2273, 4
        %v2275 = vrot.slane %v2162, 5
        %v2276 = vsel %vm1412, %v2274, %v2275
        %v2277 = vrot.slane %v2275, 4
        %v2278 = vrot.slane %v2163, 5
        %v2279 = vsel %vm1412, %v2277, %v2278
        %v2280 = vrot.slane %v2164, 5
        %v2281 = vrot.slane %v2280, 4
        %v2282 = vrot.slane %v2165, 5
        %v2283 = vsel %vm1412, %v2281, %v2282
        %v2284 = vrot.slane %v2282, 4
        %v2285 = vrot.slane %v2166, 5
        %v2286 = vsel %vm1412, %v2284, %v2285
        %v2287 = vrot.slane %v2167, 5
        %v2288 = vrot.slane %v2287, 4
        %v2289 = vrot.slane %v2168, 5
        %v2290 = vsel %vm1412, %v2288, %v2289
        %v2291 = vrot.slane %v2289, 4
        %v2292 = vrot.slane %v2169, 5
        %v2293 = vsel %vm1412, %v2291, %v2292
        %v2294 = vrot.slane %v2170, 5
        %v2295 = vrot.slane %v2294, 4
        %v2296 = vrot.slane %v2171, 5
        %v2297 = vsel %vm1412, %v2295, %v2296
        %v2298 = vrot.slane %v2296, 4
        %v2299 = vrot.slane %v2172, 5
        %v2300 = vsel %vm1412, %v2298, %v2299
        %v2301 = vrot.slane %v2173, 5
        %v2302 = vrot.slane %v2301, 4
        %v2303 = vrot.slane %v2174, 5
        %v2304 = vsel %vm1412, %v2302, %v2303
        %v2305 = vrot.slane %v2303, 4
        %v2306 = vrot.slane %v2175, 5
        %v2307 = vsel %vm1412, %v2305, %v2306
        %v2308 = vrot.slane %v2176, 5
        %v2309 = vrot.slane %v2308, 4
        %v2310 = vrot.slane %v2177, 5
        %v2311 = vsel %vm1412, %v2309, %v2310
        %v2312 = vrot.slane %v2310, 4
        %v2313 = vrot.slane %v2178, 5
        %v2314 = vsel %vm1412, %v2312, %v2313
        %v2315 = vrot.slane %v2179, 5
        %v2316 = vrot.slane %v2315, 4
        %v2317 = vrot.slane %v2180, 5
        %v2318 = vsel %vm1412, %v2316, %v2317
        %v2319 = vrot.slane %v2317, 4
        %v2320 = vrot.slane %v2181, 5
        %v2321 = vsel %vm1412, %v2319, %v2320
        %v2322 = vrot.slane %v2182, 5
        %v2323 = vrot.slane %v2322, 4
        %v2324 = vrot.slane %v2183, 5
        %v2325 = vsel %vm1412, %v2323, %v2324
        %v2326 = vrot.slane %v2324, 4
        %v2327 = vrot.slane %v2184, 5
        %v2328 = vsel %vm1412, %v2326, %v2327
        %v2329 = vrot.slane %v2185, 5
        %v2330 = vrot.slane %v2329, 4
        %v2331 = vrot.slane %v2186, 5
        %v2332 = vsel %vm1412, %v2330, %v2331
        %v2333 = vrot.slane %v2331, 4
        %v2334 = vrot.slane %v2187, 5
        %v2335 = vsel %vm1412, %v2333, %v2334
        %v2336 = vrot.slane %v2188, 5
        %v2337 = vrot.slane %v2336, 4
        %v2338 = vrot.slane %v2189, 5
        %v2339 = vsel %vm1412, %v2337, %v2338
        %v2340 = vrot.slane %v2338, 4
        %v2341 = vrot.slane %v2190, 5
        %v2342 = vsel %vm1412, %v2340, %v2341
        %v2343 = vrot.slane %v2191, 5
        %v2344 = vrot.slane %v2343, 4
        %v2345 = vrot.slane %v2192, 5
        %v2346 = vsel %vm1412, %v2344, %v2345
        %v2347 = vrot.slane %v2345, 4
        %v2348 = vrot.slane %v2193, 5
        %v2349 = vsel %vm1412, %v2347, %v2348
        %v2350 = vrot.slane %v2194, 5
        %v2351 = vrot.slane %v2350, 4
        %v2352 = vrot.slane %v2195, 5
        %v2353 = vsel %vm1412, %v2351, %v2352
        %v2354 = vrot.slane %v2352, 4
        %v2355 = vrot.slane %v2196, 5
        %v2356 = vsel %vm1412, %v2354, %v2355
        %2389 = vst [vmem:[#allocation3 + $0x14] sm:$0xf] %v2248
        %2390 = vst [vmem:[#allocation3 + $0x38] sm:$0xf] %v2251
        %2391 = vst [vmem:[#allocation3 + $0x5c] sm:$0xf] %v2255
        %2392 = vst [vmem:[#allocation3 + $0x80] sm:$0xf] %v2258
        %2393 = vst [vmem:[#allocation3 + $0xa4] sm:$0xf] %v2262
        %2394 = vst [vmem:[#allocation3 + $0xc8] sm:$0xf] %v2265
        %2395 = vst [vmem:[#allocation3 + $0xec] sm:$0xf] %v2269
        %2396 = vst [vmem:[#allocation3 + $0x110] sm:$0xf] %v2272
        %2397 = vst [vmem:[#allocation3 + $0x134] sm:$0xf] %v2276
        %2398 = vst [vmem:[#allocation3 + $0x158] sm:$0xf] %v2279
        %2399 = vst [vmem:[#allocation3 + $0x17c] sm:$0xf] %v2283
        %2400 = vst [vmem:[#allocation3 + $0x1a0] sm:$0xf] %v2286
        %2401 = vst [vmem:[#allocation3 + $0x1c4] sm:$0xf] %v2290
        %2402 = vst [vmem:[#allocation3 + $0x1e8] sm:$0xf] %v2293
        %2403 = vst [vmem:[#allocation3 + $0x20c] sm:$0xf] %v2297
        %2404 = vst [vmem:[#allocation3 + $0x230] sm:$0xf] %v2300
        %2405 = vst [vmem:[#allocation3 + $0x254] sm:$0xf] %v2304
        %2406 = vst [vmem:[#allocation3 + $0x278] sm:$0xf] %v2307
        %2407 = vst [vmem:[#allocation3 + $0x29c] sm:$0xf] %v2311
        %2408 = vst [vmem:[#allocation3 + $0x2c0] sm:$0xf] %v2314
        %2409 = vst [vmem:[#allocation3 + $0x2e4] sm:$0xf] %v2318
        %2410 = vst [vmem:[#allocation3 + $0x308] sm:$0xf] %v2321
        %2411 = vst [vmem:[#allocation3 + $0x32c] sm:$0xf] %v2325
        %2412 = vst [vmem:[#allocation3 + $0x350] sm:$0xf] %v2328
        %2413 = vst [vmem:[#allocation3 + $0x374] sm:$0xf] %v2332
        %2414 = vst [vmem:[#allocation3 + $0x398] sm:$0xf] %v2335
        %2415 = vst [vmem:[#allocation3 + $0x3bc] sm:$0xf] %v2339
        %2416 = vst [vmem:[#allocation3 + $0x3e0] sm:$0xf] %v2342
        %2417 = vst [vmem:[#allocation3 + $0x404] sm:$0xf] %v2346
        %2418 = vst [vmem:[#allocation3 + $0x428] sm:$0xf] %v2349
        %2419 = vst [vmem:[#allocation3 + $0x44c] sm:$0xf] %v2353
        %2420 = vst [vmem:[#allocation3 + $0x470] sm:$0xf] %v2356
        %s2421 = scalar_lea.vmem [#allocation2], 24
        %v2422 = vld [vmem:[%s2421] sm:$0xf]
        %v2423 = vld [vmem:[%s2421 + $0x4] sm:$0xf]
        %v2424 = vld [vmem:[%s2421 + $0xc] sm:$0xf]
        %v2425 = vld [vmem:[%s2421 + $0x10] sm:$0xf]
        %v2426 = vld [vmem:[%s2421 + $0x18] sm:$0xf]
        %v2427 = vld [vmem:[%s2421 + $0x1c] sm:$0xf]
        %v2428 = vld [vmem:[%s2421 + $0x24] sm:$0xf]
        %v2429 = vld [vmem:[%s2421 + $0x28] sm:$0xf]
        %v2430 = vld [vmem:[%s2421 + $0x30] sm:$0xf]
        %v2431 = vld [vmem:[%s2421 + $0x34] sm:$0xf]
        %v2432 = vld [vmem:[%s2421 + $0x3c] sm:$0xf]
        %v2433 = vld [vmem:[%s2421 + $0x40] sm:$0xf]
        %v2434 = vld [vmem:[%s2421 + $0x48] sm:$0xf]
        %v2435 = vld [vmem:[%s2421 + $0x4c] sm:$0xf]
        %v2436 = vld [vmem:[%s2421 + $0x54] sm:$0xf]
        %v2437 = vld [vmem:[%s2421 + $0x58] sm:$0xf]
        %v2438 = vld [vmem:[%s2421 + $0x60] sm:$0xf]
        %v2439 = vld [vmem:[%s2421 + $0x64] sm:$0xf]
        %v2440 = vld [vmem:[%s2421 + $0x6c] sm:$0xf]
        %v2441 = vld [vmem:[%s2421 + $0x70] sm:$0xf]
        %v2442 = vld [vmem:[%s2421 + $0x78] sm:$0xf]
        %v2443 = vld [vmem:[%s2421 + $0x7c] sm:$0xf]
        %v2444 = vld [vmem:[%s2421 + $0x84] sm:$0xf]
        %v2445 = vld [vmem:[%s2421 + $0x88] sm:$0xf]
        %v2446 = vld [vmem:[%s2421 + $0x90] sm:$0xf]
        %v2447 = vld [vmem:[%s2421 + $0x94] sm:$0xf]
        %v2448 = vld [vmem:[%s2421 + $0x9c] sm:$0xf]
        %v2449 = vld [vmem:[%s2421 + $0xa0] sm:$0xf]
        %v2450 = vld [vmem:[%s2421 + $0xa8] sm:$0xf]
        %v2451 = vld [vmem:[%s2421 + $0xac] sm:$0xf]
        %v2452 = vld [vmem:[%s2421 + $0xb4] sm:$0xf]
        %v2453 = vld [vmem:[%s2421 + $0xb8] sm:$0xf]
        %2454 = vst [vmem:[#allocation3 + $0x18] sm:$0xf] %v2422
        %2455 = vst [vmem:[#allocation3 + $0x3c] sm:$0xf] %v2423
        %2456 = vst [vmem:[#allocation3 + $0x60] sm:$0xf] %v2424
        %2457 = vst [vmem:[#allocation3 + $0x84] sm:$0xf] %v2425
        %2458 = vst [vmem:[#allocation3 + $0xa8] sm:$0xf] %v2426
        %2459 = vst [vmem:[#allocation3 + $0xcc] sm:$0xf] %v2427
        %2460 = vst [vmem:[#allocation3 + $0xf0] sm:$0xf] %v2428
        %2461 = vst [vmem:[#allocation3 + $0x114] sm:$0xf] %v2429
        %2462 = vst [vmem:[#allocation3 + $0x138] sm:$0xf] %v2430
        %2463 = vst [vmem:[#allocation3 + $0x15c] sm:$0xf] %v2431
        %2464 = vst [vmem:[#allocation3 + $0x180] sm:$0xf] %v2432
        %2465 = vst [vmem:[#allocation3 + $0x1a4] sm:$0xf] %v2433
        %2466 = vst [vmem:[#allocation3 + $0x1c8] sm:$0xf] %v2434
        %2467 = vst [vmem:[#allocation3 + $0x1ec] sm:$0xf] %v2435
        %2468 = vst [vmem:[#allocation3 + $0x210] sm:$0xf] %v2436
        %2469 = vst [vmem:[#allocation3 + $0x234] sm:$0xf] %v2437
        %2470 = vst [vmem:[#allocation3 + $0x258] sm:$0xf] %v2438
        %2471 = vst [vmem:[#allocation3 + $0x27c] sm:$0xf] %v2439
        %2472 = vst [vmem:[#allocation3 + $0x2a0] sm:$0xf] %v2440
        %2473 = vst [vmem:[#allocation3 + $0x2c4] sm:$0xf] %v2441
        %2474 = vst [vmem:[#allocation3 + $0x2e8] sm:$0xf] %v2442
        %2475 = vst [vmem:[#allocation3 + $0x30c] sm:$0xf] %v2443
        %2476 = vst [vmem:[#allocation3 + $0x330] sm:$0xf] %v2444
        %2477 = vst [vmem:[#allocation3 + $0x354] sm:$0xf] %v2445
        %2478 = vst [vmem:[#allocation3 + $0x378] sm:$0xf] %v2446
        %2479 = vst [vmem:[#allocation3 + $0x39c] sm:$0xf] %v2447
        %2480 = vst [vmem:[#allocation3 + $0x3c0] sm:$0xf] %v2448
        %2481 = vst [vmem:[#allocation3 + $0x3e4] sm:$0xf] %v2449
        %2482 = vst [vmem:[#allocation3 + $0x408] sm:$0xf] %v2450
        %2483 = vst [vmem:[#allocation3 + $0x42c] sm:$0xf] %v2451
        %2484 = vst [vmem:[#allocation3 + $0x450] sm:$0xf] %v2452
        %2485 = vst [vmem:[#allocation3 + $0x474] sm:$0xf] %v2453
        %v2486 = vld [vmem:[%s2421] sm:$0xf]
        %v2487 = vld [vmem:[%s2421 + $0x4] sm:$0xf]
        %v2488 = vld [vmem:[%s2421 + $0x8] sm:$0x1]
        %v2489 = vld [vmem:[%s2421 + $0xc] sm:$0xf]
        %v2490 = vld [vmem:[%s2421 + $0x10] sm:$0xf]
        %v2491 = vld [vmem:[%s2421 + $0x14] sm:$0x1]
        %v2492 = vld [vmem:[%s2421 + $0x18] sm:$0xf]
        %v2493 = vld [vmem:[%s2421 + $0x1c] sm:$0xf]
        %v2494 = vld [vmem:[%s2421 + $0x20] sm:$0x1]
        %v2495 = vld [vmem:[%s2421 + $0x24] sm:$0xf]
        %v2496 = vld [vmem:[%s2421 + $0x28] sm:$0xf]
        %v2497 = vld [vmem:[%s2421 + $0x2c] sm:$0x1]
        %v2498 = vld [vmem:[%s2421 + $0x30] sm:$0xf]
        %v2499 = vld [vmem:[%s2421 + $0x34] sm:$0xf]
        %v2500 = vld [vmem:[%s2421 + $0x38] sm:$0x1]
        %v2501 = vld [vmem:[%s2421 + $0x3c] sm:$0xf]
        %v2502 = vld [vmem:[%s2421 + $0x40] sm:$0xf]
        %v2503 = vld [vmem:[%s2421 + $0x44] sm:$0x1]
        %v2504 = vld [vmem:[%s2421 + $0x48] sm:$0xf]
        %v2505 = vld [vmem:[%s2421 + $0x4c] sm:$0xf]
        %v2506 = vld [vmem:[%s2421 + $0x50] sm:$0x1]
        %v2507 = vld [vmem:[%s2421 + $0x54] sm:$0xf]
        %v2508 = vld [vmem:[%s2421 + $0x58] sm:$0xf]
        %v2509 = vld [vmem:[%s2421 + $0x5c] sm:$0x1]
        %v2510 = vld [vmem:[%s2421 + $0x60] sm:$0xf]
        %v2511 = vld [vmem:[%s2421 + $0x64] sm:$0xf]
        %v2512 = vld [vmem:[%s2421 + $0x68] sm:$0x1]
        %v2513 = vld [vmem:[%s2421 + $0x6c] sm:$0xf]
        %v2514 = vld [vmem:[%s2421 + $0x70] sm:$0xf]
        %v2515 = vld [vmem:[%s2421 + $0x74] sm:$0x1]
        %v2516 = vld [vmem:[%s2421 + $0x78] sm:$0xf]
        %v2517 = vld [vmem:[%s2421 + $0x7c] sm:$0xf]
        %v2518 = vld [vmem:[%s2421 + $0x80] sm:$0x1]
        %v2519 = vld [vmem:[%s2421 + $0x84] sm:$0xf]
        %v2520 = vld [vmem:[%s2421 + $0x88] sm:$0xf]
        %v2521 = vld [vmem:[%s2421 + $0x8c] sm:$0x1]
        %v2522 = vld [vmem:[%s2421 + $0x90] sm:$0xf]
        %v2523 = vld [vmem:[%s2421 + $0x94] sm:$0xf]
        %v2524 = vld [vmem:[%s2421 + $0x98] sm:$0x1]
        %v2525 = vld [vmem:[%s2421 + $0x9c] sm:$0xf]
        %v2526 = vld [vmem:[%s2421 + $0xa0] sm:$0xf]
        %v2527 = vld [vmem:[%s2421 + $0xa4] sm:$0x1]
        %v2528 = vld [vmem:[%s2421 + $0xa8] sm:$0xf]
        %v2529 = vld [vmem:[%s2421 + $0xac] sm:$0xf]
        %v2530 = vld [vmem:[%s2421 + $0xb0] sm:$0x1]
        %v2531 = vld [vmem:[%s2421 + $0xb4] sm:$0xf]
        %v2532 = vld [vmem:[%s2421 + $0xb8] sm:$0xf]
        %v2533 = vld [vmem:[%s2421 + $0xbc] sm:$0x1]
        %v2535 = vshrl.u32 %v2486, 16
        %v2537 = vrot.slane %v2535, 4
        %v2538 = vshll.u32 %v2486, 16
        %v2540 = vrot.slane %v2538, 5
        %v2541 = vor.u32 %v2537, %v2540
        %v2542 = vrot.slane %v2541, 4
        %v2544 = vshll.u32 %v2487, 16
        %v2546 = vrot.slane %v2544, 5
        %v2547 = vsel %vm865, %v2542, %v2546
        %v2548 = vshrl.u32 %v2487, 16
        %v2550 = vrot.slane %v2548, 4
        %v2551 = vor.u32 %v2550, %v2546
        %v2552 = vrot.slane %v2551, 4
        %v2554 = vshll.u32 %v2488, 16
        %v2556 = vrot.slane %v2554, 5
        %v2557 = vsel %vm865, %v2552, %v2556
        %v2559 = vshrl.u32 %v2489, 16
        %v2561 = vrot.slane %v2559, 4
        %v2562 = vshll.u32 %v2489, 16
        %v2564 = vrot.slane %v2562, 5
        %v2565 = vor.u32 %v2561, %v2564
        %v2566 = vrot.slane %v2565, 4
        %v2568 = vshll.u32 %v2490, 16
        %v2570 = vrot.slane %v2568, 5
        %v2571 = vsel %vm865, %v2566, %v2570
        %v2572 = vshrl.u32 %v2490, 16
        %v2574 = vrot.slane %v2572, 4
        %v2575 = vor.u32 %v2574, %v2570
        %v2576 = vrot.slane %v2575, 4
        %v2578 = vshll.u32 %v2491, 16
        %v2580 = vrot.slane %v2578, 5
        %v2581 = vsel %vm865, %v2576, %v2580
        %v2583 = vshrl.u32 %v2492, 16
        %v2585 = vrot.slane %v2583, 4
        %v2586 = vshll.u32 %v2492, 16
        %v2588 = vrot.slane %v2586, 5
        %v2589 = vor.u32 %v2585, %v2588
        %v2590 = vrot.slane %v2589, 4
        %v2592 = vshll.u32 %v2493, 16
        %v2594 = vrot.slane %v2592, 5
        %v2595 = vsel %vm865, %v2590, %v2594
        %v2596 = vshrl.u32 %v2493, 16
        %v2598 = vrot.slane %v2596, 4
        %v2599 = vor.u32 %v2598, %v2594
        %v2600 = vrot.slane %v2599, 4
        %v2602 = vshll.u32 %v2494, 16
        %v2604 = vrot.slane %v2602, 5
        %v2605 = vsel %vm865, %v2600, %v2604
        %v2607 = vshrl.u32 %v2495, 16
        %v2609 = vrot.slane %v2607, 4
        %v2610 = vshll.u32 %v2495, 16
        %v2612 = vrot.slane %v2610, 5
        %v2613 = vor.u32 %v2609, %v2612
        %v2614 = vrot.slane %v2613, 4
        %v2616 = vshll.u32 %v2496, 16
        %v2618 = vrot.slane %v2616, 5
        %v2619 = vsel %vm865, %v2614, %v2618
        %v2620 = vshrl.u32 %v2496, 16
        %v2622 = vrot.slane %v2620, 4
        %v2623 = vor.u32 %v2622, %v2618
        %v2624 = vrot.slane %v2623, 4
        %v2626 = vshll.u32 %v2497, 16
        %v2628 = vrot.slane %v2626, 5
        %v2629 = vsel %vm865, %v2624, %v2628
        %v2631 = vshrl.u32 %v2498, 16
        %v2633 = vrot.slane %v2631, 4
        %v2634 = vshll.u32 %v2498, 16
        %v2636 = vrot.slane %v2634, 5
        %v2637 = vor.u32 %v2633, %v2636
        %v2638 = vrot.slane %v2637, 4
        %v2640 = vshll.u32 %v2499, 16
        %v2642 = vrot.slane %v2640, 5
        %v2643 = vsel %vm865, %v2638, %v2642
        %v2644 = vshrl.u32 %v2499, 16
        %v2646 = vrot.slane %v2644, 4
        %v2647 = vor.u32 %v2646, %v2642
        %v2648 = vrot.slane %v2647, 4
        %v2650 = vshll.u32 %v2500, 16
        %v2652 = vrot.slane %v2650, 5
        %v2653 = vsel %vm865, %v2648, %v2652
        %v2655 = vshrl.u32 %v2501, 16
        %v2657 = vrot.slane %v2655, 4
        %v2658 = vshll.u32 %v2501, 16
        %v2660 = vrot.slane %v2658, 5
        %v2661 = vor.u32 %v2657, %v2660
        %v2662 = vrot.slane %v2661, 4
        %v2664 = vshll.u32 %v2502, 16
        %v2666 = vrot.slane %v2664, 5
        %v2667 = vsel %vm865, %v2662, %v2666
        %v2668 = vshrl.u32 %v2502, 16
        %v2670 = vrot.slane %v2668, 4
        %v2671 = vor.u32 %v2670, %v2666
        %v2672 = vrot.slane %v2671, 4
        %v2674 = vshll.u32 %v2503, 16
        %v2676 = vrot.slane %v2674, 5
        %v2677 = vsel %vm865, %v2672, %v2676
        %v2679 = vshrl.u32 %v2504, 16
        %v2681 = vrot.slane %v2679, 4
        %v2682 = vshll.u32 %v2504, 16
        %v2684 = vrot.slane %v2682, 5
        %v2685 = vor.u32 %v2681, %v2684
        %v2686 = vrot.slane %v2685, 4
        %v2688 = vshll.u32 %v2505, 16
        %v2690 = vrot.slane %v2688, 5
        %v2691 = vsel %vm865, %v2686, %v2690
        %v2692 = vshrl.u32 %v2505, 16
        %v2694 = vrot.slane %v2692, 4
        %v2695 = vor.u32 %v2694, %v2690
        %v2696 = vrot.slane %v2695, 4
        %v2698 = vshll.u32 %v2506, 16
        %v2700 = vrot.slane %v2698, 5
        %v2701 = vsel %vm865, %v2696, %v2700
        %v2703 = vshrl.u32 %v2507, 16
        %v2705 = vrot.slane %v2703, 4
        %v2706 = vshll.u32 %v2507, 16
        %v2708 = vrot.slane %v2706, 5
        %v2709 = vor.u32 %v2705, %v2708
        %v2710 = vrot.slane %v2709, 4
        %v2712 = vshll.u32 %v2508, 16
        %v2714 = vrot.slane %v2712, 5
        %v2715 = vsel %vm865, %v2710, %v2714
        %v2716 = vshrl.u32 %v2508, 16
        %v2718 = vrot.slane %v2716, 4
        %v2719 = vor.u32 %v2718, %v2714
        %v2720 = vrot.slane %v2719, 4
        %v2722 = vshll.u32 %v2509, 16
        %v2724 = vrot.slane %v2722, 5
        %v2725 = vsel %vm865, %v2720, %v2724
        %v2727 = vshrl.u32 %v2510, 16
        %v2729 = vrot.slane %v2727, 4
        %v2730 = vshll.u32 %v2510, 16
        %v2732 = vrot.slane %v2730, 5
        %v2733 = vor.u32 %v2729, %v2732
        %v2734 = vrot.slane %v2733, 4
        %v2736 = vshll.u32 %v2511, 16
        %v2738 = vrot.slane %v2736, 5
        %v2739 = vsel %vm865, %v2734, %v2738
        %v2740 = vshrl.u32 %v2511, 16
        %v2742 = vrot.slane %v2740, 4
        %v2743 = vor.u32 %v2742, %v2738
        %v2744 = vrot.slane %v2743, 4
        %v2746 = vshll.u32 %v2512, 16
        %v2748 = vrot.slane %v2746, 5
        %v2749 = vsel %vm865, %v2744, %v2748
        %v2751 = vshrl.u32 %v2513, 16
        %v2753 = vrot.slane %v2751, 4
        %v2754 = vshll.u32 %v2513, 16
        %v2756 = vrot.slane %v2754, 5
        %v2757 = vor.u32 %v2753, %v2756
        %v2758 = vrot.slane %v2757, 4
        %v2760 = vshll.u32 %v2514, 16
        %v2762 = vrot.slane %v2760, 5
        %v2763 = vsel %vm865, %v2758, %v2762
        %v2764 = vshrl.u32 %v2514, 16
        %v2766 = vrot.slane %v2764, 4
        %v2767 = vor.u32 %v2766, %v2762
        %v2768 = vrot.slane %v2767, 4
        %v2770 = vshll.u32 %v2515, 16
        %v2772 = vrot.slane %v2770, 5
        %v2773 = vsel %vm865, %v2768, %v2772
        %v2775 = vshrl.u32 %v2516, 16
        %v2777 = vrot.slane %v2775, 4
        %v2778 = vshll.u32 %v2516, 16
        %v2780 = vrot.slane %v2778, 5
        %v2781 = vor.u32 %v2777, %v2780
        %v2782 = vrot.slane %v2781, 4
        %v2784 = vshll.u32 %v2517, 16
        %v2786 = vrot.slane %v2784, 5
        %v2787 = vsel %vm865, %v2782, %v2786
        %v2788 = vshrl.u32 %v2517, 16
        %v2790 = vrot.slane %v2788, 4
        %v2791 = vor.u32 %v2790, %v2786
        %v2792 = vrot.slane %v2791, 4
        %v2794 = vshll.u32 %v2518, 16
        %v2796 = vrot.slane %v2794, 5
        %v2797 = vsel %vm865, %v2792, %v2796
        %v2799 = vshrl.u32 %v2519, 16
        %v2801 = vrot.slane %v2799, 4
        %v2802 = vshll.u32 %v2519, 16
        %v2804 = vrot.slane %v2802, 5
        %v2805 = vor.u32 %v2801, %v2804
        %v2806 = vrot.slane %v2805, 4
        %v2808 = vshll.u32 %v2520, 16
        %v2810 = vrot.slane %v2808, 5
        %v2811 = vsel %vm865, %v2806, %v2810
        %v2812 = vshrl.u32 %v2520, 16
        %v2814 = vrot.slane %v2812, 4
        %v2815 = vor.u32 %v2814, %v2810
        %v2816 = vrot.slane %v2815, 4
        %v2818 = vshll.u32 %v2521, 16
        %v2820 = vrot.slane %v2818, 5
        %v2821 = vsel %vm865, %v2816, %v2820
        %v2823 = vshrl.u32 %v2522, 16
        %v2825 = vrot.slane %v2823, 4
        %v2826 = vshll.u32 %v2522, 16
        %v2828 = vrot.slane %v2826, 5
        %v2829 = vor.u32 %v2825, %v2828
        %v2830 = vrot.slane %v2829, 4
        %v2832 = vshll.u32 %v2523, 16
        %v2834 = vrot.slane %v2832, 5
        %v2835 = vsel %vm865, %v2830, %v2834
        %v2836 = vshrl.u32 %v2523, 16
        %v2838 = vrot.slane %v2836, 4
        %v2839 = vor.u32 %v2838, %v2834
        %v2840 = vrot.slane %v2839, 4
        %v2842 = vshll.u32 %v2524, 16
        %v2844 = vrot.slane %v2842, 5
        %v2845 = vsel %vm865, %v2840, %v2844
        %v2847 = vshrl.u32 %v2525, 16
        %v2849 = vrot.slane %v2847, 4
        %v2850 = vshll.u32 %v2525, 16
        %v2852 = vrot.slane %v2850, 5
        %v2853 = vor.u32 %v2849, %v2852
        %v2854 = vrot.slane %v2853, 4
        %v2856 = vshll.u32 %v2526, 16
        %v2858 = vrot.slane %v2856, 5
        %v2859 = vsel %vm865, %v2854, %v2858
        %v2860 = vshrl.u32 %v2526, 16
        %v2862 = vrot.slane %v2860, 4
        %v2863 = vor.u32 %v2862, %v2858
        %v2864 = vrot.slane %v2863, 4
        %v2866 = vshll.u32 %v2527, 16
        %v2868 = vrot.slane %v2866, 5
        %v2869 = vsel %vm865, %v2864, %v2868
        %v2871 = vshrl.u32 %v2528, 16
        %v2873 = vrot.slane %v2871, 4
        %v2874 = vshll.u32 %v2528, 16
        %v2876 = vrot.slane %v2874, 5
        %v2877 = vor.u32 %v2873, %v2876
        %v2878 = vrot.slane %v2877, 4
        %v2880 = vshll.u32 %v2529, 16
        %v2882 = vrot.slane %v2880, 5
        %v2883 = vsel %vm865, %v2878, %v2882
        %v2884 = vshrl.u32 %v2529, 16
        %v2886 = vrot.slane %v2884, 4
        %v2887 = vor.u32 %v2886, %v2882
        %v2888 = vrot.slane %v2887, 4
        %v2890 = vshll.u32 %v2530, 16
        %v2892 = vrot.slane %v2890, 5
        %v2893 = vsel %vm865, %v2888, %v2892
        %v2895 = vshrl.u32 %v2531, 16
        %v2897 = vrot.slane %v2895, 4
        %v2898 = vshll.u32 %v2531, 16
        %v2900 = vrot.slane %v2898, 5
        %v2901 = vor.u32 %v2897, %v2900
        %v2902 = vrot.slane %v2901, 4
        %v2904 = vshll.u32 %v2532, 16
        %v2906 = vrot.slane %v2904, 5
        %v2907 = vsel %vm865, %v2902, %v2906
        %v2908 = vshrl.u32 %v2532, 16
        %v2910 = vrot.slane %v2908, 4
        %v2911 = vor.u32 %v2910, %v2906
        %v2912 = vrot.slane %v2911, 4
        %v2914 = vshll.u32 %v2533, 16
        %v2916 = vrot.slane %v2914, 5
        %v2917 = vsel %vm865, %v2912, %v2916
        %2950 = vst [vmem:[#allocation3 + $0x1c] sm:$0xf] %v2547
        %2951 = vst [vmem:[#allocation3 + $0x40] sm:$0xf] %v2557
        %2952 = vst [vmem:[#allocation3 + $0x64] sm:$0xf] %v2571
        %2953 = vst [vmem:[#allocation3 + $0x88] sm:$0xf] %v2581
        %2954 = vst [vmem:[#allocation3 + $0xac] sm:$0xf] %v2595
        %2955 = vst [vmem:[#allocation3 + $0xd0] sm:$0xf] %v2605
        %2956 = vst [vmem:[#allocation3 + $0xf4] sm:$0xf] %v2619
        %2957 = vst [vmem:[#allocation3 + $0x118] sm:$0xf] %v2629
        %2958 = vst [vmem:[#allocation3 + $0x13c] sm:$0xf] %v2643
        %2959 = vst [vmem:[#allocation3 + $0x160] sm:$0xf] %v2653
        %2960 = vst [vmem:[#allocation3 + $0x184] sm:$0xf] %v2667
        %2961 = vst [vmem:[#allocation3 + $0x1a8] sm:$0xf] %v2677
        %2962 = vst [vmem:[#allocation3 + $0x1cc] sm:$0xf] %v2691
        %2963 = vst [vmem:[#allocation3 + $0x1f0] sm:$0xf] %v2701
        %2964 = vst [vmem:[#allocation3 + $0x214] sm:$0xf] %v2715
        %2965 = vst [vmem:[#allocation3 + $0x238] sm:$0xf] %v2725
        %2966 = vst [vmem:[#allocation3 + $0x25c] sm:$0xf] %v2739
        %2967 = vst [vmem:[#allocation3 + $0x280] sm:$0xf] %v2749
        %2968 = vst [vmem:[#allocation3 + $0x2a4] sm:$0xf] %v2763
        %2969 = vst [vmem:[#allocation3 + $0x2c8] sm:$0xf] %v2773
        %2970 = vst [vmem:[#allocation3 + $0x2ec] sm:$0xf] %v2787
        %2971 = vst [vmem:[#allocation3 + $0x310] sm:$0xf] %v2797
        %2972 = vst [vmem:[#allocation3 + $0x334] sm:$0xf] %v2811
        %2973 = vst [vmem:[#allocation3 + $0x358] sm:$0xf] %v2821
        %2974 = vst [vmem:[#allocation3 + $0x37c] sm:$0xf] %v2835
        %2975 = vst [vmem:[#allocation3 + $0x3a0] sm:$0xf] %v2845
        %2976 = vst [vmem:[#allocation3 + $0x3c4] sm:$0xf] %v2859
        %2977 = vst [vmem:[#allocation3 + $0x3e8] sm:$0xf] %v2869
        %2978 = vst [vmem:[#allocation3 + $0x40c] sm:$0xf] %v2883
        %2979 = vst [vmem:[#allocation3 + $0x430] sm:$0xf] %v2893
        %2980 = vst [vmem:[#allocation3 + $0x454] sm:$0xf] %v2907
        %2981 = vst [vmem:[#allocation3 + $0x478] sm:$0xf] %v2917
        %v2982 = vld [vmem:[%s2421] sm:$0xe]
        %v2983 = vld [vmem:[%s2421 + $0x4] sm:$0xf]
        %v2984 = vld [vmem:[%s2421 + $0x8] sm:$0x1]
        %v2985 = vld [vmem:[%s2421 + $0xc] sm:$0xe]
        %v2986 = vld [vmem:[%s2421 + $0x10] sm:$0xf]
        %v2987 = vld [vmem:[%s2421 + $0x14] sm:$0x1]
        %v2988 = vld [vmem:[%s2421 + $0x18] sm:$0xe]
        %v2989 = vld [vmem:[%s2421 + $0x1c] sm:$0xf]
        %v2990 = vld [vmem:[%s2421 + $0x20] sm:$0x1]
        %v2991 = vld [vmem:[%s2421 + $0x24] sm:$0xe]
        %v2992 = vld [vmem:[%s2421 + $0x28] sm:$0xf]
        %v2993 = vld [vmem:[%s2421 + $0x2c] sm:$0x1]
        %v2994 = vld [vmem:[%s2421 + $0x30] sm:$0xe]
        %v2995 = vld [vmem:[%s2421 + $0x34] sm:$0xf]
        %v2996 = vld [vmem:[%s2421 + $0x38] sm:$0x1]
        %v2997 = vld [vmem:[%s2421 + $0x3c] sm:$0xe]
        %v2998 = vld [vmem:[%s2421 + $0x40] sm:$0xf]
        %v2999 = vld [vmem:[%s2421 + $0x44] sm:$0x1]
        %v3000 = vld [vmem:[%s2421 + $0x48] sm:$0xe]
        %v3001 = vld [vmem:[%s2421 + $0x4c] sm:$0xf]
        %v3002 = vld [vmem:[%s2421 + $0x50] sm:$0x1]
        %v3003 = vld [vmem:[%s2421 + $0x54] sm:$0xe]
        %v3004 = vld [vmem:[%s2421 + $0x58] sm:$0xf]
        %v3005 = vld [vmem:[%s2421 + $0x5c] sm:$0x1]
        %v3006 = vld [vmem:[%s2421 + $0x60] sm:$0xe]
        %v3007 = vld [vmem:[%s2421 + $0x64] sm:$0xf]
        %v3008 = vld [vmem:[%s2421 + $0x68] sm:$0x1]
        %v3009 = vld [vmem:[%s2421 + $0x6c] sm:$0xe]
        %v3010 = vld [vmem:[%s2421 + $0x70] sm:$0xf]
        %v3011 = vld [vmem:[%s2421 + $0x74] sm:$0x1]
        %v3012 = vld [vmem:[%s2421 + $0x78] sm:$0xe]
        %v3013 = vld [vmem:[%s2421 + $0x7c] sm:$0xf]
        %v3014 = vld [vmem:[%s2421 + $0x80] sm:$0x1]
        %v3015 = vld [vmem:[%s2421 + $0x84] sm:$0xe]
        %v3016 = vld [vmem:[%s2421 + $0x88] sm:$0xf]
        %v3017 = vld [vmem:[%s2421 + $0x8c] sm:$0x1]
        %v3018 = vld [vmem:[%s2421 + $0x90] sm:$0xe]
        %v3019 = vld [vmem:[%s2421 + $0x94] sm:$0xf]
        %v3020 = vld [vmem:[%s2421 + $0x98] sm:$0x1]
        %v3021 = vld [vmem:[%s2421 + $0x9c] sm:$0xe]
        %v3022 = vld [vmem:[%s2421 + $0xa0] sm:$0xf]
        %v3023 = vld [vmem:[%s2421 + $0xa4] sm:$0x1]
        %v3024 = vld [vmem:[%s2421 + $0xa8] sm:$0xe]
        %v3025 = vld [vmem:[%s2421 + $0xac] sm:$0xf]
        %v3026 = vld [vmem:[%s2421 + $0xb0] sm:$0x1]
        %v3027 = vld [vmem:[%s2421 + $0xb4] sm:$0xe]
        %v3028 = vld [vmem:[%s2421 + $0xb8] sm:$0xf]
        %v3029 = vld [vmem:[%s2421 + $0xbc] sm:$0x1]
        %v3078 = vrot.slane %v2982, 5
        %v3079 = vrot.slane %v3078, 4
        %v3080 = vrot.slane %v2983, 5
        %v3081 = vsel %vm1412, %v3079, %v3080
        %v3082 = vrot.slane %v3080, 4
        %v3083 = vrot.slane %v2984, 5
        %v3084 = vsel %vm1412, %v3082, %v3083
        %v3085 = vrot.slane %v2985, 5
        %v3086 = vrot.slane %v3085, 4
        %v3087 = vrot.slane %v2986, 5
        %v3088 = vsel %vm1412, %v3086, %v3087
        %v3089 = vrot.slane %v3087, 4
        %v3090 = vrot.slane %v2987, 5
        %v3091 = vsel %vm1412, %v3089, %v3090
        %v3092 = vrot.slane %v2988, 5
        %v3093 = vrot.slane %v3092, 4
        %v3094 = vrot.slane %v2989, 5
        %v3095 = vsel %vm1412, %v3093, %v3094
        %v3096 = vrot.slane %v3094, 4
        %v3097 = vrot.slane %v2990, 5
        %v3098 = vsel %vm1412, %v3096, %v3097
        %v3099 = vrot.slane %v2991, 5
        %v3100 = vrot.slane %v3099, 4
        %v3101 = vrot.slane %v2992, 5
        %v3102 = vsel %vm1412, %v3100, %v3101
        %v3103 = vrot.slane %v3101, 4
        %v3104 = vrot.slane %v2993, 5
        %v3105 = vsel %vm1412, %v3103, %v3104
        %v3106 = vrot.slane %v2994, 5
        %v3107 = vrot.slane %v3106, 4
        %v3108 = vrot.slane %v2995, 5
        %v3109 = vsel %vm1412, %v3107, %v3108
        %v3110 = vrot.slane %v3108, 4
        %v3111 = vrot.slane %v2996, 5
        %v3112 = vsel %vm1412, %v3110, %v3111
        %v3113 = vrot.slane %v2997, 5
        %v3114 = vrot.slane %v3113, 4
        %v3115 = vrot.slane %v2998, 5
        %v3116 = vsel %vm1412, %v3114, %v3115
        %v3117 = vrot.slane %v3115, 4
        %v3118 = vrot.slane %v2999, 5
        %v3119 = vsel %vm1412, %v3117, %v3118
        %v3120 = vrot.slane %v3000, 5
        %v3121 = vrot.slane %v3120, 4
        %v3122 = vrot.slane %v3001, 5
        %v3123 = vsel %vm1412, %v3121, %v3122
        %v3124 = vrot.slane %v3122, 4
        %v3125 = vrot.slane %v3002, 5
        %v3126 = vsel %vm1412, %v3124, %v3125
        %v3127 = vrot.slane %v3003, 5
        %v3128 = vrot.slane %v3127, 4
        %v3129 = vrot.slane %v3004, 5
        %v3130 = vsel %vm1412, %v3128, %v3129
        %v3131 = vrot.slane %v3129, 4
        %v3132 = vrot.slane %v3005, 5
        %v3133 = vsel %vm1412, %v3131, %v3132
        %v3134 = vrot.slane %v3006, 5
        %v3135 = vrot.slane %v3134, 4
        %v3136 = vrot.slane %v3007, 5
        %v3137 = vsel %vm1412, %v3135, %v3136
        %v3138 = vrot.slane %v3136, 4
        %v3139 = vrot.slane %v3008, 5
        %v3140 = vsel %vm1412, %v3138, %v3139
        %v3141 = vrot.slane %v3009, 5
        %v3142 = vrot.slane %v3141, 4
        %v3143 = vrot.slane %v3010, 5
        %v3144 = vsel %vm1412, %v3142, %v3143
        %v3145 = vrot.slane %v3143, 4
        %v3146 = vrot.slane %v3011, 5
        %v3147 = vsel %vm1412, %v3145, %v3146
        %v3148 = vrot.slane %v3012, 5
        %v3149 = vrot.slane %v3148, 4
        %v3150 = vrot.slane %v3013, 5
        %v3151 = vsel %vm1412, %v3149, %v3150
        %v3152 = vrot.slane %v3150, 4
        %v3153 = vrot.slane %v3014, 5
        %v3154 = vsel %vm1412, %v3152, %v3153
        %v3155 = vrot.slane %v3015, 5
        %v3156 = vrot.slane %v3155, 4
        %v3157 = vrot.slane %v3016, 5
        %v3158 = vsel %vm1412, %v3156, %v3157
        %v3159 = vrot.slane %v3157, 4
        %v3160 = vrot.slane %v3017, 5
        %v3161 = vsel %vm1412, %v3159, %v3160
        %v3162 = vrot.slane %v3018, 5
        %v3163 = vrot.slane %v3162, 4
        %v3164 = vrot.slane %v3019, 5
        %v3165 = vsel %vm1412, %v3163, %v3164
        %v3166 = vrot.slane %v3164, 4
        %v3167 = vrot.slane %v3020, 5
        %v3168 = vsel %vm1412, %v3166, %v3167
        %v3169 = vrot.slane %v3021, 5
        %v3170 = vrot.slane %v3169, 4
        %v3171 = vrot.slane %v3022, 5
        %v3172 = vsel %vm1412, %v3170, %v3171
        %v3173 = vrot.slane %v3171, 4
        %v3174 = vrot.slane %v3023, 5
        %v3175 = vsel %vm1412, %v3173, %v3174
        %v3176 = vrot.slane %v3024, 5
        %v3177 = vrot.slane %v3176, 4
        %v3178 = vrot.slane %v3025, 5
        %v3179 = vsel %vm1412, %v3177, %v3178
        %v3180 = vrot.slane %v3178, 4
        %v3181 = vrot.slane %v3026, 5
        %v3182 = vsel %vm1412, %v3180, %v3181
        %v3183 = vrot.slane %v3027, 5
        %v3184 = vrot.slane %v3183, 4
        %v3185 = vrot.slane %v3028, 5
        %v3186 = vsel %vm1412, %v3184, %v3185
        %v3187 = vrot.slane %v3185, 4
        %v3188 = vrot.slane %v3029, 5
        %v3189 = vsel %vm1412, %v3187, %v3188
        %3222 = vst [vmem:[#allocation3 + $0x20] sm:$0xf] %v3081
        %3223 = vst [vmem:[#allocation3 + $0x44] sm:$0xf] %v3084
        %3224 = vst [vmem:[#allocation3 + $0x68] sm:$0xf] %v3088
        %3225 = vst [vmem:[#allocation3 + $0x8c] sm:$0xf] %v3091
        %3226 = vst [vmem:[#allocation3 + $0xb0] sm:$0xf] %v3095
        %3227 = vst [vmem:[#allocation3 + $0xd4] sm:$0xf] %v3098
        %3228 = vst [vmem:[#allocation3 + $0xf8] sm:$0xf] %v3102
        %3229 = vst [vmem:[#allocation3 + $0x11c] sm:$0xf] %v3105
        %3230 = vst [vmem:[#allocation3 + $0x140] sm:$0xf] %v3109
        %3231 = vst [vmem:[#allocation3 + $0x164] sm:$0xf] %v3112
        %3232 = vst [vmem:[#allocation3 + $0x188] sm:$0xf] %v3116
        %3233 = vst [vmem:[#allocation3 + $0x1ac] sm:$0xf] %v3119
        %3234 = vst [vmem:[#allocation3 + $0x1d0] sm:$0xf] %v3123
        %3235 = vst [vmem:[#allocation3 + $0x1f4] sm:$0xf] %v3126
        %3236 = vst [vmem:[#allocation3 + $0x218] sm:$0xf] %v3130
        %3237 = vst [vmem:[#allocation3 + $0x23c] sm:$0xf] %v3133
        %3238 = vst [vmem:[#allocation3 + $0x260] sm:$0xf] %v3137
        %3239 = vst [vmem:[#allocation3 + $0x284] sm:$0xf] %v3140
        %3240 = vst [vmem:[#allocation3 + $0x2a8] sm:$0xf] %v3144
        %3241 = vst [vmem:[#allocation3 + $0x2cc] sm:$0xf] %v3147
        %3242 = vst [vmem:[#allocation3 + $0x2f0] sm:$0xf] %v3151
        %3243 = vst [vmem:[#allocation3 + $0x314] sm:$0xf] %v3154
        %3244 = vst [vmem:[#allocation3 + $0x338] sm:$0xf] %v3158
        %3245 = vst [vmem:[#allocation3 + $0x35c] sm:$0xf] %v3161
        %3246 = vst [vmem:[#allocation3 + $0x380] sm:$0xf] %v3165
        %3247 = vst [vmem:[#allocation3 + $0x3a4] sm:$0xf] %v3168
        %3248 = vst [vmem:[#allocation3 + $0x3c8] sm:$0xf] %v3172
        %3249 = vst [vmem:[#allocation3 + $0x3ec] sm:$0xf] %v3175
        %3250 = vst [vmem:[#allocation3 + $0x410] sm:$0xf] %v3179
        %3251 = vst [vmem:[#allocation3 + $0x434] sm:$0xf] %v3182
        %3252 = vst [vmem:[#allocation3 + $0x458] sm:$0xf] %v3186
        %3253 = vst [vmem:[#allocation3 + $0x47c] sm:$0xf] %v3189
        %v3254 = vld [vmem:[#allocation3] sm:$0xff]
        %v3255 = vld [vmem:[#allocation3 + $0x8] sm:$0xff]
        %v3256 = vld [vmem:[#allocation3 + $0x10] sm:$0xff]
        %v3257 = vld [vmem:[#allocation3 + $0x18] sm:$0xff]
        %v3258 = vld [vmem:[#allocation3 + $0x20] sm:$0xf]
        %v3259 = vld [vmem:[#allocation3 + $0x24] sm:$0xff]
        %v3260 = vld [vmem:[#allocation3 + $0x2c] sm:$0xff]
        %v3261 = vld [vmem:[#allocation3 + $0x34] sm:$0xff]
        %v3262 = vld [vmem:[#allocation3 + $0x3c] sm:$0xff]
        %v3263 = vld [vmem:[#allocation3 + $0x44] sm:$0xf]
        %v3264 = vld [vmem:[#allocation3 + $0x48] sm:$0xff]
        %v3265 = vld [vmem:[#allocation3 + $0x50] sm:$0xff]
        %v3266 = vld [vmem:[#allocation3 + $0x58] sm:$0xff]
        %v3267 = vld [vmem:[#allocation3 + $0x60] sm:$0xff]
        %v3268 = vld [vmem:[#allocation3 + $0x68] sm:$0xf]
        %v3269 = vld [vmem:[#allocation3 + $0x6c] sm:$0xff]
        %v3270 = vld [vmem:[#allocation3 + $0x74] sm:$0xff]
        %v3271 = vld [vmem:[#allocation3 + $0x7c] sm:$0xff]
        %v3272 = vld [vmem:[#allocation3 + $0x84] sm:$0xff]
        %v3273 = vld [vmem:[#allocation3 + $0x8c] sm:$0xf]
        %v3274 = vld [vmem:[#allocation3 + $0x90] sm:$0xff]
        %v3275 = vld [vmem:[#allocation3 + $0x98] sm:$0xff]
        %v3276 = vld [vmem:[#allocation3 + $0xa0] sm:$0xff]
        %v3277 = vld [vmem:[#allocation3 + $0xa8] sm:$0xff]
        %v3278 = vld [vmem:[#allocation3 + $0xb0] sm:$0xf]
        %v3279 = vld [vmem:[#allocation3 + $0xb4] sm:$0xff]
        %v3280 = vld [vmem:[#allocation3 + $0xbc] sm:$0xff]
        %v3281 = vld [vmem:[#allocation3 + $0xc4] sm:$0xff]
        %v3282 = vld [vmem:[#allocation3 + $0xcc] sm:$0xff]
        %v3283 = vld [vmem:[#allocation3 + $0xd4] sm:$0xf]
        %v3284 = vld [vmem:[#allocation3 + $0xd8] sm:$0xff]
        %v3285 = vld [vmem:[#allocation3 + $0xe0] sm:$0xff]
        %v3286 = vld [vmem:[#allocation3 + $0xe8] sm:$0xff]
        %v3287 = vld [vmem:[#allocation3 + $0xf0] sm:$0xff]
        %v3288 = vld [vmem:[#allocation3 + $0xf8] sm:$0xf]
        %v3289 = vld [vmem:[#allocation3 + $0xfc] sm:$0xff]
        %v3290 = vld [vmem:[#allocation3 + $0x104] sm:$0xff]
        %v3291 = vld [vmem:[#allocation3 + $0x10c] sm:$0xff]
        %v3292 = vld [vmem:[#allocation3 + $0x114] sm:$0xff]
        %v3293 = vld [vmem:[#allocation3 + $0x11c] sm:$0xf]
        %v3294 = vld [vmem:[#allocation3 + $0x120] sm:$0xff]
        %v3295 = vld [vmem:[#allocation3 + $0x128] sm:$0xff]
        %v3296 = vld [vmem:[#allocation3 + $0x130] sm:$0xff]
        %v3297 = vld [vmem:[#allocation3 + $0x138] sm:$0xff]
        %v3298 = vld [vmem:[#allocation3 + $0x140] sm:$0xf]
        %v3299 = vld [vmem:[#allocation3 + $0x144] sm:$0xff]
        %v3300 = vld [vmem:[#allocation3 + $0x14c] sm:$0xff]
        %v3301 = vld [vmem:[#allocation3 + $0x154] sm:$0xff]
        %v3302 = vld [vmem:[#allocation3 + $0x15c] sm:$0xff]
        %v3303 = vld [vmem:[#allocation3 + $0x164] sm:$0xf]
        %v3304 = vld [vmem:[#allocation3 + $0x168] sm:$0xff]
        %v3305 = vld [vmem:[#allocation3 + $0x170] sm:$0xff]
        %v3306 = vld [vmem:[#allocation3 + $0x178] sm:$0xff]
        %v3307 = vld [vmem:[#allocation3 + $0x180] sm:$0xff]
        %v3308 = vld [vmem:[#allocation3 + $0x188] sm:$0xf]
        %v3309 = vld [vmem:[#allocation3 + $0x18c] sm:$0xff]
        %v3310 = vld [vmem:[#allocation3 + $0x194] sm:$0xff]
        %v3311 = vld [vmem:[#allocation3 + $0x19c] sm:$0xff]
        %v3312 = vld [vmem:[#allocation3 + $0x1a4] sm:$0xff]
        %v3313 = vld [vmem:[#allocation3 + $0x1ac] sm:$0xf]
        %v3314 = vld [vmem:[#allocation3 + $0x1b0] sm:$0xff]
        %v3315 = vld [vmem:[#allocation3 + $0x1b8] sm:$0xff]
        %v3316 = vld [vmem:[#allocation3 + $0x1c0] sm:$0xff]
        %v3317 = vld [vmem:[#allocation3 + $0x1c8] sm:$0xff]
        %v3318 = vld [vmem:[#allocation3 + $0x1d0] sm:$0xf]
        %v3319 = vld [vmem:[#allocation3 + $0x1d4] sm:$0xff]
        %v3320 = vld [vmem:[#allocation3 + $0x1dc] sm:$0xff]
        %v3321 = vld [vmem:[#allocation3 + $0x1e4] sm:$0xff]
        %v3322 = vld [vmem:[#allocation3 + $0x1ec] sm:$0xff]
        %v3323 = vld [vmem:[#allocation3 + $0x1f4] sm:$0xf]
        %v3324 = vld [vmem:[#allocation3 + $0x1f8] sm:$0xff]
        %v3325 = vld [vmem:[#allocation3 + $0x200] sm:$0xff]
        %v3326 = vld [vmem:[#allocation3 + $0x208] sm:$0xff]
        %v3327 = vld [vmem:[#allocation3 + $0x210] sm:$0xff]
        %v3328 = vld [vmem:[#allocation3 + $0x218] sm:$0xf]
        %v3329 = vld [vmem:[#allocation3 + $0x21c] sm:$0xff]
        %v3330 = vld [vmem:[#allocation3 + $0x224] sm:$0xff]
        %v3331 = vld [vmem:[#allocation3 + $0x22c] sm:$0xff]
        %v3332 = vld [vmem:[#allocation3 + $0x234] sm:$0xff]
        %v3333 = vld [vmem:[#allocation3 + $0x23c] sm:$0xf]
        %v3334 = vld [vmem:[#allocation3 + $0x240] sm:$0xff]
        %v3335 = vld [vmem:[#allocation3 + $0x248] sm:$0xff]
        %v3336 = vld [vmem:[#allocation3 + $0x250] sm:$0xff]
        %v3337 = vld [vmem:[#allocation3 + $0x258] sm:$0xff]
        %v3338 = vld [vmem:[#allocation3 + $0x260] sm:$0xf]
        %v3339 = vld [vmem:[#allocation3 + $0x264] sm:$0xff]
        %v3340 = vld [vmem:[#allocation3 + $0x26c] sm:$0xff]
        %v3341 = vld [vmem:[#allocation3 + $0x274] sm:$0xff]
        %v3342 = vld [vmem:[#allocation3 + $0x27c] sm:$0xff]
        %v3343 = vld [vmem:[#allocation3 + $0x284] sm:$0xf]
        %v3344 = vld [vmem:[#allocation3 + $0x288] sm:$0xff]
        %v3345 = vld [vmem:[#allocation3 + $0x290] sm:$0xff]
        %v3346 = vld [vmem:[#allocation3 + $0x298] sm:$0xff]
        %v3347 = vld [vmem:[#allocation3 + $0x2a0] sm:$0xff]
        %v3348 = vld [vmem:[#allocation3 + $0x2a8] sm:$0xf]
        %v3349 = vld [vmem:[#allocation3 + $0x2ac] sm:$0xff]
        %v3350 = vld [vmem:[#allocation3 + $0x2b4] sm:$0xff]
        %v3351 = vld [vmem:[#allocation3 + $0x2bc] sm:$0xff]
        %v3352 = vld [vmem:[#allocation3 + $0x2c4] sm:$0xff]
        %v3353 = vld [vmem:[#allocation3 + $0x2cc] sm:$0xf]
        %v3354 = vld [vmem:[#allocation3 + $0x2d0] sm:$0xff]
        %v3355 = vld [vmem:[#allocation3 + $0x2d8] sm:$0xff]
        %v3356 = vld [vmem:[#allocation3 + $0x2e0] sm:$0xff]
        %v3357 = vld [vmem:[#allocation3 + $0x2e8] sm:$0xff]
        %v3358 = vld [vmem:[#allocation3 + $0x2f0] sm:$0xf]
        %v3359 = vld [vmem:[#allocation3 + $0x2f4] sm:$0xff]
        %v3360 = vld [vmem:[#allocation3 + $0x2fc] sm:$0xff]
        %v3361 = vld [vmem:[#allocation3 + $0x304] sm:$0xff]
        %v3362 = vld [vmem:[#allocation3 + $0x30c] sm:$0xff]
        %v3363 = vld [vmem:[#allocation3 + $0x314] sm:$0xf]
        %v3364 = vld [vmem:[#allocation3 + $0x318] sm:$0xff]
        %v3365 = vld [vmem:[#allocation3 + $0x320] sm:$0xff]
        %v3366 = vld [vmem:[#allocation3 + $0x328] sm:$0xff]
        %v3367 = vld [vmem:[#allocation3 + $0x330] sm:$0xff]
        %v3368 = vld [vmem:[#allocation3 + $0x338] sm:$0xf]
        %v3369 = vld [vmem:[#allocation3 + $0x33c] sm:$0xff]
        %v3370 = vld [vmem:[#allocation3 + $0x344] sm:$0xff]
        %v3371 = vld [vmem:[#allocation3 + $0x34c] sm:$0xff]
        %v3372 = vld [vmem:[#allocation3 + $0x354] sm:$0xff]
        %v3373 = vld [vmem:[#allocation3 + $0x35c] sm:$0xf]
        %v3374 = vld [vmem:[#allocation3 + $0x360] sm:$0xff]
        %v3375 = vld [vmem:[#allocation3 + $0x368] sm:$0xff]
        %v3376 = vld [vmem:[#allocation3 + $0x370] sm:$0xff]
        %v3377 = vld [vmem:[#allocation3 + $0x378] sm:$0xff]
        %v3378 = vld [vmem:[#allocation3 + $0x380] sm:$0xf]
        %v3379 = vld [vmem:[#allocation3 + $0x384] sm:$0xff]
        %v3380 = vld [vmem:[#allocation3 + $0x38c] sm:$0xff]
        %v3381 = vld [vmem:[#allocation3 + $0x394] sm:$0xff]
        %v3382 = vld [vmem:[#allocation3 + $0x39c] sm:$0xff]
        %v3383 = vld [vmem:[#allocation3 + $0x3a4] sm:$0xf]
        %v3384 = vld [vmem:[#allocation3 + $0x3a8] sm:$0xff]
        %v3385 = vld [vmem:[#allocation3 + $0x3b0] sm:$0xff]
        %v3386 = vld [vmem:[#allocation3 + $0x3b8] sm:$0xff]
        %v3387 = vld [vmem:[#allocation3 + $0x3c0] sm:$0xff]
        %v3388 = vld [vmem:[#allocation3 + $0x3c8] sm:$0xf]
        %v3389 = vld [vmem:[#allocation3 + $0x3cc] sm:$0xff]
        %v3390 = vld [vmem:[#allocation3 + $0x3d4] sm:$0xff]
        %v3391 = vld [vmem:[#allocation3 + $0x3dc] sm:$0xff]
        %v3392 = vld [vmem:[#allocation3 + $0x3e4] sm:$0xff]
        %v3393 = vld [vmem:[#allocation3 + $0x3ec] sm:$0xf]
        %v3394 = vld [vmem:[#allocation3 + $0x3f0] sm:$0xff]
        %v3395 = vld [vmem:[#allocation3 + $0x3f8] sm:$0xff]
        %v3396 = vld [vmem:[#allocation3 + $0x400] sm:$0xff]
        %v3397 = vld [vmem:[#allocation3 + $0x408] sm:$0xff]
        %v3398 = vld [vmem:[#allocation3 + $0x410] sm:$0xf]
        %v3399 = vld [vmem:[#allocation3 + $0x414] sm:$0xff]
        %v3400 = vld [vmem:[#allocation3 + $0x41c] sm:$0xff]
        %v3401 = vld [vmem:[#allocation3 + $0x424] sm:$0xff]
        %v3402 = vld [vmem:[#allocation3 + $0x42c] sm:$0xff]
        %v3403 = vld [vmem:[#allocation3 + $0x434] sm:$0xf]
        %v3404 = vld [vmem:[#allocation3 + $0x438] sm:$0xff]
        %v3405 = vld [vmem:[#allocation3 + $0x440] sm:$0xff]
        %v3406 = vld [vmem:[#allocation3 + $0x448] sm:$0xff]
        %v3407 = vld [vmem:[#allocation3 + $0x450] sm:$0xff]
        %v3408 = vld [vmem:[#allocation3 + $0x458] sm:$0xf]
        %v3409 = vld [vmem:[#allocation3 + $0x45c] sm:$0xff]
        %v3410 = vld [vmem:[#allocation3 + $0x464] sm:$0xff]
        %v3411 = vld [vmem:[#allocation3 + $0x46c] sm:$0xff]
        %v3412 = vld [vmem:[#allocation3 + $0x474] sm:$0xff]
        %v3413 = vld [vmem:[#allocation3 + $0x47c] sm:$0xf]
        %v3414 = vld [vmem:[%s1] sm:$0xf]
        %v3415 = vld [vmem:[%s1 + $0x4] sm:$0xf]
        %v3416 = vld [vmem:[%s1 + $0x8] sm:$0xf]
        %v3417 = vld [vmem:[%s1 + $0xc] sm:$0xf]
        %v3418 = vld [vmem:[%s1 + $0x10] sm:$0xf]
        %v3419 = vld [vmem:[%s1 + $0x14] sm:$0xf]
        %v3420 = vld [vmem:[%s1 + $0x18] sm:$0xf]
        %v3421 = vld [vmem:[%s1 + $0x1c] sm:$0xf]
        %v3422 = vld [vmem:[%s1 + $0x20] sm:$0xf]
        %v3423 = vld [vmem:[%s1 + $0x24] sm:$0xf]
        %v3424 = vld [vmem:[%s1 + $0x28] sm:$0xf]
        %v3425 = vld [vmem:[%s1 + $0x2c] sm:$0xf]
        %v3426 = vld [vmem:[%s1 + $0x30] sm:$0xf]
        %v3427 = vld [vmem:[%s1 + $0x34] sm:$0xf]
        %v3428 = vld [vmem:[%s1 + $0x38] sm:$0xf]
        %v3429 = vld [vmem:[%s1 + $0x3c] sm:$0xf]
        %v3430 = vld [vmem:[%s1 + $0x40] sm:$0xf]
        %v3431 = vld [vmem:[%s1 + $0x44] sm:$0xf]
        %v3432 = vld [vmem:[%s1 + $0x48] sm:$0xf]
        %v3433 = vld [vmem:[%s1 + $0x4c] sm:$0xf]
        %v3434 = vld [vmem:[%s1 + $0x50] sm:$0xf]
        %v3435 = vld [vmem:[%s1 + $0x54] sm:$0xf]
        %v3436 = vld [vmem:[%s1 + $0x58] sm:$0xf]
        %v3437 = vld [vmem:[%s1 + $0x5c] sm:$0xf]
        %v3438 = vld [vmem:[%s1 + $0x60] sm:$0xf]
        %v3439 = vld [vmem:[%s1 + $0x64] sm:$0xf]
        %v3440 = vld [vmem:[%s1 + $0x68] sm:$0xf]
        %v3441 = vld [vmem:[%s1 + $0x6c] sm:$0xf]
        %v3442 = vld [vmem:[%s1 + $0x70] sm:$0xf]
        %v3443 = vld [vmem:[%s1 + $0x74] sm:$0xf]
        %v3444 = vld [vmem:[%s1 + $0x78] sm:$0xf]
        %v3445 = vld [vmem:[%s1 + $0x7c] sm:$0xf]
        %v3446 = vld [vmem:[%s1 + $0x80] sm:$0xf]
        %v3447 = vld [vmem:[%s1 + $0x84] sm:$0xf]
        %v3448 = vld [vmem:[%s1 + $0x88] sm:$0xf]
        %v3449 = vld [vmem:[%s1 + $0x8c] sm:$0xf]
        %v3450 = vld [vmem:[%s1 + $0x90] sm:$0xf]
        %v3451 = vld [vmem:[%s1 + $0x94] sm:$0xf]
        %v3452 = vld [vmem:[%s1 + $0x98] sm:$0xf]
        %v3453 = vld [vmem:[%s1 + $0x9c] sm:$0xf]
        %v3454 = vld [vmem:[%s1 + $0xa0] sm:$0xf]
        %v3455 = vld [vmem:[%s1 + $0xa4] sm:$0xf]
        %v3456 = vld [vmem:[%s1 + $0xa8] sm:$0xf]
        %v3457 = vld [vmem:[%s1 + $0xac] sm:$0xf]
        %v3458 = vld [vmem:[%s1 + $0xb0] sm:$0xf]
        %v3459 = vld [vmem:[%s1 + $0xb4] sm:$0xf]
        %v3460 = vld [vmem:[%s1 + $0xb8] sm:$0xf]
        %v3461 = vld [vmem:[%s1 + $0xbc] sm:$0xf]
        %v3462 = vld [vmem:[%s1 + $0xc0] sm:$0xf]
        %v3463 = vld [vmem:[%s1 + $0xc4] sm:$0xf]
        %v3464 = vld [vmem:[%s1 + $0xc8] sm:$0xf]
        %v3465 = vld [vmem:[%s1 + $0xcc] sm:$0xf]
        %v3466 = vld [vmem:[%s1 + $0xd0] sm:$0xf]
        %v3467 = vld [vmem:[%s1 + $0xd4] sm:$0xf]
        %v3468 = vld [vmem:[%s1 + $0xd8] sm:$0xf]
        %v3469 = vld [vmem:[%s1 + $0xdc] sm:$0xf]
        %v3470 = vld [vmem:[%s1 + $0xe0] sm:$0xf]
        %v3471 = vld [vmem:[%s1 + $0xe4] sm:$0xf]
        %v3472 = vld [vmem:[%s1 + $0xe8] sm:$0xf]
        %v3473 = vld [vmem:[%s1 + $0xec] sm:$0xf]
        %v3474 = vld [vmem:[%s1 + $0xf0] sm:$0xf]
        %v3475 = vld [vmem:[%s1 + $0xf4] sm:$0xf]
        %v3476 = vld [vmem:[%s1 + $0xf8] sm:$0xf]
        %v3477 = vld [vmem:[%s1 + $0xfc] sm:$0xf]
        %v3478 = vld [vmem:[%s1 + $0x100] sm:$0xf]
        %v3479 = vld [vmem:[%s1 + $0x104] sm:$0xf]
        %v3480 = vld [vmem:[%s1 + $0x108] sm:$0xf]
        %v3481 = vld [vmem:[%s1 + $0x10c] sm:$0xf]
        %v3482 = vld [vmem:[%s1 + $0x110] sm:$0xf]
        %v3483 = vld [vmem:[%s1 + $0x114] sm:$0xf]
        %v3484 = vld [vmem:[%s1 + $0x118] sm:$0xf]
        %v3485 = vld [vmem:[%s1 + $0x11c] sm:$0xf]
        %v3486 = vld [vmem:[%s1 + $0x120] sm:$0xf]
        %v3487 = vld [vmem:[%s1 + $0x124] sm:$0xf]
        %v3488 = vld [vmem:[%s1 + $0x128] sm:$0xf]
        %v3489 = vld [vmem:[%s1 + $0x12c] sm:$0xf]
        %v3490 = vld [vmem:[%s1 + $0x130] sm:$0xf]
        %v3491 = vld [vmem:[%s1 + $0x134] sm:$0xf]
        %v3492 = vld [vmem:[%s1 + $0x138] sm:$0xf]
        %v3493 = vld [vmem:[%s1 + $0x13c] sm:$0xf]
        %v3494 = vld [vmem:[%s1 + $0x140] sm:$0xf]
        %v3495 = vld [vmem:[%s1 + $0x144] sm:$0xf]
        %v3496 = vld [vmem:[%s1 + $0x148] sm:$0xf]
        %v3497 = vld [vmem:[%s1 + $0x14c] sm:$0xf]
        %v3498 = vld [vmem:[%s1 + $0x150] sm:$0xf]
        %v3499 = vld [vmem:[%s1 + $0x154] sm:$0xf]
        %v3500 = vld [vmem:[%s1 + $0x158] sm:$0xf]
        %v3501 = vld [vmem:[%s1 + $0x15c] sm:$0xf]
        %v3502 = vld [vmem:[%s1 + $0x160] sm:$0xf]
        %v3503 = vld [vmem:[%s1 + $0x164] sm:$0xf]
        %v3504 = vld [vmem:[%s1 + $0x168] sm:$0xf]
        %v3505 = vld [vmem:[%s1 + $0x16c] sm:$0xf]
        %v3506 = vld [vmem:[%s1 + $0x170] sm:$0xf]
        %v3507 = vld [vmem:[%s1 + $0x174] sm:$0xf]
        %v3508 = vld [vmem:[%s1 + $0x178] sm:$0xf]
        %v3509 = vld [vmem:[%s1 + $0x17c] sm:$0xf]
        %v3510 = vld [vmem:[%s1 + $0x180] sm:$0xf]
        %v3511 = vld [vmem:[%s1 + $0x184] sm:$0xf]
        %v3512 = vld [vmem:[%s1 + $0x188] sm:$0xf]
        %v3513 = vld [vmem:[%s1 + $0x18c] sm:$0xf]
        %v3514 = vld [vmem:[%s1 + $0x190] sm:$0xf]
        %v3515 = vld [vmem:[%s1 + $0x194] sm:$0xf]
        %v3516 = vld [vmem:[%s1 + $0x198] sm:$0xf]
        %v3517 = vld [vmem:[%s1 + $0x19c] sm:$0xf]
        %v3518 = vld [vmem:[%s1 + $0x1a0] sm:$0xf]
        %v3519 = vld [vmem:[%s1 + $0x1a4] sm:$0xf]
        %v3520 = vld [vmem:[%s1 + $0x1a8] sm:$0xf]
        %v3521 = vld [vmem:[%s1 + $0x1ac] sm:$0xf]
        %v3522 = vld [vmem:[%s1 + $0x1b0] sm:$0xf]
        %v3523 = vld [vmem:[%s1 + $0x1b4] sm:$0xf]
        %v3524 = vld [vmem:[%s1 + $0x1b8] sm:$0xf]
        %v3525 = vld [vmem:[%s1 + $0x1bc] sm:$0xf]
        %v3526 = vld [vmem:[%s1 + $0x1c0] sm:$0xf]
        %v3527 = vld [vmem:[%s1 + $0x1c4] sm:$0xf]
        %v3528 = vld [vmem:[%s1 + $0x1c8] sm:$0xf]
        %v3529 = vld [vmem:[%s1 + $0x1cc] sm:$0xf]
        %v3530 = vld [vmem:[%s1 + $0x1d0] sm:$0xf]
        %v3531 = vld [vmem:[%s1 + $0x1d4] sm:$0xf]
        %v3532 = vld [vmem:[%s1 + $0x1d8] sm:$0xf]
        %v3533 = vld [vmem:[%s1 + $0x1dc] sm:$0xf]
        %v3534 = vld [vmem:[%s1 + $0x1e0] sm:$0xf]
        %v3535 = vld [vmem:[%s1 + $0x1e4] sm:$0xf]
        %v3536 = vld [vmem:[%s1 + $0x1e8] sm:$0xf]
        %v3537 = vld [vmem:[%s1 + $0x1ec] sm:$0xf]
        %v3538 = vld [vmem:[%s1 + $0x1f0] sm:$0xf]
        %v3539 = vld [vmem:[%s1 + $0x1f4] sm:$0xf]
        %v3540 = vld [vmem:[%s1 + $0x1f8] sm:$0xf]
        %v3541 = vld [vmem:[%s1 + $0x1fc] sm:$0xf]
        %v3542 = vld [vmem:[%s1 + $0x200] sm:$0xf]
        %v3543 = vld [vmem:[%s1 + $0x204] sm:$0xf]
        %v3544 = vld [vmem:[%s1 + $0x208] sm:$0xf]
        %v3545 = vld [vmem:[%s1 + $0x20c] sm:$0xf]
        %v3546 = vld [vmem:[%s1 + $0x210] sm:$0xf]
        %v3547 = vld [vmem:[%s1 + $0x214] sm:$0xf]
        %v3548 = vld [vmem:[%s1 + $0x218] sm:$0xf]
        %v3549 = vld [vmem:[%s1 + $0x21c] sm:$0xf]
        %v3550 = vld [vmem:[%s1 + $0x220] sm:$0xf]
        %v3551 = vld [vmem:[%s1 + $0x224] sm:$0xf]
        %v3552 = vld [vmem:[%s1 + $0x228] sm:$0xf]
        %v3553 = vld [vmem:[%s1 + $0x22c] sm:$0xf]
        %v3554 = vld [vmem:[%s1 + $0x230] sm:$0xf]
        %v3555 = vld [vmem:[%s1 + $0x234] sm:$0xf]
        %v3556 = vld [vmem:[%s1 + $0x238] sm:$0xf]
        %v3557 = vld [vmem:[%s1 + $0x23c] sm:$0xf]
        %v3718 = vunpack.c.l.b16 %v3254
        %v3719 = vunpack.c.h.b16 %v3254
        %v3720 = vunpack.c.l.b16 %v3255
        %v3721 = vunpack.c.h.b16 %v3255
        %v3722 = vunpack.c.l.b16 %v3256
        %v3723 = vunpack.c.h.b16 %v3256
        %v3724 = vunpack.c.l.b16 %v3257
        %v3725 = vunpack.c.h.b16 %v3257
        %v3726 = vunpack.c.l.b16 %v3258
        %v3727 = vunpack.c.l.b16 %v3259
        %v3728 = vunpack.c.h.b16 %v3259
        %v3729 = vunpack.c.l.b16 %v3260
        %v3730 = vunpack.c.h.b16 %v3260
        %v3731 = vunpack.c.l.b16 %v3261
        %v3732 = vunpack.c.h.b16 %v3261
        %v3733 = vunpack.c.l.b16 %v3262
        %v3734 = vunpack.c.h.b16 %v3262
        %v3735 = vunpack.c.l.b16 %v3263
        %v3736 = vunpack.c.l.b16 %v3264
        %v3737 = vunpack.c.h.b16 %v3264
        %v3738 = vunpack.c.l.b16 %v3265
        %v3739 = vunpack.c.h.b16 %v3265
        %v3740 = vunpack.c.l.b16 %v3266
        %v3741 = vunpack.c.h.b16 %v3266
        %v3742 = vunpack.c.l.b16 %v3267
        %v3743 = vunpack.c.h.b16 %v3267
        %v3744 = vunpack.c.l.b16 %v3268
        %v3745 = vunpack.c.l.b16 %v3269
        %v3746 = vunpack.c.h.b16 %v3269
        %v3747 = vunpack.c.l.b16 %v3270
        %v3748 = vunpack.c.h.b16 %v3270
        %v3749 = vunpack.c.l.b16 %v3271
        %v3750 = vunpack.c.h.b16 %v3271
        %v3751 = vunpack.c.l.b16 %v3272
        %v3752 = vunpack.c.h.b16 %v3272
        %v3753 = vunpack.c.l.b16 %v3273
        %v3754 = vunpack.c.l.b16 %v3274
        %v3755 = vunpack.c.h.b16 %v3274
        %v3756 = vunpack.c.l.b16 %v3275
        %v3757 = vunpack.c.h.b16 %v3275
        %v3758 = vunpack.c.l.b16 %v3276
        %v3759 = vunpack.c.h.b16 %v3276
        %v3760 = vunpack.c.l.b16 %v3277
        %v3761 = vunpack.c.h.b16 %v3277
        %v3762 = vunpack.c.l.b16 %v3278
        %v3763 = vunpack.c.l.b16 %v3279
        %v3764 = vunpack.c.h.b16 %v3279
        %v3765 = vunpack.c.l.b16 %v3280
        %v3766 = vunpack.c.h.b16 %v3280
        %v3767 = vunpack.c.l.b16 %v3281
        %v3768 = vunpack.c.h.b16 %v3281
        %v3769 = vunpack.c.l.b16 %v3282
        %v3770 = vunpack.c.h.b16 %v3282
        %v3771 = vunpack.c.l.b16 %v3283
        %v3772 = vunpack.c.l.b16 %v3284
        %v3773 = vunpack.c.h.b16 %v3284
        %v3774 = vunpack.c.l.b16 %v3285
        %v3775 = vunpack.c.h.b16 %v3285
        %v3776 = vunpack.c.l.b16 %v3286
        %v3777 = vunpack.c.h.b16 %v3286
        %v3778 = vunpack.c.l.b16 %v3287
        %v3779 = vunpack.c.h.b16 %v3287
        %v3780 = vunpack.c.l.b16 %v3288
        %v3781 = vunpack.c.l.b16 %v3289
        %v3782 = vunpack.c.h.b16 %v3289
        %v3783 = vunpack.c.l.b16 %v3290
        %v3784 = vunpack.c.h.b16 %v3290
        %v3785 = vunpack.c.l.b16 %v3291
        %v3786 = vunpack.c.h.b16 %v3291
        %v3787 = vunpack.c.l.b16 %v3292
        %v3788 = vunpack.c.h.b16 %v3292
        %v3789 = vunpack.c.l.b16 %v3293
        %v3790 = vunpack.c.l.b16 %v3294
        %v3791 = vunpack.c.h.b16 %v3294
        %v3792 = vunpack.c.l.b16 %v3295
        %v3793 = vunpack.c.h.b16 %v3295
        %v3794 = vunpack.c.l.b16 %v3296
        %v3795 = vunpack.c.h.b16 %v3296
        %v3796 = vunpack.c.l.b16 %v3297
        %v3797 = vunpack.c.h.b16 %v3297
        %v3798 = vunpack.c.l.b16 %v3298
        %v3799 = vunpack.c.l.b16 %v3299
        %v3800 = vunpack.c.h.b16 %v3299
        %v3801 = vunpack.c.l.b16 %v3300
        %v3802 = vunpack.c.h.b16 %v3300
        %v3803 = vunpack.c.l.b16 %v3301
        %v3804 = vunpack.c.h.b16 %v3301
        %v3805 = vunpack.c.l.b16 %v3302
        %v3806 = vunpack.c.h.b16 %v3302
        %v3807 = vunpack.c.l.b16 %v3303
        %v3808 = vunpack.c.l.b16 %v3304
        %v3809 = vunpack.c.h.b16 %v3304
        %v3810 = vunpack.c.l.b16 %v3305
        %v3811 = vunpack.c.h.b16 %v3305
        %v3812 = vunpack.c.l.b16 %v3306
        %v3813 = vunpack.c.h.b16 %v3306
        %v3814 = vunpack.c.l.b16 %v3307
        %v3815 = vunpack.c.h.b16 %v3307
        %v3816 = vunpack.c.l.b16 %v3308
        %v3817 = vunpack.c.l.b16 %v3309
        %v3818 = vunpack.c.h.b16 %v3309
        %v3819 = vunpack.c.l.b16 %v3310
        %v3820 = vunpack.c.h.b16 %v3310
        %v3821 = vunpack.c.l.b16 %v3311
        %v3822 = vunpack.c.h.b16 %v3311
        %v3823 = vunpack.c.l.b16 %v3312
        %v3824 = vunpack.c.h.b16 %v3312
        %v3825 = vunpack.c.l.b16 %v3313
        %v3826 = vunpack.c.l.b16 %v3314
        %v3827 = vunpack.c.h.b16 %v3314
        %v3828 = vunpack.c.l.b16 %v3315
        %v3829 = vunpack.c.h.b16 %v3315
        %v3830 = vunpack.c.l.b16 %v3316
        %v3831 = vunpack.c.h.b16 %v3316
        %v3832 = vunpack.c.l.b16 %v3317
        %v3833 = vunpack.c.h.b16 %v3317
        %v3834 = vunpack.c.l.b16 %v3318
        %v3835 = vunpack.c.l.b16 %v3319
        %v3836 = vunpack.c.h.b16 %v3319
        %v3837 = vunpack.c.l.b16 %v3320
        %v3838 = vunpack.c.h.b16 %v3320
        %v3839 = vunpack.c.l.b16 %v3321
        %v3840 = vunpack.c.h.b16 %v3321
        %v3841 = vunpack.c.l.b16 %v3322
        %v3842 = vunpack.c.h.b16 %v3322
        %v3843 = vunpack.c.l.b16 %v3323
        %v3844 = vunpack.c.l.b16 %v3324
        %v3845 = vunpack.c.h.b16 %v3324
        %v3846 = vunpack.c.l.b16 %v3325
        %v3847 = vunpack.c.h.b16 %v3325
        %v3848 = vunpack.c.l.b16 %v3326
        %v3849 = vunpack.c.h.b16 %v3326
        %v3850 = vunpack.c.l.b16 %v3327
        %v3851 = vunpack.c.h.b16 %v3327
        %v3852 = vunpack.c.l.b16 %v3328
        %v3853 = vunpack.c.l.b16 %v3329
        %v3854 = vunpack.c.h.b16 %v3329
        %v3855 = vunpack.c.l.b16 %v3330
        %v3856 = vunpack.c.h.b16 %v3330
        %v3857 = vunpack.c.l.b16 %v3331
        %v3858 = vunpack.c.h.b16 %v3331
        %v3859 = vunpack.c.l.b16 %v3332
        %v3860 = vunpack.c.h.b16 %v3332
        %v3861 = vunpack.c.l.b16 %v3333
        %v3862 = vunpack.c.l.b16 %v3334
        %v3863 = vunpack.c.h.b16 %v3334
        %v3864 = vunpack.c.l.b16 %v3335
        %v3865 = vunpack.c.h.b16 %v3335
        %v3866 = vunpack.c.l.b16 %v3336
        %v3867 = vunpack.c.h.b16 %v3336
        %v3868 = vunpack.c.l.b16 %v3337
        %v3869 = vunpack.c.h.b16 %v3337
        %v3870 = vunpack.c.l.b16 %v3338
        %v3871 = vunpack.c.l.b16 %v3339
        %v3872 = vunpack.c.h.b16 %v3339
        %v3873 = vunpack.c.l.b16 %v3340
        %v3874 = vunpack.c.h.b16 %v3340
        %v3875 = vunpack.c.l.b16 %v3341
        %v3876 = vunpack.c.h.b16 %v3341
        %v3877 = vunpack.c.l.b16 %v3342
        %v3878 = vunpack.c.h.b16 %v3342
        %v3879 = vunpack.c.l.b16 %v3343
        %v3880 = vunpack.c.l.b16 %v3344
        %v3881 = vunpack.c.h.b16 %v3344
        %v3882 = vunpack.c.l.b16 %v3345
        %v3883 = vunpack.c.h.b16 %v3345
        %v3884 = vunpack.c.l.b16 %v3346
        %v3885 = vunpack.c.h.b16 %v3346
        %v3886 = vunpack.c.l.b16 %v3347
        %v3887 = vunpack.c.h.b16 %v3347
        %v3888 = vunpack.c.l.b16 %v3348
        %v3889 = vunpack.c.l.b16 %v3349
        %v3890 = vunpack.c.h.b16 %v3349
        %v3891 = vunpack.c.l.b16 %v3350
        %v3892 = vunpack.c.h.b16 %v3350
        %v3893 = vunpack.c.l.b16 %v3351
        %v3894 = vunpack.c.h.b16 %v3351
        %v3895 = vunpack.c.l.b16 %v3352
        %v3896 = vunpack.c.h.b16 %v3352
        %v3897 = vunpack.c.l.b16 %v3353
        %v3898 = vunpack.c.l.b16 %v3354
        %v3899 = vunpack.c.h.b16 %v3354
        %v3900 = vunpack.c.l.b16 %v3355
        %v3901 = vunpack.c.h.b16 %v3355
        %v3902 = vunpack.c.l.b16 %v3356
        %v3903 = vunpack.c.h.b16 %v3356
        %v3904 = vunpack.c.l.b16 %v3357
        %v3905 = vunpack.c.h.b16 %v3357
        %v3906 = vunpack.c.l.b16 %v3358
        %v3907 = vunpack.c.l.b16 %v3359
        %v3908 = vunpack.c.h.b16 %v3359
        %v3909 = vunpack.c.l.b16 %v3360
        %v3910 = vunpack.c.h.b16 %v3360
        %v3911 = vunpack.c.l.b16 %v3361
        %v3912 = vunpack.c.h.b16 %v3361
        %v3913 = vunpack.c.l.b16 %v3362
        %v3914 = vunpack.c.h.b16 %v3362
        %v3915 = vunpack.c.l.b16 %v3363
        %v3916 = vunpack.c.l.b16 %v3364
        %v3917 = vunpack.c.h.b16 %v3364
        %v3918 = vunpack.c.l.b16 %v3365
        %v3919 = vunpack.c.h.b16 %v3365
        %v3920 = vunpack.c.l.b16 %v3366
        %v3921 = vunpack.c.h.b16 %v3366
        %v3922 = vunpack.c.l.b16 %v3367
        %v3923 = vunpack.c.h.b16 %v3367
        %v3924 = vunpack.c.l.b16 %v3368
        %v3925 = vunpack.c.l.b16 %v3369
        %v3926 = vunpack.c.h.b16 %v3369
        %v3927 = vunpack.c.l.b16 %v3370
        %v3928 = vunpack.c.h.b16 %v3370
        %v3929 = vunpack.c.l.b16 %v3371
        %v3930 = vunpack.c.h.b16 %v3371
        %v3931 = vunpack.c.l.b16 %v3372
        %v3932 = vunpack.c.h.b16 %v3372
        %v3933 = vunpack.c.l.b16 %v3373
        %v3934 = vunpack.c.l.b16 %v3374
        %v3935 = vunpack.c.h.b16 %v3374
        %v3936 = vunpack.c.l.b16 %v3375
        %v3937 = vunpack.c.h.b16 %v3375
        %v3938 = vunpack.c.l.b16 %v3376
        %v3939 = vunpack.c.h.b16 %v3376
        %v3940 = vunpack.c.l.b16 %v3377
        %v3941 = vunpack.c.h.b16 %v3377
        %v3942 = vunpack.c.l.b16 %v3378
        %v3943 = vunpack.c.l.b16 %v3379
        %v3944 = vunpack.c.h.b16 %v3379
        %v3945 = vunpack.c.l.b16 %v3380
        %v3946 = vunpack.c.h.b16 %v3380
        %v3947 = vunpack.c.l.b16 %v3381
        %v3948 = vunpack.c.h.b16 %v3381
        %v3949 = vunpack.c.l.b16 %v3382
        %v3950 = vunpack.c.h.b16 %v3382
        %v3951 = vunpack.c.l.b16 %v3383
        %v3952 = vunpack.c.l.b16 %v3384
        %v3953 = vunpack.c.h.b16 %v3384
        %v3954 = vunpack.c.l.b16 %v3385
        %v3955 = vunpack.c.h.b16 %v3385
        %v3956 = vunpack.c.l.b16 %v3386
        %v3957 = vunpack.c.h.b16 %v3386
        %v3958 = vunpack.c.l.b16 %v3387
        %v3959 = vunpack.c.h.b16 %v3387
        %v3960 = vunpack.c.l.b16 %v3388
        %v3961 = vunpack.c.l.b16 %v3389
        %v3962 = vunpack.c.h.b16 %v3389
        %v3963 = vunpack.c.l.b16 %v3390
        %v3964 = vunpack.c.h.b16 %v3390
        %v3965 = vunpack.c.l.b16 %v3391
        %v3966 = vunpack.c.h.b16 %v3391
        %v3967 = vunpack.c.l.b16 %v3392
        %v3968 = vunpack.c.h.b16 %v3392
        %v3969 = vunpack.c.l.b16 %v3393
        %v3970 = vunpack.c.l.b16 %v3394
        %v3971 = vunpack.c.h.b16 %v3394
        %v3972 = vunpack.c.l.b16 %v3395
        %v3973 = vunpack.c.h.b16 %v3395
        %v3974 = vunpack.c.l.b16 %v3396
        %v3975 = vunpack.c.h.b16 %v3396
        %v3976 = vunpack.c.l.b16 %v3397
        %v3977 = vunpack.c.h.b16 %v3397
        %v3978 = vunpack.c.l.b16 %v3398
        %v3979 = vunpack.c.l.b16 %v3399
        %v3980 = vunpack.c.h.b16 %v3399
        %v3981 = vunpack.c.l.b16 %v3400
        %v3982 = vunpack.c.h.b16 %v3400
        %v3983 = vunpack.c.l.b16 %v3401
        %v3984 = vunpack.c.h.b16 %v3401
        %v3985 = vunpack.c.l.b16 %v3402
        %v3986 = vunpack.c.h.b16 %v3402
        %v3987 = vunpack.c.l.b16 %v3403
        %v3988 = vunpack.c.l.b16 %v3404
        %v3989 = vunpack.c.h.b16 %v3404
        %v3990 = vunpack.c.l.b16 %v3405
        %v3991 = vunpack.c.h.b16 %v3405
        %v3992 = vunpack.c.l.b16 %v3406
        %v3993 = vunpack.c.h.b16 %v3406
        %v3994 = vunpack.c.l.b16 %v3407
        %v3995 = vunpack.c.h.b16 %v3407
        %v3996 = vunpack.c.l.b16 %v3408
        %v3997 = vunpack.c.l.b16 %v3409
        %v3998 = vunpack.c.h.b16 %v3409
        %v3999 = vunpack.c.l.b16 %v3410
        %v4000 = vunpack.c.h.b16 %v3410
        %v4001 = vunpack.c.l.b16 %v3411
        %v4002 = vunpack.c.h.b16 %v3411
        %v4003 = vunpack.c.l.b16 %v3412
        %v4004 = vunpack.c.h.b16 %v3412
        %v4005 = vunpack.c.l.b16 %v3413
        %v4006 = vpack.c.b16 %v3727, %v3718
        %v4007 = vpack.c.b16 %v3728, %v3719
        %v4008 = vpack.c.b16 %v3729, %v3720
        %v4009 = vpack.c.b16 %v3730, %v3721
        %v4010 = vpack.c.b16 %v3731, %v3722
        %v4011 = vpack.c.b16 %v3732, %v3723
        %v4012 = vpack.c.b16 %v3733, %v3724
        %v4013 = vpack.c.b16 %v3734, %v3725
        %v4014 = vpack.c.b16 %v3735, %v3726
        %v4015 = vpack.c.b16 %v3745, %v3736
        %v4016 = vpack.c.b16 %v3746, %v3737
        %v4017 = vpack.c.b16 %v3747, %v3738
        %v4018 = vpack.c.b16 %v3748, %v3739
        %v4019 = vpack.c.b16 %v3749, %v3740
        %v4020 = vpack.c.b16 %v3750, %v3741
        %v4021 = vpack.c.b16 %v3751, %v3742
        %v4022 = vpack.c.b16 %v3752, %v3743
        %v4023 = vpack.c.b16 %v3753, %v3744
        %v4024 = vpack.c.b16 %v3763, %v3754
        %v4025 = vpack.c.b16 %v3764, %v3755
        %v4026 = vpack.c.b16 %v3765, %v3756
        %v4027 = vpack.c.b16 %v3766, %v3757
        %v4028 = vpack.c.b16 %v3767, %v3758
        %v4029 = vpack.c.b16 %v3768, %v3759
        %v4030 = vpack.c.b16 %v3769, %v3760
        %v4031 = vpack.c.b16 %v3770, %v3761
        %v4032 = vpack.c.b16 %v3771, %v3762
        %v4033 = vpack.c.b16 %v3781, %v3772
        %v4034 = vpack.c.b16 %v3782, %v3773
        %v4035 = vpack.c.b16 %v3783, %v3774
        %v4036 = vpack.c.b16 %v3784, %v3775
        %v4037 = vpack.c.b16 %v3785, %v3776
        %v4038 = vpack.c.b16 %v3786, %v3777
        %v4039 = vpack.c.b16 %v3787, %v3778
        %v4040 = vpack.c.b16 %v3788, %v3779
        %v4041 = vpack.c.b16 %v3789, %v3780
        %v4042 = vpack.c.b16 %v3799, %v3790
        %v4043 = vpack.c.b16 %v3800, %v3791
        %v4044 = vpack.c.b16 %v3801, %v3792
        %v4045 = vpack.c.b16 %v3802, %v3793
        %v4046 = vpack.c.b16 %v3803, %v3794
        %v4047 = vpack.c.b16 %v3804, %v3795
        %v4048 = vpack.c.b16 %v3805, %v3796
        %v4049 = vpack.c.b16 %v3806, %v3797
        %v4050 = vpack.c.b16 %v3807, %v3798
        %v4051 = vpack.c.b16 %v3817, %v3808
        %v4052 = vpack.c.b16 %v3818, %v3809
        %v4053 = vpack.c.b16 %v3819, %v3810
        %v4054 = vpack.c.b16 %v3820, %v3811
        %v4055 = vpack.c.b16 %v3821, %v3812
        %v4056 = vpack.c.b16 %v3822, %v3813
        %v4057 = vpack.c.b16 %v3823, %v3814
        %v4058 = vpack.c.b16 %v3824, %v3815
        %v4059 = vpack.c.b16 %v3825, %v3816
        %v4060 = vpack.c.b16 %v3835, %v3826
        %v4061 = vpack.c.b16 %v3836, %v3827
        %v4062 = vpack.c.b16 %v3837, %v3828
        %v4063 = vpack.c.b16 %v3838, %v3829
        %v4064 = vpack.c.b16 %v3839, %v3830
        %v4065 = vpack.c.b16 %v3840, %v3831
        %v4066 = vpack.c.b16 %v3841, %v3832
        %v4067 = vpack.c.b16 %v3842, %v3833
        %v4068 = vpack.c.b16 %v3843, %v3834
        %v4069 = vpack.c.b16 %v3853, %v3844
        %v4070 = vpack.c.b16 %v3854, %v3845
        %v4071 = vpack.c.b16 %v3855, %v3846
        %v4072 = vpack.c.b16 %v3856, %v3847
        %v4073 = vpack.c.b16 %v3857, %v3848
        %v4074 = vpack.c.b16 %v3858, %v3849
        %v4075 = vpack.c.b16 %v3859, %v3850
        %v4076 = vpack.c.b16 %v3860, %v3851
        %v4077 = vpack.c.b16 %v3861, %v3852
        %v4078 = vpack.c.b16 %v3871, %v3862
        %v4079 = vpack.c.b16 %v3872, %v3863
        %v4080 = vpack.c.b16 %v3873, %v3864
        %v4081 = vpack.c.b16 %v3874, %v3865
        %v4082 = vpack.c.b16 %v3875, %v3866
        %v4083 = vpack.c.b16 %v3876, %v3867
        %v4084 = vpack.c.b16 %v3877, %v3868
        %v4085 = vpack.c.b16 %v3878, %v3869
        %v4086 = vpack.c.b16 %v3879, %v3870
        %v4087 = vpack.c.b16 %v3889, %v3880
        %v4088 = vpack.c.b16 %v3890, %v3881
        %v4089 = vpack.c.b16 %v3891, %v3882
        %v4090 = vpack.c.b16 %v3892, %v3883
        %v4091 = vpack.c.b16 %v3893, %v3884
        %v4092 = vpack.c.b16 %v3894, %v3885
        %v4093 = vpack.c.b16 %v3895, %v3886
        %v4094 = vpack.c.b16 %v3896, %v3887
        %v4095 = vpack.c.b16 %v3897, %v3888
        %v4096 = vpack.c.b16 %v3907, %v3898
        %v4097 = vpack.c.b16 %v3908, %v3899
        %v4098 = vpack.c.b16 %v3909, %v3900
        %v4099 = vpack.c.b16 %v3910, %v3901
        %v4100 = vpack.c.b16 %v3911, %v3902
        %v4101 = vpack.c.b16 %v3912, %v3903
        %v4102 = vpack.c.b16 %v3913, %v3904
        %v4103 = vpack.c.b16 %v3914, %v3905
        %v4104 = vpack.c.b16 %v3915, %v3906
        %v4105 = vpack.c.b16 %v3925, %v3916
        %v4106 = vpack.c.b16 %v3926, %v3917
        %v4107 = vpack.c.b16 %v3927, %v3918
        %v4108 = vpack.c.b16 %v3928, %v3919
        %v4109 = vpack.c.b16 %v3929, %v3920
        %v4110 = vpack.c.b16 %v3930, %v3921
        %v4111 = vpack.c.b16 %v3931, %v3922
        %v4112 = vpack.c.b16 %v3932, %v3923
        %v4113 = vpack.c.b16 %v3933, %v3924
        %v4114 = vpack.c.b16 %v3943, %v3934
        %v4115 = vpack.c.b16 %v3944, %v3935
        %v4116 = vpack.c.b16 %v3945, %v3936
        %v4117 = vpack.c.b16 %v3946, %v3937
        %v4118 = vpack.c.b16 %v3947, %v3938
        %v4119 = vpack.c.b16 %v3948, %v3939
        %v4120 = vpack.c.b16 %v3949, %v3940
        %v4121 = vpack.c.b16 %v3950, %v3941
        %v4122 = vpack.c.b16 %v3951, %v3942
        %v4123 = vpack.c.b16 %v3961, %v3952
        %v4124 = vpack.c.b16 %v3962, %v3953
        %v4125 = vpack.c.b16 %v3963, %v3954
        %v4126 = vpack.c.b16 %v3964, %v3955
        %v4127 = vpack.c.b16 %v3965, %v3956
        %v4128 = vpack.c.b16 %v3966, %v3957
        %v4129 = vpack.c.b16 %v3967, %v3958
        %v4130 = vpack.c.b16 %v3968, %v3959
        %v4131 = vpack.c.b16 %v3969, %v3960
        %v4132 = vpack.c.b16 %v3979, %v3970
        %v4133 = vpack.c.b16 %v3980, %v3971
        %v4134 = vpack.c.b16 %v3981, %v3972
        %v4135 = vpack.c.b16 %v3982, %v3973
        %v4136 = vpack.c.b16 %v3983, %v3974
        %v4137 = vpack.c.b16 %v3984, %v3975
        %v4138 = vpack.c.b16 %v3985, %v3976
        %v4139 = vpack.c.b16 %v3986, %v3977
        %v4140 = vpack.c.b16 %v3987, %v3978
        %v4141 = vpack.c.b16 %v3997, %v3988
        %v4142 = vpack.c.b16 %v3998, %v3989
        %v4143 = vpack.c.b16 %v3999, %v3990
        %v4144 = vpack.c.b16 %v4000, %v3991
        %v4145 = vpack.c.b16 %v4001, %v3992
        %v4146 = vpack.c.b16 %v4002, %v3993
        %v4147 = vpack.c.b16 %v4003, %v3994
        %v4148 = vpack.c.b16 %v4004, %v3995
        %v4149 = vpack.c.b16 %v4005, %v3996
        %v4438 = vunpack.c.l.b16 %v3414
        %v4439 = vunpack.c.l.b16 %v3415
        %v4440 = vunpack.c.l.b16 %v3416
        %v4441 = vunpack.c.l.b16 %v3417
        %v4442 = vunpack.c.l.b16 %v3418
        %v4443 = vunpack.c.l.b16 %v3419
        %v4444 = vunpack.c.l.b16 %v3420
        %v4445 = vunpack.c.l.b16 %v3421
        %v4446 = vunpack.c.l.b16 %v3422
        %v4447 = vunpack.c.l.b16 %v3423
        %v4448 = vunpack.c.l.b16 %v3424
        %v4449 = vunpack.c.l.b16 %v3425
        %v4450 = vunpack.c.l.b16 %v3426
        %v4451 = vunpack.c.l.b16 %v3427
        %v4452 = vunpack.c.l.b16 %v3428
        %v4453 = vunpack.c.l.b16 %v3429
        %v4454 = vunpack.c.l.b16 %v3430
        %v4455 = vunpack.c.l.b16 %v3431
        %v4456 = vunpack.c.l.b16 %v3432
        %v4457 = vunpack.c.l.b16 %v3433
        %v4458 = vunpack.c.l.b16 %v3434
        %v4459 = vunpack.c.l.b16 %v3435
        %v4460 = vunpack.c.l.b16 %v3436
        %v4461 = vunpack.c.l.b16 %v3437
        %v4462 = vunpack.c.l.b16 %v3438
        %v4463 = vunpack.c.l.b16 %v3439
        %v4464 = vunpack.c.l.b16 %v3440
        %v4465 = vunpack.c.l.b16 %v3441
        %v4466 = vunpack.c.l.b16 %v3442
        %v4467 = vunpack.c.l.b16 %v3443
        %v4468 = vunpack.c.l.b16 %v3444
        %v4469 = vunpack.c.l.b16 %v3445
        %v4470 = vunpack.c.l.b16 %v3446
        %v4471 = vunpack.c.l.b16 %v3447
        %v4472 = vunpack.c.l.b16 %v3448
        %v4473 = vunpack.c.l.b16 %v3449
        %v4474 = vunpack.c.l.b16 %v3450
        %v4475 = vunpack.c.l.b16 %v3451
        %v4476 = vunpack.c.l.b16 %v3452
        %v4477 = vunpack.c.l.b16 %v3453
        %v4478 = vunpack.c.l.b16 %v3454
        %v4479 = vunpack.c.l.b16 %v3455
        %v4480 = vunpack.c.l.b16 %v3456
        %v4481 = vunpack.c.l.b16 %v3457
        %v4482 = vunpack.c.l.b16 %v3458
        %v4483 = vunpack.c.l.b16 %v3459
        %v4484 = vunpack.c.l.b16 %v3460
        %v4485 = vunpack.c.l.b16 %v3461
        %v4486 = vunpack.c.l.b16 %v3462
        %v4487 = vunpack.c.l.b16 %v3463
        %v4488 = vunpack.c.l.b16 %v3464
        %v4489 = vunpack.c.l.b16 %v3465
        %v4490 = vunpack.c.l.b16 %v3466
        %v4491 = vunpack.c.l.b16 %v3467
        %v4492 = vunpack.c.l.b16 %v3468
        %v4493 = vunpack.c.l.b16 %v3469
        %v4494 = vunpack.c.l.b16 %v3470
        %v4495 = vunpack.c.l.b16 %v3471
        %v4496 = vunpack.c.l.b16 %v3472
        %v4497 = vunpack.c.l.b16 %v3473
        %v4498 = vunpack.c.l.b16 %v3474
        %v4499 = vunpack.c.l.b16 %v3475
        %v4500 = vunpack.c.l.b16 %v3476
        %v4501 = vunpack.c.l.b16 %v3477
        %v4502 = vunpack.c.l.b16 %v3478
        %v4503 = vunpack.c.l.b16 %v3479
        %v4504 = vunpack.c.l.b16 %v3480
        %v4505 = vunpack.c.l.b16 %v3481
        %v4506 = vunpack.c.l.b16 %v3482
        %v4507 = vunpack.c.l.b16 %v3483
        %v4508 = vunpack.c.l.b16 %v3484
        %v4509 = vunpack.c.l.b16 %v3485
        %v4510 = vunpack.c.l.b16 %v3486
        %v4511 = vunpack.c.l.b16 %v3487
        %v4512 = vunpack.c.l.b16 %v3488
        %v4513 = vunpack.c.l.b16 %v3489
        %v4514 = vunpack.c.l.b16 %v3490
        %v4515 = vunpack.c.l.b16 %v3491
        %v4516 = vunpack.c.l.b16 %v3492
        %v4517 = vunpack.c.l.b16 %v3493
        %v4518 = vunpack.c.l.b16 %v3494
        %v4519 = vunpack.c.l.b16 %v3495
        %v4520 = vunpack.c.l.b16 %v3496
        %v4521 = vunpack.c.l.b16 %v3497
        %v4522 = vunpack.c.l.b16 %v3498
        %v4523 = vunpack.c.l.b16 %v3499
        %v4524 = vunpack.c.l.b16 %v3500
        %v4525 = vunpack.c.l.b16 %v3501
        %v4526 = vunpack.c.l.b16 %v3502
        %v4527 = vunpack.c.l.b16 %v3503
        %v4528 = vunpack.c.l.b16 %v3504
        %v4529 = vunpack.c.l.b16 %v3505
        %v4530 = vunpack.c.l.b16 %v3506
        %v4531 = vunpack.c.l.b16 %v3507
        %v4532 = vunpack.c.l.b16 %v3508
        %v4533 = vunpack.c.l.b16 %v3509
        %v4534 = vunpack.c.l.b16 %v3510
        %v4535 = vunpack.c.l.b16 %v3511
        %v4536 = vunpack.c.l.b16 %v3512
        %v4537 = vunpack.c.l.b16 %v3513
        %v4538 = vunpack.c.l.b16 %v3514
        %v4539 = vunpack.c.l.b16 %v3515
        %v4540 = vunpack.c.l.b16 %v3516
        %v4541 = vunpack.c.l.b16 %v3517
        %v4542 = vunpack.c.l.b16 %v3518
        %v4543 = vunpack.c.l.b16 %v3519
        %v4544 = vunpack.c.l.b16 %v3520
        %v4545 = vunpack.c.l.b16 %v3521
        %v4546 = vunpack.c.l.b16 %v3522
        %v4547 = vunpack.c.l.b16 %v3523
        %v4548 = vunpack.c.l.b16 %v3524
        %v4549 = vunpack.c.l.b16 %v3525
        %v4550 = vunpack.c.l.b16 %v3526
        %v4551 = vunpack.c.l.b16 %v3527
        %v4552 = vunpack.c.l.b16 %v3528
        %v4553 = vunpack.c.l.b16 %v3529
        %v4554 = vunpack.c.l.b16 %v3530
        %v4555 = vunpack.c.l.b16 %v3531
        %v4556 = vunpack.c.l.b16 %v3532
        %v4557 = vunpack.c.l.b16 %v3533
        %v4558 = vunpack.c.l.b16 %v3534
        %v4559 = vunpack.c.l.b16 %v3535
        %v4560 = vunpack.c.l.b16 %v3536
        %v4561 = vunpack.c.l.b16 %v3537
        %v4562 = vunpack.c.l.b16 %v3538
        %v4563 = vunpack.c.l.b16 %v3539
        %v4564 = vunpack.c.l.b16 %v3540
        %v4565 = vunpack.c.l.b16 %v3541
        %v4566 = vunpack.c.l.b16 %v3542
        %v4567 = vunpack.c.l.b16 %v3543
        %v4568 = vunpack.c.l.b16 %v3544
        %v4569 = vunpack.c.l.b16 %v3545
        %v4570 = vunpack.c.l.b16 %v3546
        %v4571 = vunpack.c.l.b16 %v3547
        %v4572 = vunpack.c.l.b16 %v3548
        %v4573 = vunpack.c.l.b16 %v3549
        %v4574 = vunpack.c.l.b16 %v3550
        %v4575 = vunpack.c.l.b16 %v3551
        %v4576 = vunpack.c.l.b16 %v3552
        %v4577 = vunpack.c.l.b16 %v3553
        %v4578 = vunpack.c.l.b16 %v3554
        %v4579 = vunpack.c.l.b16 %v3555
        %v4580 = vunpack.c.l.b16 %v3556
        %v4581 = vunpack.c.l.b16 %v3557
        %v4582 = vpack.c.b16 %v4439, %v4438
        %v4583 = vpack.c.b16 %v4441, %v4440
        %v4584 = vpack.c.b16 %v4443, %v4442
        %v4585 = vpack.c.b16 %v4445, %v4444
        %v4586 = vpack.c.b16 %v4447, %v4446
        %v4587 = vpack.c.b16 %v4449, %v4448
        %v4588 = vpack.c.b16 %v4451, %v4450
        %v4589 = vpack.c.b16 %v4453, %v4452
        %v4590 = vpack.c.b16 %v4455, %v4454
        %v4591 = vpack.c.b16 %v4457, %v4456
        %v4592 = vpack.c.b16 %v4459, %v4458
        %v4593 = vpack.c.b16 %v4461, %v4460
        %v4594 = vpack.c.b16 %v4463, %v4462
        %v4595 = vpack.c.b16 %v4465, %v4464
        %v4596 = vpack.c.b16 %v4467, %v4466
        %v4597 = vpack.c.b16 %v4469, %v4468
        %v4598 = vpack.c.b16 %v4471, %v4470
        %v4599 = vpack.c.b16 %v4473, %v4472
        %v4600 = vpack.c.b16 %v4475, %v4474
        %v4601 = vpack.c.b16 %v4477, %v4476
        %v4602 = vpack.c.b16 %v4479, %v4478
        %v4603 = vpack.c.b16 %v4481, %v4480
        %v4604 = vpack.c.b16 %v4483, %v4482
        %v4605 = vpack.c.b16 %v4485, %v4484
        %v4606 = vpack.c.b16 %v4487, %v4486
        %v4607 = vpack.c.b16 %v4489, %v4488
        %v4608 = vpack.c.b16 %v4491, %v4490
        %v4609 = vpack.c.b16 %v4493, %v4492
        %v4610 = vpack.c.b16 %v4495, %v4494
        %v4611 = vpack.c.b16 %v4497, %v4496
        %v4612 = vpack.c.b16 %v4499, %v4498
        %v4613 = vpack.c.b16 %v4501, %v4500
        %v4614 = vpack.c.b16 %v4503, %v4502
        %v4615 = vpack.c.b16 %v4505, %v4504
        %v4616 = vpack.c.b16 %v4507, %v4506
        %v4617 = vpack.c.b16 %v4509, %v4508
        %v4618 = vpack.c.b16 %v4511, %v4510
        %v4619 = vpack.c.b16 %v4513, %v4512
        %v4620 = vpack.c.b16 %v4515, %v4514
        %v4621 = vpack.c.b16 %v4517, %v4516
        %v4622 = vpack.c.b16 %v4519, %v4518
        %v4623 = vpack.c.b16 %v4521, %v4520
        %v4624 = vpack.c.b16 %v4523, %v4522
        %v4625 = vpack.c.b16 %v4525, %v4524
        %v4626 = vpack.c.b16 %v4527, %v4526
        %v4627 = vpack.c.b16 %v4529, %v4528
        %v4628 = vpack.c.b16 %v4531, %v4530
        %v4629 = vpack.c.b16 %v4533, %v4532
        %v4630 = vpack.c.b16 %v4535, %v4534
        %v4631 = vpack.c.b16 %v4537, %v4536
        %v4632 = vpack.c.b16 %v4539, %v4538
        %v4633 = vpack.c.b16 %v4541, %v4540
        %v4634 = vpack.c.b16 %v4543, %v4542
        %v4635 = vpack.c.b16 %v4545, %v4544
        %v4636 = vpack.c.b16 %v4547, %v4546
        %v4637 = vpack.c.b16 %v4549, %v4548
        %v4638 = vpack.c.b16 %v4551, %v4550
        %v4639 = vpack.c.b16 %v4553, %v4552
        %v4640 = vpack.c.b16 %v4555, %v4554
        %v4641 = vpack.c.b16 %v4557, %v4556
        %v4642 = vpack.c.b16 %v4559, %v4558
        %v4643 = vpack.c.b16 %v4561, %v4560
        %v4644 = vpack.c.b16 %v4563, %v4562
        %v4645 = vpack.c.b16 %v4565, %v4564
        %v4646 = vpack.c.b16 %v4567, %v4566
        %v4647 = vpack.c.b16 %v4569, %v4568
        %v4648 = vpack.c.b16 %v4571, %v4570
        %v4649 = vpack.c.b16 %v4573, %v4572
        %v4650 = vpack.c.b16 %v4575, %v4574
        %v4651 = vpack.c.b16 %v4577, %v4576
        %v4652 = vpack.c.b16 %v4579, %v4578
        %v4653 = vpack.c.b16 %v4581, %v4580
        %4726 = vmatpush.bf16.msra.mxu0 %v4589
        %4727 = vmatpush.bf16.msra.mxu0 %v4588
        %4728 = vmatpush.bf16.msra.mxu0 %v4587
        %4729 = vmatpush.bf16.msra.mxu0 %v4586
        %4730 = vmatpush.bf16.msra.mxu0 %v4585
        %4731 = vmatpush.bf16.msra.mxu0 %v4584
        %4732 = vmatpush.bf16.msra.mxu0 %v4583
        %4733 = vmatpush.bf16.msra.mxu0 %v4582
        %4734 = vmatmul.bf16.gmra.mxu0 %v4006
        %v4735 = vpop.f32.mrf.mxu0
        %v4736 = vadd.f32 0.0, %v4735
        %v4737 = vpop.f32.mrf.mxu0
        %v4738 = vadd.f32 0.0, %v4737
        %4739 = vmatmul.bf16.gmra.mxu0 %v4015
        %v4740 = vpop.f32.mrf.mxu0
        %v4741 = vadd.f32 0.0, %v4740
        %v4742 = vpop.f32.mrf.mxu0
        %v4743 = vadd.f32 0.0, %v4742
        %4744 = vmatmul.bf16.gmra.mxu0 %v4024
        %v4745 = vpop.f32.mrf.mxu0
        %v4746 = vadd.f32 0.0, %v4745
        %v4747 = vpop.f32.mrf.mxu0
        %v4748 = vadd.f32 0.0, %v4747
        %4749 = vmatmul.bf16.gmra.mxu0 %v4033
        %v4750 = vpop.f32.mrf.mxu0
        %v4751 = vadd.f32 0.0, %v4750
        %v4752 = vpop.f32.mrf.mxu0
        %v4753 = vadd.f32 0.0, %v4752
        %4754 = vmatmul.bf16.gmra.mxu0 %v4042
        %v4755 = vpop.f32.mrf.mxu0
        %v4756 = vadd.f32 0.0, %v4755
        %v4757 = vpop.f32.mrf.mxu0
        %v4758 = vadd.f32 0.0, %v4757
        %4759 = vmatmul.bf16.gmra.mxu0 %v4051
        %v4760 = vpop.f32.mrf.mxu0
        %v4761 = vadd.f32 0.0, %v4760
        %v4762 = vpop.f32.mrf.mxu0
        %v4763 = vadd.f32 0.0, %v4762
        %4764 = vmatmul.bf16.gmra.mxu0 %v4060
        %v4765 = vpop.f32.mrf.mxu0
        %v4766 = vadd.f32 0.0, %v4765
        %v4767 = vpop.f32.mrf.mxu0
        %v4768 = vadd.f32 0.0, %v4767
        %4769 = vmatmul.bf16.gmra.mxu0 %v4069
        %v4770 = vpop.f32.mrf.mxu0
        %v4771 = vadd.f32 0.0, %v4770
        %v4772 = vpop.f32.mrf.mxu0
        %v4773 = vadd.f32 0.0, %v4772
        %4774 = vmatmul.bf16.gmra.mxu0 %v4078
        %v4775 = vpop.f32.mrf.mxu0
        %v4776 = vadd.f32 0.0, %v4775
        %v4777 = vpop.f32.mrf.mxu0
        %v4778 = vadd.f32 0.0, %v4777
        %4779 = vmatmul.bf16.gmra.mxu0 %v4087
        %v4780 = vpop.f32.mrf.mxu0
        %v4781 = vadd.f32 0.0, %v4780
        %v4782 = vpop.f32.mrf.mxu0
        %v4783 = vadd.f32 0.0, %v4782
        %4784 = vmatmul.bf16.gmra.mxu0 %v4096
        %v4785 = vpop.f32.mrf.mxu0
        %v4786 = vadd.f32 0.0, %v4785
        %v4787 = vpop.f32.mrf.mxu0
        %v4788 = vadd.f32 0.0, %v4787
        %4789 = vmatmul.bf16.gmra.mxu0 %v4105
        %v4790 = vpop.f32.mrf.mxu0
        %v4791 = vadd.f32 0.0, %v4790
        %v4792 = vpop.f32.mrf.mxu0
        %v4793 = vadd.f32 0.0, %v4792
        %4794 = vmatmul.bf16.gmra.mxu0 %v4114
        %v4795 = vpop.f32.mrf.mxu0
        %v4796 = vadd.f32 0.0, %v4795
        %v4797 = vpop.f32.mrf.mxu0
        %v4798 = vadd.f32 0.0, %v4797
        %4799 = vmatmul.bf16.gmra.mxu0 %v4123
        %v4800 = vpop.f32.mrf.mxu0
        %v4801 = vadd.f32 0.0, %v4800
        %v4802 = vpop.f32.mrf.mxu0
        %v4803 = vadd.f32 0.0, %v4802
        %4804 = vmatmul.bf16.gmra.mxu0 %v4132
        %v4805 = vpop.f32.mrf.mxu0
        %v4806 = vadd.f32 0.0, %v4805
        %v4807 = vpop.f32.mrf.mxu0
        %v4808 = vadd.f32 0.0, %v4807
        %4809 = vmatmul.bf16.gmra.mxu0 %v4141
        %v4810 = vpop.f32.mrf.mxu0
        %v4811 = vadd.f32 0.0, %v4810
        %v4812 = vpop.f32.mrf.mxu0
        %v4813 = vadd.f32 0.0, %v4812
        %4814 = vdwg.mxu0
        %4815 = vmatpush.bf16.msra.mxu0 %v4597
        %4816 = vmatpush.bf16.msra.mxu0 %v4596
        %4817 = vmatpush.bf16.msra.mxu0 %v4595
        %4818 = vmatpush.bf16.msra.mxu0 %v4594
        %4819 = vmatpush.bf16.msra.mxu0 %v4593
        %4820 = vmatpush.bf16.msra.mxu0 %v4592
        %4821 = vmatpush.bf16.msra.mxu0 %v4591
        %4822 = vmatpush.bf16.msra.mxu0 %v4590
        %4823 = vmatmul.bf16.gmra.mxu0 %v4007
        %v4824 = vpop.f32.mrf.mxu0
        %v4825 = vadd.f32 %v4736, %v4824
        %v4826 = vpop.f32.mrf.mxu0
        %v4827 = vadd.f32 %v4738, %v4826
        %4828 = vmatmul.bf16.gmra.mxu0 %v4016
        %v4829 = vpop.f32.mrf.mxu0
        %v4830 = vadd.f32 %v4741, %v4829
        %v4831 = vpop.f32.mrf.mxu0
        %v4832 = vadd.f32 %v4743, %v4831
        %4833 = vmatmul.bf16.gmra.mxu0 %v4025
        %v4834 = vpop.f32.mrf.mxu0
        %v4835 = vadd.f32 %v4746, %v4834
        %v4836 = vpop.f32.mrf.mxu0
        %v4837 = vadd.f32 %v4748, %v4836
        %4838 = vmatmul.bf16.gmra.mxu0 %v4034
        %v4839 = vpop.f32.mrf.mxu0
        %v4840 = vadd.f32 %v4751, %v4839
        %v4841 = vpop.f32.mrf.mxu0
        %v4842 = vadd.f32 %v4753, %v4841
        %4843 = vmatmul.bf16.gmra.mxu0 %v4043
        %v4844 = vpop.f32.mrf.mxu0
        %v4845 = vadd.f32 %v4756, %v4844
        %v4846 = vpop.f32.mrf.mxu0
        %v4847 = vadd.f32 %v4758, %v4846
        %4848 = vmatmul.bf16.gmra.mxu0 %v4052
        %v4849 = vpop.f32.mrf.mxu0
        %v4850 = vadd.f32 %v4761, %v4849
        %v4851 = vpop.f32.mrf.mxu0
        %v4852 = vadd.f32 %v4763, %v4851
        %4853 = vmatmul.bf16.gmra.mxu0 %v4061
        %v4854 = vpop.f32.mrf.mxu0
        %v4855 = vadd.f32 %v4766, %v4854
        %v4856 = vpop.f32.mrf.mxu0
        %v4857 = vadd.f32 %v4768, %v4856
        %4858 = vmatmul.bf16.gmra.mxu0 %v4070
        %v4859 = vpop.f32.mrf.mxu0
        %v4860 = vadd.f32 %v4771, %v4859
        %v4861 = vpop.f32.mrf.mxu0
        %v4862 = vadd.f32 %v4773, %v4861
        %4863 = vmatmul.bf16.gmra.mxu0 %v4079
        %v4864 = vpop.f32.mrf.mxu0
        %v4865 = vadd.f32 %v4776, %v4864
        %v4866 = vpop.f32.mrf.mxu0
        %v4867 = vadd.f32 %v4778, %v4866
        %4868 = vmatmul.bf16.gmra.mxu0 %v4088
        %v4869 = vpop.f32.mrf.mxu0
        %v4870 = vadd.f32 %v4781, %v4869
        %v4871 = vpop.f32.mrf.mxu0
        %v4872 = vadd.f32 %v4783, %v4871
        %4873 = vmatmul.bf16.gmra.mxu0 %v4097
        %v4874 = vpop.f32.mrf.mxu0
        %v4875 = vadd.f32 %v4786, %v4874
        %v4876 = vpop.f32.mrf.mxu0
        %v4877 = vadd.f32 %v4788, %v4876
        %4878 = vmatmul.bf16.gmra.mxu0 %v4106
        %v4879 = vpop.f32.mrf.mxu0
        %v4880 = vadd.f32 %v4791, %v4879
        %v4881 = vpop.f32.mrf.mxu0
        %v4882 = vadd.f32 %v4793, %v4881
        %4883 = vmatmul.bf16.gmra.mxu0 %v4115
        %v4884 = vpop.f32.mrf.mxu0
        %v4885 = vadd.f32 %v4796, %v4884
        %v4886 = vpop.f32.mrf.mxu0
        %v4887 = vadd.f32 %v4798, %v4886
        %4888 = vmatmul.bf16.gmra.mxu0 %v4124
        %v4889 = vpop.f32.mrf.mxu0
        %v4890 = vadd.f32 %v4801, %v4889
        %v4891 = vpop.f32.mrf.mxu0
        %v4892 = vadd.f32 %v4803, %v4891
        %4893 = vmatmul.bf16.gmra.mxu0 %v4133
        %v4894 = vpop.f32.mrf.mxu0
        %v4895 = vadd.f32 %v4806, %v4894
        %v4896 = vpop.f32.mrf.mxu0
        %v4897 = vadd.f32 %v4808, %v4896
        %4898 = vmatmul.bf16.gmra.mxu0 %v4142
        %v4899 = vpop.f32.mrf.mxu0
        %v4900 = vadd.f32 %v4811, %v4899
        %v4901 = vpop.f32.mrf.mxu0
        %v4902 = vadd.f32 %v4813, %v4901
        %4903 = vdwg.mxu0
        %4904 = vmatpush.bf16.msra.mxu0 %v4605
        %4905 = vmatpush.bf16.msra.mxu0 %v4604
        %4906 = vmatpush.bf16.msra.mxu0 %v4603
        %4907 = vmatpush.bf16.msra.mxu0 %v4602
        %4908 = vmatpush.bf16.msra.mxu0 %v4601
        %4909 = vmatpush.bf16.msra.mxu0 %v4600
        %4910 = vmatpush.bf16.msra.mxu0 %v4599
        %4911 = vmatpush.bf16.msra.mxu0 %v4598
        %4912 = vmatmul.bf16.gmra.mxu0 %v4008
        %v4913 = vpop.f32.mrf.mxu0
        %v4914 = vadd.f32 %v4825, %v4913
        %v4915 = vpop.f32.mrf.mxu0
        %v4916 = vadd.f32 %v4827, %v4915
        %4917 = vmatmul.bf16.gmra.mxu0 %v4017
        %v4918 = vpop.f32.mrf.mxu0
        %v4919 = vadd.f32 %v4830, %v4918
        %v4920 = vpop.f32.mrf.mxu0
        %v4921 = vadd.f32 %v4832, %v4920
        %4922 = vmatmul.bf16.gmra.mxu0 %v4026
        %v4923 = vpop.f32.mrf.mxu0
        %v4924 = vadd.f32 %v4835, %v4923
        %v4925 = vpop.f32.mrf.mxu0
        %v4926 = vadd.f32 %v4837, %v4925
        %4927 = vmatmul.bf16.gmra.mxu0 %v4035
        %v4928 = vpop.f32.mrf.mxu0
        %v4929 = vadd.f32 %v4840, %v4928
        %v4930 = vpop.f32.mrf.mxu0
        %v4931 = vadd.f32 %v4842, %v4930
        %4932 = vmatmul.bf16.gmra.mxu0 %v4044
        %v4933 = vpop.f32.mrf.mxu0
        %v4934 = vadd.f32 %v4845, %v4933
        %v4935 = vpop.f32.mrf.mxu0
        %v4936 = vadd.f32 %v4847, %v4935
        %4937 = vmatmul.bf16.gmra.mxu0 %v4053
        %v4938 = vpop.f32.mrf.mxu0
        %v4939 = vadd.f32 %v4850, %v4938
        %v4940 = vpop.f32.mrf.mxu0
        %v4941 = vadd.f32 %v4852, %v4940
        %4942 = vmatmul.bf16.gmra.mxu0 %v4062
        %v4943 = vpop.f32.mrf.mxu0
        %v4944 = vadd.f32 %v4855, %v4943
        %v4945 = vpop.f32.mrf.mxu0
        %v4946 = vadd.f32 %v4857, %v4945
        %4947 = vmatmul.bf16.gmra.mxu0 %v4071
        %v4948 = vpop.f32.mrf.mxu0
        %v4949 = vadd.f32 %v4860, %v4948
        %v4950 = vpop.f32.mrf.mxu0
        %v4951 = vadd.f32 %v4862, %v4950
        %4952 = vmatmul.bf16.gmra.mxu0 %v4080
        %v4953 = vpop.f32.mrf.mxu0
        %v4954 = vadd.f32 %v4865, %v4953
        %v4955 = vpop.f32.mrf.mxu0
        %v4956 = vadd.f32 %v4867, %v4955
        %4957 = vmatmul.bf16.gmra.mxu0 %v4089
        %v4958 = vpop.f32.mrf.mxu0
        %v4959 = vadd.f32 %v4870, %v4958
        %v4960 = vpop.f32.mrf.mxu0
        %v4961 = vadd.f32 %v4872, %v4960
        %4962 = vmatmul.bf16.gmra.mxu0 %v4098
        %v4963 = vpop.f32.mrf.mxu0
        %v4964 = vadd.f32 %v4875, %v4963
        %v4965 = vpop.f32.mrf.mxu0
        %v4966 = vadd.f32 %v4877, %v4965
        %4967 = vmatmul.bf16.gmra.mxu0 %v4107
        %v4968 = vpop.f32.mrf.mxu0
        %v4969 = vadd.f32 %v4880, %v4968
        %v4970 = vpop.f32.mrf.mxu0
        %v4971 = vadd.f32 %v4882, %v4970
        %4972 = vmatmul.bf16.gmra.mxu0 %v4116
        %v4973 = vpop.f32.mrf.mxu0
        %v4974 = vadd.f32 %v4885, %v4973
        %v4975 = vpop.f32.mrf.mxu0
        %v4976 = vadd.f32 %v4887, %v4975
        %4977 = vmatmul.bf16.gmra.mxu0 %v4125
        %v4978 = vpop.f32.mrf.mxu0
        %v4979 = vadd.f32 %v4890, %v4978
        %v4980 = vpop.f32.mrf.mxu0
        %v4981 = vadd.f32 %v4892, %v4980
        %4982 = vmatmul.bf16.gmra.mxu0 %v4134
        %v4983 = vpop.f32.mrf.mxu0
        %v4984 = vadd.f32 %v4895, %v4983
        %v4985 = vpop.f32.mrf.mxu0
        %v4986 = vadd.f32 %v4897, %v4985
        %4987 = vmatmul.bf16.gmra.mxu0 %v4143
        %v4988 = vpop.f32.mrf.mxu0
        %v4989 = vadd.f32 %v4900, %v4988
        %v4990 = vpop.f32.mrf.mxu0
        %v4991 = vadd.f32 %v4902, %v4990
        %4992 = vdwg.mxu0
        %4993 = vmatpush.bf16.msra.mxu0 %v4613
        %4994 = vmatpush.bf16.msra.mxu0 %v4612
        %4995 = vmatpush.bf16.msra.mxu0 %v4611
        %4996 = vmatpush.bf16.msra.mxu0 %v4610
        %4997 = vmatpush.bf16.msra.mxu0 %v4609
        %4998 = vmatpush.bf16.msra.mxu0 %v4608
        %4999 = vmatpush.bf16.msra.mxu0 %v4607
        %5000 = vmatpush.bf16.msra.mxu0 %v4606
        %5001 = vmatmul.bf16.gmra.mxu0 %v4009
        %v5002 = vpop.f32.mrf.mxu0
        %v5003 = vadd.f32 %v4914, %v5002
        %v5004 = vpop.f32.mrf.mxu0
        %v5005 = vadd.f32 %v4916, %v5004
        %5006 = vmatmul.bf16.gmra.mxu0 %v4018
        %v5007 = vpop.f32.mrf.mxu0
        %v5008 = vadd.f32 %v4919, %v5007
        %v5009 = vpop.f32.mrf.mxu0
        %v5010 = vadd.f32 %v4921, %v5009
        %5011 = vmatmul.bf16.gmra.mxu0 %v4027
        %v5012 = vpop.f32.mrf.mxu0
        %v5013 = vadd.f32 %v4924, %v5012
        %v5014 = vpop.f32.mrf.mxu0
        %v5015 = vadd.f32 %v4926, %v5014
        %5016 = vmatmul.bf16.gmra.mxu0 %v4036
        %v5017 = vpop.f32.mrf.mxu0
        %v5018 = vadd.f32 %v4929, %v5017
        %v5019 = vpop.f32.mrf.mxu0
        %v5020 = vadd.f32 %v4931, %v5019
        %5021 = vmatmul.bf16.gmra.mxu0 %v4045
        %v5022 = vpop.f32.mrf.mxu0
        %v5023 = vadd.f32 %v4934, %v5022
        %v5024 = vpop.f32.mrf.mxu0
        %v5025 = vadd.f32 %v4936, %v5024
        %5026 = vmatmul.bf16.gmra.mxu0 %v4054
        %v5027 = vpop.f32.mrf.mxu0
        %v5028 = vadd.f32 %v4939, %v5027
        %v5029 = vpop.f32.mrf.mxu0
        %v5030 = vadd.f32 %v4941, %v5029
        %5031 = vmatmul.bf16.gmra.mxu0 %v4063
        %v5032 = vpop.f32.mrf.mxu0
        %v5033 = vadd.f32 %v4944, %v5032
        %v5034 = vpop.f32.mrf.mxu0
        %v5035 = vadd.f32 %v4946, %v5034
        %5036 = vmatmul.bf16.gmra.mxu0 %v4072
        %v5037 = vpop.f32.mrf.mxu0
        %v5038 = vadd.f32 %v4949, %v5037
        %v5039 = vpop.f32.mrf.mxu0
        %v5040 = vadd.f32 %v4951, %v5039
        %5041 = vmatmul.bf16.gmra.mxu0 %v4081
        %v5042 = vpop.f32.mrf.mxu0
        %v5043 = vadd.f32 %v4954, %v5042
        %v5044 = vpop.f32.mrf.mxu0
        %v5045 = vadd.f32 %v4956, %v5044
        %5046 = vmatmul.bf16.gmra.mxu0 %v4090
        %v5047 = vpop.f32.mrf.mxu0
        %v5048 = vadd.f32 %v4959, %v5047
        %v5049 = vpop.f32.mrf.mxu0
        %v5050 = vadd.f32 %v4961, %v5049
        %5051 = vmatmul.bf16.gmra.mxu0 %v4099
        %v5052 = vpop.f32.mrf.mxu0
        %v5053 = vadd.f32 %v4964, %v5052
        %v5054 = vpop.f32.mrf.mxu0
        %v5055 = vadd.f32 %v4966, %v5054
        %5056 = vmatmul.bf16.gmra.mxu0 %v4108
        %v5057 = vpop.f32.mrf.mxu0
        %v5058 = vadd.f32 %v4969, %v5057
        %v5059 = vpop.f32.mrf.mxu0
        %v5060 = vadd.f32 %v4971, %v5059
        %5061 = vmatmul.bf16.gmra.mxu0 %v4117
        %v5062 = vpop.f32.mrf.mxu0
        %v5063 = vadd.f32 %v4974, %v5062
        %v5064 = vpop.f32.mrf.mxu0
        %v5065 = vadd.f32 %v4976, %v5064
        %5066 = vmatmul.bf16.gmra.mxu0 %v4126
        %v5067 = vpop.f32.mrf.mxu0
        %v5068 = vadd.f32 %v4979, %v5067
        %v5069 = vpop.f32.mrf.mxu0
        %v5070 = vadd.f32 %v4981, %v5069
        %5071 = vmatmul.bf16.gmra.mxu0 %v4135
        %v5072 = vpop.f32.mrf.mxu0
        %v5073 = vadd.f32 %v4984, %v5072
        %v5074 = vpop.f32.mrf.mxu0
        %v5075 = vadd.f32 %v4986, %v5074
        %5076 = vmatmul.bf16.gmra.mxu0 %v4144
        %v5077 = vpop.f32.mrf.mxu0
        %v5078 = vadd.f32 %v4989, %v5077
        %v5079 = vpop.f32.mrf.mxu0
        %v5080 = vadd.f32 %v4991, %v5079
        %5081 = vdwg.mxu0
        %5082 = vmatpush.bf16.msra.mxu0 %v4621
        %5083 = vmatpush.bf16.msra.mxu0 %v4620
        %5084 = vmatpush.bf16.msra.mxu0 %v4619
        %5085 = vmatpush.bf16.msra.mxu0 %v4618
        %5086 = vmatpush.bf16.msra.mxu0 %v4617
        %5087 = vmatpush.bf16.msra.mxu0 %v4616
        %5088 = vmatpush.bf16.msra.mxu0 %v4615
        %5089 = vmatpush.bf16.msra.mxu0 %v4614
        %5090 = vmatmul.bf16.gmra.mxu0 %v4010
        %v5091 = vpop.f32.mrf.mxu0
        %v5092 = vadd.f32 %v5003, %v5091
        %v5093 = vpop.f32.mrf.mxu0
        %v5094 = vadd.f32 %v5005, %v5093
        %5095 = vmatmul.bf16.gmra.mxu0 %v4019
        %v5096 = vpop.f32.mrf.mxu0
        %v5097 = vadd.f32 %v5008, %v5096
        %v5098 = vpop.f32.mrf.mxu0
        %v5099 = vadd.f32 %v5010, %v5098
        %5100 = vmatmul.bf16.gmra.mxu0 %v4028
        %v5101 = vpop.f32.mrf.mxu0
        %v5102 = vadd.f32 %v5013, %v5101
        %v5103 = vpop.f32.mrf.mxu0
        %v5104 = vadd.f32 %v5015, %v5103
        %5105 = vmatmul.bf16.gmra.mxu0 %v4037
        %v5106 = vpop.f32.mrf.mxu0
        %v5107 = vadd.f32 %v5018, %v5106
        %v5108 = vpop.f32.mrf.mxu0
        %v5109 = vadd.f32 %v5020, %v5108
        %5110 = vmatmul.bf16.gmra.mxu0 %v4046
        %v5111 = vpop.f32.mrf.mxu0
        %v5112 = vadd.f32 %v5023, %v5111
        %v5113 = vpop.f32.mrf.mxu0
        %v5114 = vadd.f32 %v5025, %v5113
        %5115 = vmatmul.bf16.gmra.mxu0 %v4055
        %v5116 = vpop.f32.mrf.mxu0
        %v5117 = vadd.f32 %v5028, %v5116
        %v5118 = vpop.f32.mrf.mxu0
        %v5119 = vadd.f32 %v5030, %v5118
        %5120 = vmatmul.bf16.gmra.mxu0 %v4064
        %v5121 = vpop.f32.mrf.mxu0
        %v5122 = vadd.f32 %v5033, %v5121
        %v5123 = vpop.f32.mrf.mxu0
        %v5124 = vadd.f32 %v5035, %v5123
        %5125 = vmatmul.bf16.gmra.mxu0 %v4073
        %v5126 = vpop.f32.mrf.mxu0
        %v5127 = vadd.f32 %v5038, %v5126
        %v5128 = vpop.f32.mrf.mxu0
        %v5129 = vadd.f32 %v5040, %v5128
        %5130 = vmatmul.bf16.gmra.mxu0 %v4082
        %v5131 = vpop.f32.mrf.mxu0
        %v5132 = vadd.f32 %v5043, %v5131
        %v5133 = vpop.f32.mrf.mxu0
        %v5134 = vadd.f32 %v5045, %v5133
        %5135 = vmatmul.bf16.gmra.mxu0 %v4091
        %v5136 = vpop.f32.mrf.mxu0
        %v5137 = vadd.f32 %v5048, %v5136
        %v5138 = vpop.f32.mrf.mxu0
        %v5139 = vadd.f32 %v5050, %v5138
        %5140 = vmatmul.bf16.gmra.mxu0 %v4100
        %v5141 = vpop.f32.mrf.mxu0
        %v5142 = vadd.f32 %v5053, %v5141
        %v5143 = vpop.f32.mrf.mxu0
        %v5144 = vadd.f32 %v5055, %v5143
        %5145 = vmatmul.bf16.gmra.mxu0 %v4109
        %v5146 = vpop.f32.mrf.mxu0
        %v5147 = vadd.f32 %v5058, %v5146
        %v5148 = vpop.f32.mrf.mxu0
        %v5149 = vadd.f32 %v5060, %v5148
        %5150 = vmatmul.bf16.gmra.mxu0 %v4118
        %v5151 = vpop.f32.mrf.mxu0
        %v5152 = vadd.f32 %v5063, %v5151
        %v5153 = vpop.f32.mrf.mxu0
        %v5154 = vadd.f32 %v5065, %v5153
        %5155 = vmatmul.bf16.gmra.mxu0 %v4127
        %v5156 = vpop.f32.mrf.mxu0
        %v5157 = vadd.f32 %v5068, %v5156
        %v5158 = vpop.f32.mrf.mxu0
        %v5159 = vadd.f32 %v5070, %v5158
        %5160 = vmatmul.bf16.gmra.mxu0 %v4136
        %v5161 = vpop.f32.mrf.mxu0
        %v5162 = vadd.f32 %v5073, %v5161
        %v5163 = vpop.f32.mrf.mxu0
        %v5164 = vadd.f32 %v5075, %v5163
        %5165 = vmatmul.bf16.gmra.mxu0 %v4145
        %v5166 = vpop.f32.mrf.mxu0
        %v5167 = vadd.f32 %v5078, %v5166
        %v5168 = vpop.f32.mrf.mxu0
        %v5169 = vadd.f32 %v5080, %v5168
        %5170 = vdwg.mxu0
        %5171 = vmatpush.bf16.msra.mxu0 %v4629
        %5172 = vmatpush.bf16.msra.mxu0 %v4628
        %5173 = vmatpush.bf16.msra.mxu0 %v4627
        %5174 = vmatpush.bf16.msra.mxu0 %v4626
        %5175 = vmatpush.bf16.msra.mxu0 %v4625
        %5176 = vmatpush.bf16.msra.mxu0 %v4624
        %5177 = vmatpush.bf16.msra.mxu0 %v4623
        %5178 = vmatpush.bf16.msra.mxu0 %v4622
        %5179 = vmatmul.bf16.gmra.mxu0 %v4011
        %v5180 = vpop.f32.mrf.mxu0
        %v5181 = vadd.f32 %v5092, %v5180
        %v5182 = vpop.f32.mrf.mxu0
        %v5183 = vadd.f32 %v5094, %v5182
        %5184 = vmatmul.bf16.gmra.mxu0 %v4020
        %v5185 = vpop.f32.mrf.mxu0
        %v5186 = vadd.f32 %v5097, %v5185
        %v5187 = vpop.f32.mrf.mxu0
        %v5188 = vadd.f32 %v5099, %v5187
        %5189 = vmatmul.bf16.gmra.mxu0 %v4029
        %v5190 = vpop.f32.mrf.mxu0
        %v5191 = vadd.f32 %v5102, %v5190
        %v5192 = vpop.f32.mrf.mxu0
        %v5193 = vadd.f32 %v5104, %v5192
        %5194 = vmatmul.bf16.gmra.mxu0 %v4038
        %v5195 = vpop.f32.mrf.mxu0
        %v5196 = vadd.f32 %v5107, %v5195
        %v5197 = vpop.f32.mrf.mxu0
        %v5198 = vadd.f32 %v5109, %v5197
        %5199 = vmatmul.bf16.gmra.mxu0 %v4047
        %v5200 = vpop.f32.mrf.mxu0
        %v5201 = vadd.f32 %v5112, %v5200
        %v5202 = vpop.f32.mrf.mxu0
        %v5203 = vadd.f32 %v5114, %v5202
        %5204 = vmatmul.bf16.gmra.mxu0 %v4056
        %v5205 = vpop.f32.mrf.mxu0
        %v5206 = vadd.f32 %v5117, %v5205
        %v5207 = vpop.f32.mrf.mxu0
        %v5208 = vadd.f32 %v5119, %v5207
        %5209 = vmatmul.bf16.gmra.mxu0 %v4065
        %v5210 = vpop.f32.mrf.mxu0
        %v5211 = vadd.f32 %v5122, %v5210
        %v5212 = vpop.f32.mrf.mxu0
        %v5213 = vadd.f32 %v5124, %v5212
        %5214 = vmatmul.bf16.gmra.mxu0 %v4074
        %v5215 = vpop.f32.mrf.mxu0
        %v5216 = vadd.f32 %v5127, %v5215
        %v5217 = vpop.f32.mrf.mxu0
        %v5218 = vadd.f32 %v5129, %v5217
        %5219 = vmatmul.bf16.gmra.mxu0 %v4083
        %v5220 = vpop.f32.mrf.mxu0
        %v5221 = vadd.f32 %v5132, %v5220
        %v5222 = vpop.f32.mrf.mxu0
        %v5223 = vadd.f32 %v5134, %v5222
        %5224 = vmatmul.bf16.gmra.mxu0 %v4092
        %v5225 = vpop.f32.mrf.mxu0
        %v5226 = vadd.f32 %v5137, %v5225
        %v5227 = vpop.f32.mrf.mxu0
        %v5228 = vadd.f32 %v5139, %v5227
        %5229 = vmatmul.bf16.gmra.mxu0 %v4101
        %v5230 = vpop.f32.mrf.mxu0
        %v5231 = vadd.f32 %v5142, %v5230
        %v5232 = vpop.f32.mrf.mxu0
        %v5233 = vadd.f32 %v5144, %v5232
        %5234 = vmatmul.bf16.gmra.mxu0 %v4110
        %v5235 = vpop.f32.mrf.mxu0
        %v5236 = vadd.f32 %v5147, %v5235
        %v5237 = vpop.f32.mrf.mxu0
        %v5238 = vadd.f32 %v5149, %v5237
        %5239 = vmatmul.bf16.gmra.mxu0 %v4119
        %v5240 = vpop.f32.mrf.mxu0
        %v5241 = vadd.f32 %v5152, %v5240
        %v5242 = vpop.f32.mrf.mxu0
        %v5243 = vadd.f32 %v5154, %v5242
        %5244 = vmatmul.bf16.gmra.mxu0 %v4128
        %v5245 = vpop.f32.mrf.mxu0
        %v5246 = vadd.f32 %v5157, %v5245
        %v5247 = vpop.f32.mrf.mxu0
        %v5248 = vadd.f32 %v5159, %v5247
        %5249 = vmatmul.bf16.gmra.mxu0 %v4137
        %v5250 = vpop.f32.mrf.mxu0
        %v5251 = vadd.f32 %v5162, %v5250
        %v5252 = vpop.f32.mrf.mxu0
        %v5253 = vadd.f32 %v5164, %v5252
        %5254 = vmatmul.bf16.gmra.mxu0 %v4146
        %v5255 = vpop.f32.mrf.mxu0
        %v5256 = vadd.f32 %v5167, %v5255
        %v5257 = vpop.f32.mrf.mxu0
        %v5258 = vadd.f32 %v5169, %v5257
        %5259 = vdwg.mxu0
        %5260 = vmatpush.bf16.msra.mxu0 %v4637
        %5261 = vmatpush.bf16.msra.mxu0 %v4636
        %5262 = vmatpush.bf16.msra.mxu0 %v4635
        %5263 = vmatpush.bf16.msra.mxu0 %v4634
        %5264 = vmatpush.bf16.msra.mxu0 %v4633
        %5265 = vmatpush.bf16.msra.mxu0 %v4632
        %5266 = vmatpush.bf16.msra.mxu0 %v4631
        %5267 = vmatpush.bf16.msra.mxu0 %v4630
        %5268 = vmatmul.bf16.gmra.mxu0 %v4012
        %v5269 = vpop.f32.mrf.mxu0
        %v5270 = vadd.f32 %v5181, %v5269
        %v5271 = vpop.f32.mrf.mxu0
        %v5272 = vadd.f32 %v5183, %v5271
        %5273 = vmatmul.bf16.gmra.mxu0 %v4021
        %v5274 = vpop.f32.mrf.mxu0
        %v5275 = vadd.f32 %v5186, %v5274
        %v5276 = vpop.f32.mrf.mxu0
        %v5277 = vadd.f32 %v5188, %v5276
        %5278 = vmatmul.bf16.gmra.mxu0 %v4030
        %v5279 = vpop.f32.mrf.mxu0
        %v5280 = vadd.f32 %v5191, %v5279
        %v5281 = vpop.f32.mrf.mxu0
        %v5282 = vadd.f32 %v5193, %v5281
        %5283 = vmatmul.bf16.gmra.mxu0 %v4039
        %v5284 = vpop.f32.mrf.mxu0
        %v5285 = vadd.f32 %v5196, %v5284
        %v5286 = vpop.f32.mrf.mxu0
        %v5287 = vadd.f32 %v5198, %v5286
        %5288 = vmatmul.bf16.gmra.mxu0 %v4048
        %v5289 = vpop.f32.mrf.mxu0
        %v5290 = vadd.f32 %v5201, %v5289
        %v5291 = vpop.f32.mrf.mxu0
        %v5292 = vadd.f32 %v5203, %v5291
        %5293 = vmatmul.bf16.gmra.mxu0 %v4057
        %v5294 = vpop.f32.mrf.mxu0
        %v5295 = vadd.f32 %v5206, %v5294
        %v5296 = vpop.f32.mrf.mxu0
        %v5297 = vadd.f32 %v5208, %v5296
        %5298 = vmatmul.bf16.gmra.mxu0 %v4066
        %v5299 = vpop.f32.mrf.mxu0
        %v5300 = vadd.f32 %v5211, %v5299
        %v5301 = vpop.f32.mrf.mxu0
        %v5302 = vadd.f32 %v5213, %v5301
        %5303 = vmatmul.bf16.gmra.mxu0 %v4075
        %v5304 = vpop.f32.mrf.mxu0
        %v5305 = vadd.f32 %v5216, %v5304
        %v5306 = vpop.f32.mrf.mxu0
        %v5307 = vadd.f32 %v5218, %v5306
        %5308 = vmatmul.bf16.gmra.mxu0 %v4084
        %v5309 = vpop.f32.mrf.mxu0
        %v5310 = vadd.f32 %v5221, %v5309
        %v5311 = vpop.f32.mrf.mxu0
        %v5312 = vadd.f32 %v5223, %v5311
        %5313 = vmatmul.bf16.gmra.mxu0 %v4093
        %v5314 = vpop.f32.mrf.mxu0
        %v5315 = vadd.f32 %v5226, %v5314
        %v5316 = vpop.f32.mrf.mxu0
        %v5317 = vadd.f32 %v5228, %v5316
        %5318 = vmatmul.bf16.gmra.mxu0 %v4102
        %v5319 = vpop.f32.mrf.mxu0
        %v5320 = vadd.f32 %v5231, %v5319
        %v5321 = vpop.f32.mrf.mxu0
        %v5322 = vadd.f32 %v5233, %v5321
        %5323 = vmatmul.bf16.gmra.mxu0 %v4111
        %v5324 = vpop.f32.mrf.mxu0
        %v5325 = vadd.f32 %v5236, %v5324
        %v5326 = vpop.f32.mrf.mxu0
        %v5327 = vadd.f32 %v5238, %v5326
        %5328 = vmatmul.bf16.gmra.mxu0 %v4120
        %v5329 = vpop.f32.mrf.mxu0
        %v5330 = vadd.f32 %v5241, %v5329
        %v5331 = vpop.f32.mrf.mxu0
        %v5332 = vadd.f32 %v5243, %v5331
        %5333 = vmatmul.bf16.gmra.mxu0 %v4129
        %v5334 = vpop.f32.mrf.mxu0
        %v5335 = vadd.f32 %v5246, %v5334
        %v5336 = vpop.f32.mrf.mxu0
        %v5337 = vadd.f32 %v5248, %v5336
        %5338 = vmatmul.bf16.gmra.mxu0 %v4138
        %v5339 = vpop.f32.mrf.mxu0
        %v5340 = vadd.f32 %v5251, %v5339
        %v5341 = vpop.f32.mrf.mxu0
        %v5342 = vadd.f32 %v5253, %v5341
        %5343 = vmatmul.bf16.gmra.mxu0 %v4147
        %v5344 = vpop.f32.mrf.mxu0
        %v5345 = vadd.f32 %v5256, %v5344
        %v5346 = vpop.f32.mrf.mxu0
        %v5347 = vadd.f32 %v5258, %v5346
        %5348 = vdwg.mxu0
        %5349 = vmatpush.bf16.msra.mxu0 %v4645
        %5350 = vmatpush.bf16.msra.mxu0 %v4644
        %5351 = vmatpush.bf16.msra.mxu0 %v4643
        %5352 = vmatpush.bf16.msra.mxu0 %v4642
        %5353 = vmatpush.bf16.msra.mxu0 %v4641
        %5354 = vmatpush.bf16.msra.mxu0 %v4640
        %5355 = vmatpush.bf16.msra.mxu0 %v4639
        %5356 = vmatpush.bf16.msra.mxu0 %v4638
        %5357 = vmatmul.bf16.gmra.mxu0 %v4013
        %v5358 = vpop.f32.mrf.mxu0
        %v5359 = vadd.f32 %v5270, %v5358
        %v5360 = vpop.f32.mrf.mxu0
        %v5361 = vadd.f32 %v5272, %v5360
        %5362 = vmatmul.bf16.gmra.mxu0 %v4022
        %v5363 = vpop.f32.mrf.mxu0
        %v5364 = vadd.f32 %v5275, %v5363
        %v5365 = vpop.f32.mrf.mxu0
        %v5366 = vadd.f32 %v5277, %v5365
        %5367 = vmatmul.bf16.gmra.mxu0 %v4031
        %v5368 = vpop.f32.mrf.mxu0
        %v5369 = vadd.f32 %v5280, %v5368
        %v5370 = vpop.f32.mrf.mxu0
        %v5371 = vadd.f32 %v5282, %v5370
        %5372 = vmatmul.bf16.gmra.mxu0 %v4040
        %v5373 = vpop.f32.mrf.mxu0
        %v5374 = vadd.f32 %v5285, %v5373
        %v5375 = vpop.f32.mrf.mxu0
        %v5376 = vadd.f32 %v5287, %v5375
        %5377 = vmatmul.bf16.gmra.mxu0 %v4049
        %v5378 = vpop.f32.mrf.mxu0
        %v5379 = vadd.f32 %v5290, %v5378
        %v5380 = vpop.f32.mrf.mxu0
        %v5381 = vadd.f32 %v5292, %v5380
        %5382 = vmatmul.bf16.gmra.mxu0 %v4058
        %v5383 = vpop.f32.mrf.mxu0
        %v5384 = vadd.f32 %v5295, %v5383
        %v5385 = vpop.f32.mrf.mxu0
        %v5386 = vadd.f32 %v5297, %v5385
        %5387 = vmatmul.bf16.gmra.mxu0 %v4067
        %v5388 = vpop.f32.mrf.mxu0
        %v5389 = vadd.f32 %v5300, %v5388
        %v5390 = vpop.f32.mrf.mxu0
        %v5391 = vadd.f32 %v5302, %v5390
        %5392 = vmatmul.bf16.gmra.mxu0 %v4076
        %v5393 = vpop.f32.mrf.mxu0
        %v5394 = vadd.f32 %v5305, %v5393
        %v5395 = vpop.f32.mrf.mxu0
        %v5396 = vadd.f32 %v5307, %v5395
        %5397 = vmatmul.bf16.gmra.mxu0 %v4085
        %v5398 = vpop.f32.mrf.mxu0
        %v5399 = vadd.f32 %v5310, %v5398
        %v5400 = vpop.f32.mrf.mxu0
        %v5401 = vadd.f32 %v5312, %v5400
        %5402 = vmatmul.bf16.gmra.mxu0 %v4094
        %v5403 = vpop.f32.mrf.mxu0
        %v5404 = vadd.f32 %v5315, %v5403
        %v5405 = vpop.f32.mrf.mxu0
        %v5406 = vadd.f32 %v5317, %v5405
        %5407 = vmatmul.bf16.gmra.mxu0 %v4103
        %v5408 = vpop.f32.mrf.mxu0
        %v5409 = vadd.f32 %v5320, %v5408
        %v5410 = vpop.f32.mrf.mxu0
        %v5411 = vadd.f32 %v5322, %v5410
        %5412 = vmatmul.bf16.gmra.mxu0 %v4112
        %v5413 = vpop.f32.mrf.mxu0
        %v5414 = vadd.f32 %v5325, %v5413
        %v5415 = vpop.f32.mrf.mxu0
        %v5416 = vadd.f32 %v5327, %v5415
        %5417 = vmatmul.bf16.gmra.mxu0 %v4121
        %v5418 = vpop.f32.mrf.mxu0
        %v5419 = vadd.f32 %v5330, %v5418
        %v5420 = vpop.f32.mrf.mxu0
        %v5421 = vadd.f32 %v5332, %v5420
        %5422 = vmatmul.bf16.gmra.mxu0 %v4130
        %v5423 = vpop.f32.mrf.mxu0
        %v5424 = vadd.f32 %v5335, %v5423
        %v5425 = vpop.f32.mrf.mxu0
        %v5426 = vadd.f32 %v5337, %v5425
        %5427 = vmatmul.bf16.gmra.mxu0 %v4139
        %v5428 = vpop.f32.mrf.mxu0
        %v5429 = vadd.f32 %v5340, %v5428
        %v5430 = vpop.f32.mrf.mxu0
        %v5431 = vadd.f32 %v5342, %v5430
        %5432 = vmatmul.bf16.gmra.mxu0 %v4148
        %v5433 = vpop.f32.mrf.mxu0
        %v5434 = vadd.f32 %v5345, %v5433
        %v5435 = vpop.f32.mrf.mxu0
        %v5436 = vadd.f32 %v5347, %v5435
        %5437 = vdwg.mxu0
        %5438 = vmatpush.bf16.msra.mxu0 %v4653
        %5439 = vmatpush.bf16.msra.mxu0 %v4652
        %5440 = vmatpush.bf16.msra.mxu0 %v4651
        %5441 = vmatpush.bf16.msra.mxu0 %v4650
        %5442 = vmatpush.bf16.msra.mxu0 %v4649
        %5443 = vmatpush.bf16.msra.mxu0 %v4648
        %5444 = vmatpush.bf16.msra.mxu0 %v4647
        %5445 = vmatpush.bf16.msra.mxu0 %v4646
        %5446 = vmatmul.bf16.gmra.mxu0 %v4014
        %v5447 = vpop.f32.mrf.mxu0
        %v5448 = vadd.f32 %v5359, %v5447
        %v5449 = vpop.f32.mrf.mxu0
        %v5450 = vadd.f32 %v5361, %v5449
        %5451 = vmatmul.bf16.gmra.mxu0 %v4023
        %v5452 = vpop.f32.mrf.mxu0
        %v5453 = vadd.f32 %v5364, %v5452
        %v5454 = vpop.f32.mrf.mxu0
        %v5455 = vadd.f32 %v5366, %v5454
        %5456 = vmatmul.bf16.gmra.mxu0 %v4032
        %v5457 = vpop.f32.mrf.mxu0
        %v5458 = vadd.f32 %v5369, %v5457
        %v5459 = vpop.f32.mrf.mxu0
        %v5460 = vadd.f32 %v5371, %v5459
        %5461 = vmatmul.bf16.gmra.mxu0 %v4041
        %v5462 = vpop.f32.mrf.mxu0
        %v5463 = vadd.f32 %v5374, %v5462
        %v5464 = vpop.f32.mrf.mxu0
        %v5465 = vadd.f32 %v5376, %v5464
        %5466 = vmatmul.bf16.gmra.mxu0 %v4050
        %v5467 = vpop.f32.mrf.mxu0
        %v5468 = vadd.f32 %v5379, %v5467
        %v5469 = vpop.f32.mrf.mxu0
        %v5470 = vadd.f32 %v5381, %v5469
        %5471 = vmatmul.bf16.gmra.mxu0 %v4059
        %v5472 = vpop.f32.mrf.mxu0
        %v5473 = vadd.f32 %v5384, %v5472
        %v5474 = vpop.f32.mrf.mxu0
        %v5475 = vadd.f32 %v5386, %v5474
        %5476 = vmatmul.bf16.gmra.mxu0 %v4068
        %v5477 = vpop.f32.mrf.mxu0
        %v5478 = vadd.f32 %v5389, %v5477
        %v5479 = vpop.f32.mrf.mxu0
        %v5480 = vadd.f32 %v5391, %v5479
        %5481 = vmatmul.bf16.gmra.mxu0 %v4077
        %v5482 = vpop.f32.mrf.mxu0
        %v5483 = vadd.f32 %v5394, %v5482
        %v5484 = vpop.f32.mrf.mxu0
        %v5485 = vadd.f32 %v5396, %v5484
        %5486 = vmatmul.bf16.gmra.mxu0 %v4086
        %v5487 = vpop.f32.mrf.mxu0
        %v5488 = vadd.f32 %v5399, %v5487
        %v5489 = vpop.f32.mrf.mxu0
        %v5490 = vadd.f32 %v5401, %v5489
        %5491 = vmatmul.bf16.gmra.mxu0 %v4095
        %v5492 = vpop.f32.mrf.mxu0
        %v5493 = vadd.f32 %v5404, %v5492
        %v5494 = vpop.f32.mrf.mxu0
        %v5495 = vadd.f32 %v5406, %v5494
        %5496 = vmatmul.bf16.gmra.mxu0 %v4104
        %v5497 = vpop.f32.mrf.mxu0
        %v5498 = vadd.f32 %v5409, %v5497
        %v5499 = vpop.f32.mrf.mxu0
        %v5500 = vadd.f32 %v5411, %v5499
        %5501 = vmatmul.bf16.gmra.mxu0 %v4113
        %v5502 = vpop.f32.mrf.mxu0
        %v5503 = vadd.f32 %v5414, %v5502
        %v5504 = vpop.f32.mrf.mxu0
        %v5505 = vadd.f32 %v5416, %v5504
        %5506 = vmatmul.bf16.gmra.mxu0 %v4122
        %v5507 = vpop.f32.mrf.mxu0
        %v5508 = vadd.f32 %v5419, %v5507
        %v5509 = vpop.f32.mrf.mxu0
        %v5510 = vadd.f32 %v5421, %v5509
        %5511 = vmatmul.bf16.gmra.mxu0 %v4131
        %v5512 = vpop.f32.mrf.mxu0
        %v5513 = vadd.f32 %v5424, %v5512
        %v5514 = vpop.f32.mrf.mxu0
        %v5515 = vadd.f32 %v5426, %v5514
        %5516 = vmatmul.bf16.gmra.mxu0 %v4140
        %v5517 = vpop.f32.mrf.mxu0
        %v5518 = vadd.f32 %v5429, %v5517
        %v5519 = vpop.f32.mrf.mxu0
        %v5520 = vadd.f32 %v5431, %v5519
        %5521 = vmatmul.bf16.gmra.mxu0 %v4149
        %v5522 = vpop.f32.mrf.mxu0
        %v5523 = vadd.f32 %v5434, %v5522
        %v5524 = vpop.f32.mrf.mxu0
        %v5525 = vadd.f32 %v5436, %v5524
        %5526 = vdwg.mxu0
        %v5527 = vld [vmem:[%s2] sm:$0x1]
        %vm5528 = vcmask 523264
        %v5529 = vsel %vm5528, %v5448, 0.0
        %v5530 = vsel %vm5528, %v5450, 0.0
        %v5531 = vadd.f32 %v5529, %v5530
        %v5532 = vsel %vm5528, %v5453, 0.0
        %v5533 = vadd.f32 %v5531, %v5532
        %v5534 = vsel %vm5528, %v5455, 0.0
        %v5535 = vadd.f32 %v5533, %v5534
        %v5536 = vsel %vm5528, %v5458, 0.0
        %v5537 = vadd.f32 %v5535, %v5536
        %v5538 = vsel %vm5528, %v5460, 0.0
        %v5539 = vadd.f32 %v5537, %v5538
        %v5540 = vsel %vm5528, %v5463, 0.0
        %v5541 = vadd.f32 %v5539, %v5540
        %v5542 = vsel %vm5528, %v5465, 0.0
        %v5543 = vadd.f32 %v5541, %v5542
        %v5544 = vsel %vm5528, %v5468, 0.0
        %v5545 = vadd.f32 %v5543, %v5544
        %v5546 = vsel %vm5528, %v5470, 0.0
        %v5547 = vadd.f32 %v5545, %v5546
        %v5548 = vsel %vm5528, %v5473, 0.0
        %v5549 = vadd.f32 %v5547, %v5548
        %v5550 = vsel %vm5528, %v5475, 0.0
        %v5551 = vadd.f32 %v5549, %v5550
        %v5552 = vsel %vm5528, %v5478, 0.0
        %v5553 = vadd.f32 %v5551, %v5552
        %v5554 = vsel %vm5528, %v5480, 0.0
        %v5555 = vadd.f32 %v5553, %v5554
        %v5556 = vsel %vm5528, %v5483, 0.0
        %v5557 = vadd.f32 %v5555, %v5556
        %v5558 = vsel %vm5528, %v5485, 0.0
        %v5559 = vadd.f32 %v5557, %v5558
        %v5560 = vsel %vm5528, %v5488, 0.0
        %v5561 = vadd.f32 %v5559, %v5560
        %v5562 = vsel %vm5528, %v5490, 0.0
        %v5563 = vadd.f32 %v5561, %v5562
        %v5564 = vsel %vm5528, %v5493, 0.0
        %v5565 = vadd.f32 %v5563, %v5564
        %v5566 = vsel %vm5528, %v5495, 0.0
        %v5567 = vadd.f32 %v5565, %v5566
        %v5568 = vsel %vm5528, %v5498, 0.0
        %v5569 = vadd.f32 %v5567, %v5568
        %v5570 = vsel %vm5528, %v5500, 0.0
        %v5571 = vadd.f32 %v5569, %v5570
        %v5572 = vsel %vm5528, %v5503, 0.0
        %v5573 = vadd.f32 %v5571, %v5572
        %v5574 = vsel %vm5528, %v5505, 0.0
        %v5575 = vadd.f32 %v5573, %v5574
        %v5576 = vsel %vm5528, %v5508, 0.0
        %v5577 = vadd.f32 %v5575, %v5576
        %v5578 = vsel %vm5528, %v5510, 0.0
        %v5579 = vadd.f32 %v5577, %v5578
        %v5580 = vsel %vm5528, %v5513, 0.0
        %v5581 = vadd.f32 %v5579, %v5580
        %v5582 = vsel %vm5528, %v5515, 0.0
        %v5583 = vadd.f32 %v5581, %v5582
        %v5584 = vsel %vm5528, %v5518, 0.0
        %v5585 = vadd.f32 %v5583, %v5584
        %v5586 = vsel %vm5528, %v5520, 0.0
        %v5587 = vadd.f32 %v5585, %v5586
        %v5588 = vsel %vm5528, %v5523, 0.0
        %v5589 = vadd.f32 %v5587, %v5588
        %v5590 = vsel %vm5528, %v5525, 0.0
        %v5591 = vadd.f32 %v5589, %v5590
        %v5592 = vrot.slane %v5591, 4
        %v5593 = vadd.f32 %v5591, %v5592
        %v5594 = vrot.slane %v5593, 2
        %v5595 = vadd.f32 %v5593, %v5594
        %v5596 = vrot.slane %v5595, 1
        %v5597 = vadd.f32 %v5595, %v5596
        %v5598 = vmul.f32 %v5448, %v5448
        %v5599 = vmul.f32 %v5450, %v5450
        %v5600 = vmul.f32 %v5453, %v5453
        %v5601 = vmul.f32 %v5455, %v5455
        %v5602 = vmul.f32 %v5458, %v5458
        %v5603 = vmul.f32 %v5460, %v5460
        %v5604 = vmul.f32 %v5463, %v5463
        %v5605 = vmul.f32 %v5465, %v5465
        %v5606 = vmul.f32 %v5468, %v5468
        %v5607 = vmul.f32 %v5470, %v5470
        %v5608 = vmul.f32 %v5473, %v5473
        %v5609 = vmul.f32 %v5475, %v5475
        %v5610 = vmul.f32 %v5478, %v5478
        %v5611 = vmul.f32 %v5480, %v5480
        %v5612 = vmul.f32 %v5483, %v5483
        %v5613 = vmul.f32 %v5485, %v5485
        %v5614 = vmul.f32 %v5488, %v5488
        %v5615 = vmul.f32 %v5490, %v5490
        %v5616 = vmul.f32 %v5493, %v5493
        %v5617 = vmul.f32 %v5495, %v5495
        %v5618 = vmul.f32 %v5498, %v5498
        %v5619 = vmul.f32 %v5500, %v5500
        %v5620 = vmul.f32 %v5503, %v5503
        %v5621 = vmul.f32 %v5505, %v5505
        %v5622 = vmul.f32 %v5508, %v5508
        %v5623 = vmul.f32 %v5510, %v5510
        %v5624 = vmul.f32 %v5513, %v5513
        %v5625 = vmul.f32 %v5515, %v5515
        %v5626 = vmul.f32 %v5518, %v5518
        %v5627 = vmul.f32 %v5520, %v5520
        %v5628 = vmul.f32 %v5523, %v5523
        %v5629 = vmul.f32 %v5525, %v5525
        %v5630 = vsel %vm5528, %v5598, 0.0
        %v5631 = vsel %vm5528, %v5599, 0.0
        %v5632 = vadd.f32 %v5630, %v5631
        %v5633 = vsel %vm5528, %v5600, 0.0
        %v5634 = vadd.f32 %v5632, %v5633
        %v5635 = vsel %vm5528, %v5601, 0.0
        %v5636 = vadd.f32 %v5634, %v5635
        %v5637 = vsel %vm5528, %v5602, 0.0
        %v5638 = vadd.f32 %v5636, %v5637
        %v5639 = vsel %vm5528, %v5603, 0.0
        %v5640 = vadd.f32 %v5638, %v5639
        %v5641 = vsel %vm5528, %v5604, 0.0
        %v5642 = vadd.f32 %v5640, %v5641
        %v5643 = vsel %vm5528, %v5605, 0.0
        %v5644 = vadd.f32 %v5642, %v5643
        %v5645 = vsel %vm5528, %v5606, 0.0
        %v5646 = vadd.f32 %v5644, %v5645
        %v5647 = vsel %vm5528, %v5607, 0.0
        %v5648 = vadd.f32 %v5646, %v5647
        %v5649 = vsel %vm5528, %v5608, 0.0
        %v5650 = vadd.f32 %v5648, %v5649
        %v5651 = vsel %vm5528, %v5609, 0.0
        %v5652 = vadd.f32 %v5650, %v5651
        %v5653 = vsel %vm5528, %v5610, 0.0
        %v5654 = vadd.f32 %v5652, %v5653
        %v5655 = vsel %vm5528, %v5611, 0.0
        %v5656 = vadd.f32 %v5654, %v5655
        %v5657 = vsel %vm5528, %v5612, 0.0
        %v5658 = vadd.f32 %v5656, %v5657
        %v5659 = vsel %vm5528, %v5613, 0.0
        %v5660 = vadd.f32 %v5658, %v5659
        %v5661 = vsel %vm5528, %v5614, 0.0
        %v5662 = vadd.f32 %v5660, %v5661
        %v5663 = vsel %vm5528, %v5615, 0.0
        %v5664 = vadd.f32 %v5662, %v5663
        %v5665 = vsel %vm5528, %v5616, 0.0
        %v5666 = vadd.f32 %v5664, %v5665
        %v5667 = vsel %vm5528, %v5617, 0.0
        %v5668 = vadd.f32 %v5666, %v5667
        %v5669 = vsel %vm5528, %v5618, 0.0
        %v5670 = vadd.f32 %v5668, %v5669
        %v5671 = vsel %vm5528, %v5619, 0.0
        %v5672 = vadd.f32 %v5670, %v5671
        %v5673 = vsel %vm5528, %v5620, 0.0
        %v5674 = vadd.f32 %v5672, %v5673
        %v5675 = vsel %vm5528, %v5621, 0.0
        %v5676 = vadd.f32 %v5674, %v5675
        %v5677 = vsel %vm5528, %v5622, 0.0
        %v5678 = vadd.f32 %v5676, %v5677
        %v5679 = vsel %vm5528, %v5623, 0.0
        %v5680 = vadd.f32 %v5678, %v5679
        %v5681 = vsel %vm5528, %v5624, 0.0
        %v5682 = vadd.f32 %v5680, %v5681
        %v5683 = vsel %vm5528, %v5625, 0.0
        %v5684 = vadd.f32 %v5682, %v5683
        %v5685 = vsel %vm5528, %v5626, 0.0
        %v5686 = vadd.f32 %v5684, %v5685
        %v5687 = vsel %vm5528, %v5627, 0.0
        %v5688 = vadd.f32 %v5686, %v5687
        %v5689 = vsel %vm5528, %v5628, 0.0
        %v5690 = vadd.f32 %v5688, %v5689
        %v5691 = vsel %vm5528, %v5629, 0.0
        %v5692 = vadd.f32 %v5690, %v5691
        %v5693 = vrot.slane %v5692, 4
        %v5694 = vadd.f32 %v5692, %v5693
        %v5695 = vrot.slane %v5694, 2
        %v5696 = vadd.f32 %v5694, %v5695
        %v5697 = vrot.slane %v5696, 1
        %v5698 = vadd.f32 %v5696, %v5697
        %v5699 = vmul.f32 %v5597, 2.0
        %v5700 = vmul.f32 %v5527, 256.0
        %v5701 = vadd.f32 %v5699, %v5700
        %v5702 = vmul.f32 %v5527, %v5701
        %v5703 = vadd.f32 %v5698, %v5702
        %v5704 = vadd.f32 %v5597, %v5700
        %v5705 = vlaneseq
        %v5706 = vshrl.u32 %v5705, 7
        %v5707 = vadd.s32 %v5706, 8
        %v5708 = vadd.s32 %v5706, 16
        %v5709 = vadd.s32 %v5706, 24
        %v5710 = vadd.s32 %v5706, 32
        %v5711 = vadd.s32 %v5706, 40
        %v5712 = vadd.s32 %v5706, 48
        %v5713 = vadd.s32 %v5706, 56
        %v5714 = vlaneseq
        %v5715 = vand.u32 %v5714, 127
        %v5716 = vshra.s32 %v5706, 2
        %v5717 = vshra.s32 %v5707, 2
        %v5718 = vshra.s32 %v5708, 2
        %v5719 = vshra.s32 %v5709, 2
        %v5720 = vshra.s32 %v5710, 2
        %v5721 = vshra.s32 %v5711, 2
        %v5722 = vshra.s32 %v5712, 2
        %v5723 = vshra.s32 %v5713, 2
        %v5724 = vshra.s32 %v5715, 2
        %vm5725 = vcmp.eq.s32.totalorder %v5716, %v5724
        %vm5726 = vcmp.eq.s32.totalorder %v5717, %v5724
        %vm5727 = vcmp.eq.s32.totalorder %v5718, %v5724
        %vm5728 = vcmp.eq.s32.totalorder %v5719, %v5724
        %vm5729 = vcmp.eq.s32.totalorder %v5720, %v5724
        %vm5730 = vcmp.eq.s32.totalorder %v5721, %v5724
        %vm5731 = vcmp.eq.s32.totalorder %v5722, %v5724
        %vm5732 = vcmp.eq.s32.totalorder %v5723, %v5724
        %v5733 = vsel %vm5725, 0.0009765625, 0.0
        %v5734 = vsel %vm5726, 0.0009765625, 0.0
        %v5735 = vsel %vm5727, 0.0009765625, 0.0
        %v5736 = vsel %vm5728, 0.0009765625, 0.0
        %v5737 = vsel %vm5729, 0.0009765625, 0.0
        %v5738 = vsel %vm5730, 0.0009765625, 0.0
        %v5739 = vsel %vm5731, 0.0009765625, 0.0
        %v5740 = vsel %vm5732, 0.0009765625, 0.0
        %v5742 = vsel %vm5528, %v5704, 0
        %5744 = vmatpush.msra.mxu0 0.0
        %5745 = vmatpush.msra.mxu0 0.0
        %5746 = vmatpush.msra.mxu0 0.0
        %5747 = vmatpush.msra.mxu0 0.0
        %5748 = vmatpush.msra.mxu0 0.0
        %5749 = vmatpush.msra.mxu0 0.0
        %5750 = vmatpush.msra.mxu0 0.0
        %5751 = vmatpush.msra.mxu0 0.0
        %5752 = vmatpush.msra.mxu0 %v5740
        %5753 = vmatpush.msra.mxu0 %v5739
        %5754 = vmatpush.msra.mxu0 %v5738
        %5755 = vmatpush.msra.mxu0 %v5737
        %5756 = vmatpush.msra.mxu0 %v5736
        %5757 = vmatpush.msra.mxu0 %v5735
        %5758 = vmatpush.msra.mxu0 %v5734
        %5759 = vmatpush.msra.mxu0 %v5733
        %v5760 = vand.u32 %v5742, 4294901760
        %v5761 = vsub.f32 %v5742, %v5760
        %v5762 = vand.u32 %v5761, 4294901760
        %v5763 = vsub.f32 %v5761, %v5762
        %v5764 = vand.u32 %v5763, 4294901760
        %5765 = vmatmul.f32.gmra.mxu0 %v5764
        %v5766 = vpop.f32.mrf.mxu0
        %v5767 = vadd.f32 0.0, %v5766
        %5768 = vdwg.mxu0
        %5769 = vmatpush.msra.mxu0 0.0
        %5770 = vmatpush.msra.mxu0 0.0
        %5771 = vmatpush.msra.mxu0 0.0
        %5772 = vmatpush.msra.mxu0 0.0
        %5773 = vmatpush.msra.mxu0 0.0
        %5774 = vmatpush.msra.mxu0 0.0
        %5775 = vmatpush.msra.mxu0 0.0
        %5776 = vmatpush.msra.mxu0 0.0
        %v5777 = vsub.f32 %v5740, %v5740
        %v5778 = vand.u32 %v5777, 4294901760
        %v5779 = vsub.f32 %v5777, %v5778
        %v5780 = vand.u32 %v5779, 4294901760
        %5781 = vmatpush.msra.mxu0 %v5780
        %v5782 = vsub.f32 %v5739, %v5739
        %v5783 = vand.u32 %v5782, 4294901760
        %v5784 = vsub.f32 %v5782, %v5783
        %v5785 = vand.u32 %v5784, 4294901760
        %5786 = vmatpush.msra.mxu0 %v5785
        %v5787 = vsub.f32 %v5738, %v5738
        %v5788 = vand.u32 %v5787, 4294901760
        %v5789 = vsub.f32 %v5787, %v5788
        %v5790 = vand.u32 %v5789, 4294901760
        %5791 = vmatpush.msra.mxu0 %v5790
        %v5792 = vsub.f32 %v5737, %v5737
        %v5793 = vand.u32 %v5792, 4294901760
        %v5794 = vsub.f32 %v5792, %v5793
        %v5795 = vand.u32 %v5794, 4294901760
        %5796 = vmatpush.msra.mxu0 %v5795
        %v5797 = vsub.f32 %v5736, %v5736
        %v5798 = vand.u32 %v5797, 4294901760
        %v5799 = vsub.f32 %v5797, %v5798
        %v5800 = vand.u32 %v5799, 4294901760
        %5801 = vmatpush.msra.mxu0 %v5800
        %v5802 = vsub.f32 %v5735, %v5735
        %v5803 = vand.u32 %v5802, 4294901760
        %v5804 = vsub.f32 %v5802, %v5803
        %v5805 = vand.u32 %v5804, 4294901760
        %5806 = vmatpush.msra.mxu0 %v5805
        %v5807 = vsub.f32 %v5734, %v5734
        %v5808 = vand.u32 %v5807, 4294901760
        %v5809 = vsub.f32 %v5807, %v5808
        %v5810 = vand.u32 %v5809, 4294901760
        %5811 = vmatpush.msra.mxu0 %v5810
        %v5812 = vsub.f32 %v5733, %v5733
        %v5813 = vand.u32 %v5812, 4294901760
        %v5814 = vsub.f32 %v5812, %v5813
        %v5815 = vand.u32 %v5814, 4294901760
        %5816 = vmatpush.msra.mxu0 %v5815
        %v5817 = vand.u32 %v5742, 4294901760
        %5818 = vmatmul.f32.gmra.mxu0 %v5817
        %v5819 = vpop.f32.mrf.mxu0
        %v5820 = vadd.f32 %v5767, %v5819
        %5821 = vdwg.mxu0
        %5822 = vmatpush.msra.mxu0 0.0
        %5823 = vmatpush.msra.mxu0 0.0
        %5824 = vmatpush.msra.mxu0 0.0
        %5825 = vmatpush.msra.mxu0 0.0
        %5826 = vmatpush.msra.mxu0 0.0
        %5827 = vmatpush.msra.mxu0 0.0
        %5828 = vmatpush.msra.mxu0 0.0
        %5829 = vmatpush.msra.mxu0 0.0
        %v5830 = vsub.f32 %v5740, %v5740
        %5831 = vmatpush.msra.mxu0 %v5830
        %v5832 = vsub.f32 %v5739, %v5739
        %5833 = vmatpush.msra.mxu0 %v5832
        %v5834 = vsub.f32 %v5738, %v5738
        %5835 = vmatpush.msra.mxu0 %v5834
        %v5836 = vsub.f32 %v5737, %v5737
        %5837 = vmatpush.msra.mxu0 %v5836
        %v5838 = vsub.f32 %v5736, %v5736
        %5839 = vmatpush.msra.mxu0 %v5838
        %v5840 = vsub.f32 %v5735, %v5735
        %5841 = vmatpush.msra.mxu0 %v5840
        %v5842 = vsub.f32 %v5734, %v5734
        %5843 = vmatpush.msra.mxu0 %v5842
        %v5844 = vsub.f32 %v5733, %v5733
        %5845 = vmatpush.msra.mxu0 %v5844
        %v5846 = vand.u32 %v5742, 4294901760
        %v5847 = vsub.f32 %v5742, %v5846
        %5848 = vmatmul.f32.gmra.mxu0 %v5847
        %v5849 = vpop.f32.mrf.mxu0
        %v5850 = vadd.f32 %v5820, %v5849
        %5851 = vdwg.mxu0
        %5852 = vmatpush.msra.mxu0 0.0
        %5853 = vmatpush.msra.mxu0 0.0
        %5854 = vmatpush.msra.mxu0 0.0
        %5855 = vmatpush.msra.mxu0 0.0
        %5856 = vmatpush.msra.mxu0 0.0
        %5857 = vmatpush.msra.mxu0 0.0
        %5858 = vmatpush.msra.mxu0 0.0
        %5859 = vmatpush.msra.mxu0 0.0
        %5860 = vmatpush.msra.mxu0 %v5740
        %5861 = vmatpush.msra.mxu0 %v5739
        %5862 = vmatpush.msra.mxu0 %v5738
        %5863 = vmatpush.msra.mxu0 %v5737
        %5864 = vmatpush.msra.mxu0 %v5736
        %5865 = vmatpush.msra.mxu0 %v5735
        %5866 = vmatpush.msra.mxu0 %v5734
        %5867 = vmatpush.msra.mxu0 %v5733
        %v5868 = vand.u32 %v5742, 4294901760
        %v5869 = vsub.f32 %v5742, %v5868
        %v5870 = vand.u32 %v5869, 4294901760
        %5871 = vmatmul.f32.gmra.mxu0 %v5870
        %v5872 = vpop.f32.mrf.mxu0
        %v5873 = vadd.f32 %v5850, %v5872
        %5874 = vdwg.mxu0
        %5875 = vmatpush.msra.mxu0 0.0
        %5876 = vmatpush.msra.mxu0 0.0
        %5877 = vmatpush.msra.mxu0 0.0
        %5878 = vmatpush.msra.mxu0 0.0
        %5879 = vmatpush.msra.mxu0 0.0
        %5880 = vmatpush.msra.mxu0 0.0
        %5881 = vmatpush.msra.mxu0 0.0
        %5882 = vmatpush.msra.mxu0 0.0
        %v5883 = vsub.f32 %v5740, %v5740
        %v5884 = vand.u32 %v5883, 4294901760
        %5885 = vmatpush.msra.mxu0 %v5884
        %v5886 = vsub.f32 %v5739, %v5739
        %v5887 = vand.u32 %v5886, 4294901760
        %5888 = vmatpush.msra.mxu0 %v5887
        %v5889 = vsub.f32 %v5738, %v5738
        %v5890 = vand.u32 %v5889, 4294901760
        %5891 = vmatpush.msra.mxu0 %v5890
        %v5892 = vsub.f32 %v5737, %v5737
        %v5893 = vand.u32 %v5892, 4294901760
        %5894 = vmatpush.msra.mxu0 %v5893
        %v5895 = vsub.f32 %v5736, %v5736
        %v5896 = vand.u32 %v5895, 4294901760
        %5897 = vmatpush.msra.mxu0 %v5896
        %v5898 = vsub.f32 %v5735, %v5735
        %v5899 = vand.u32 %v5898, 4294901760
        %5900 = vmatpush.msra.mxu0 %v5899
        %v5901 = vsub.f32 %v5734, %v5734
        %v5902 = vand.u32 %v5901, 4294901760
        %5903 = vmatpush.msra.mxu0 %v5902
        %v5904 = vsub.f32 %v5733, %v5733
        %v5905 = vand.u32 %v5904, 4294901760
        %5906 = vmatpush.msra.mxu0 %v5905
        %v5907 = vand.u32 %v5742, 4294901760
        %5908 = vmatmul.f32.gmra.mxu0 %v5907
        %v5909 = vpop.f32.mrf.mxu0
        %v5910 = vadd.f32 %v5873, %v5909
        %5911 = vdwg.mxu0
        %5912 = vmatpush.msra.mxu0 0.0
        %5913 = vmatpush.msra.mxu0 0.0
        %5914 = vmatpush.msra.mxu0 0.0
        %5915 = vmatpush.msra.mxu0 0.0
        %5916 = vmatpush.msra.mxu0 0.0
        %5917 = vmatpush.msra.mxu0 0.0
        %5918 = vmatpush.msra.mxu0 0.0
        %5919 = vmatpush.msra.mxu0 0.0
        %5920 = vmatpush.msra.mxu0 %v5740
        %5921 = vmatpush.msra.mxu0 %v5739
        %5922 = vmatpush.msra.mxu0 %v5738
        %5923 = vmatpush.msra.mxu0 %v5737
        %5924 = vmatpush.msra.mxu0 %v5736
        %5925 = vmatpush.msra.mxu0 %v5735
        %5926 = vmatpush.msra.mxu0 %v5734
        %5927 = vmatpush.msra.mxu0 %v5733
        %v5928 = vand.u32 %v5742, 4294901760
        %5929 = vmatmul.f32.gmra.mxu0 %v5928
        %v5930 = vpop.f32.mrf.mxu0
        %v5931 = vadd.f32 %v5910, %v5930
        %5932 = vdwg.mxu0
        %v5934 = vsel %vm5528, %v5703, 0
        %5936 = vmatpush.msra.mxu0 0.0
        %5937 = vmatpush.msra.mxu0 0.0
        %5938 = vmatpush.msra.mxu0 0.0
        %5939 = vmatpush.msra.mxu0 0.0
        %5940 = vmatpush.msra.mxu0 0.0
        %5941 = vmatpush.msra.mxu0 0.0
        %5942 = vmatpush.msra.mxu0 0.0
        %5943 = vmatpush.msra.mxu0 0.0
        %5944 = vmatpush.msra.mxu0 %v5740
        %5945 = vmatpush.msra.mxu0 %v5739
        %5946 = vmatpush.msra.mxu0 %v5738
        %5947 = vmatpush.msra.mxu0 %v5737
        %5948 = vmatpush.msra.mxu0 %v5736
        %5949 = vmatpush.msra.mxu0 %v5735
        %5950 = vmatpush.msra.mxu0 %v5734
        %5951 = vmatpush.msra.mxu0 %v5733
        %v5952 = vand.u32 %v5934, 4294901760
        %v5953 = vsub.f32 %v5934, %v5952
        %v5954 = vand.u32 %v5953, 4294901760
        %v5955 = vsub.f32 %v5953, %v5954
        %v5956 = vand.u32 %v5955, 4294901760
        %5957 = vmatmul.f32.gmra.mxu0 %v5956
        %v5958 = vpop.f32.mrf.mxu0
        %v5959 = vadd.f32 0.0, %v5958
        %5960 = vdwg.mxu0
        %5961 = vmatpush.msra.mxu0 0.0
        %5962 = vmatpush.msra.mxu0 0.0
        %5963 = vmatpush.msra.mxu0 0.0
        %5964 = vmatpush.msra.mxu0 0.0
        %5965 = vmatpush.msra.mxu0 0.0
        %5966 = vmatpush.msra.mxu0 0.0
        %5967 = vmatpush.msra.mxu0 0.0
        %5968 = vmatpush.msra.mxu0 0.0
        %v5969 = vsub.f32 %v5740, %v5740
        %v5970 = vand.u32 %v5969, 4294901760
        %v5971 = vsub.f32 %v5969, %v5970
        %v5972 = vand.u32 %v5971, 4294901760
        %5973 = vmatpush.msra.mxu0 %v5972
        %v5974 = vsub.f32 %v5739, %v5739
        %v5975 = vand.u32 %v5974, 4294901760
        %v5976 = vsub.f32 %v5974, %v5975
        %v5977 = vand.u32 %v5976, 4294901760
        %5978 = vmatpush.msra.mxu0 %v5977
        %v5979 = vsub.f32 %v5738, %v5738
        %v5980 = vand.u32 %v5979, 4294901760
        %v5981 = vsub.f32 %v5979, %v5980
        %v5982 = vand.u32 %v5981, 4294901760
        %5983 = vmatpush.msra.mxu0 %v5982
        %v5984 = vsub.f32 %v5737, %v5737
        %v5985 = vand.u32 %v5984, 4294901760
        %v5986 = vsub.f32 %v5984, %v5985
        %v5987 = vand.u32 %v5986, 4294901760
        %5988 = vmatpush.msra.mxu0 %v5987
        %v5989 = vsub.f32 %v5736, %v5736
        %v5990 = vand.u32 %v5989, 4294901760
        %v5991 = vsub.f32 %v5989, %v5990
        %v5992 = vand.u32 %v5991, 4294901760
        %5993 = vmatpush.msra.mxu0 %v5992
        %v5994 = vsub.f32 %v5735, %v5735
        %v5995 = vand.u32 %v5994, 4294901760
        %v5996 = vsub.f32 %v5994, %v5995
        %v5997 = vand.u32 %v5996, 4294901760
        %5998 = vmatpush.msra.mxu0 %v5997
        %v5999 = vsub.f32 %v5734, %v5734
        %v6000 = vand.u32 %v5999, 4294901760
        %v6001 = vsub.f32 %v5999, %v6000
        %v6002 = vand.u32 %v6001, 4294901760
        %6003 = vmatpush.msra.mxu0 %v6002
        %v6004 = vsub.f32 %v5733, %v5733
        %v6005 = vand.u32 %v6004, 4294901760
        %v6006 = vsub.f32 %v6004, %v6005
        %v6007 = vand.u32 %v6006, 4294901760
        %6008 = vmatpush.msra.mxu0 %v6007
        %v6009 = vand.u32 %v5934, 4294901760
        %6010 = vmatmul.f32.gmra.mxu0 %v6009
        %v6011 = vpop.f32.mrf.mxu0
        %v6012 = vadd.f32 %v5959, %v6011
        %6013 = vdwg.mxu0
        %6014 = vmatpush.msra.mxu0 0.0
        %6015 = vmatpush.msra.mxu0 0.0
        %6016 = vmatpush.msra.mxu0 0.0
        %6017 = vmatpush.msra.mxu0 0.0
        %6018 = vmatpush.msra.mxu0 0.0
        %6019 = vmatpush.msra.mxu0 0.0
        %6020 = vmatpush.msra.mxu0 0.0
        %6021 = vmatpush.msra.mxu0 0.0
        %v6022 = vsub.f32 %v5740, %v5740
        %6023 = vmatpush.msra.mxu0 %v6022
        %v6024 = vsub.f32 %v5739, %v5739
        %6025 = vmatpush.msra.mxu0 %v6024
        %v6026 = vsub.f32 %v5738, %v5738
        %6027 = vmatpush.msra.mxu0 %v6026
        %v6028 = vsub.f32 %v5737, %v5737
        %6029 = vmatpush.msra.mxu0 %v6028
        %v6030 = vsub.f32 %v5736, %v5736
        %6031 = vmatpush.msra.mxu0 %v6030
        %v6032 = vsub.f32 %v5735, %v5735
        %6033 = vmatpush.msra.mxu0 %v6032
        %v6034 = vsub.f32 %v5734, %v5734
        %6035 = vmatpush.msra.mxu0 %v6034
        %v6036 = vsub.f32 %v5733, %v5733
        %6037 = vmatpush.msra.mxu0 %v6036
        %v6038 = vand.u32 %v5934, 4294901760
        %v6039 = vsub.f32 %v5934, %v6038
        %6040 = vmatmul.f32.gmra.mxu0 %v6039
        %v6041 = vpop.f32.mrf.mxu0
        %v6042 = vadd.f32 %v6012, %v6041
        %6043 = vdwg.mxu0
        %6044 = vmatpush.msra.mxu0 0.0
        %6045 = vmatpush.msra.mxu0 0.0
        %6046 = vmatpush.msra.mxu0 0.0
        %6047 = vmatpush.msra.mxu0 0.0
        %6048 = vmatpush.msra.mxu0 0.0
        %6049 = vmatpush.msra.mxu0 0.0
        %6050 = vmatpush.msra.mxu0 0.0
        %6051 = vmatpush.msra.mxu0 0.0
        %6052 = vmatpush.msra.mxu0 %v5740
        %6053 = vmatpush.msra.mxu0 %v5739
        %6054 = vmatpush.msra.mxu0 %v5738
        %6055 = vmatpush.msra.mxu0 %v5737
        %6056 = vmatpush.msra.mxu0 %v5736
        %6057 = vmatpush.msra.mxu0 %v5735
        %6058 = vmatpush.msra.mxu0 %v5734
        %6059 = vmatpush.msra.mxu0 %v5733
        %v6060 = vand.u32 %v5934, 4294901760
        %v6061 = vsub.f32 %v5934, %v6060
        %v6062 = vand.u32 %v6061, 4294901760
        %6063 = vmatmul.f32.gmra.mxu0 %v6062
        %v6064 = vpop.f32.mrf.mxu0
        %v6065 = vadd.f32 %v6042, %v6064
        %6066 = vdwg.mxu0
        %6067 = vmatpush.msra.mxu0 0.0
        %6068 = vmatpush.msra.mxu0 0.0
        %6069 = vmatpush.msra.mxu0 0.0
        %6070 = vmatpush.msra.mxu0 0.0
        %6071 = vmatpush.msra.mxu0 0.0
        %6072 = vmatpush.msra.mxu0 0.0
        %6073 = vmatpush.msra.mxu0 0.0
        %6074 = vmatpush.msra.mxu0 0.0
        %v6075 = vsub.f32 %v5740, %v5740
        %v6076 = vand.u32 %v6075, 4294901760
        %6077 = vmatpush.msra.mxu0 %v6076
        %v6078 = vsub.f32 %v5739, %v5739
        %v6079 = vand.u32 %v6078, 4294901760
        %6080 = vmatpush.msra.mxu0 %v6079
        %v6081 = vsub.f32 %v5738, %v5738
        %v6082 = vand.u32 %v6081, 4294901760
        %6083 = vmatpush.msra.mxu0 %v6082
        %v6084 = vsub.f32 %v5737, %v5737
        %v6085 = vand.u32 %v6084, 4294901760
        %6086 = vmatpush.msra.mxu0 %v6085
        %v6087 = vsub.f32 %v5736, %v5736
        %v6088 = vand.u32 %v6087, 4294901760
        %6089 = vmatpush.msra.mxu0 %v6088
        %v6090 = vsub.f32 %v5735, %v5735
        %v6091 = vand.u32 %v6090, 4294901760
        %6092 = vmatpush.msra.mxu0 %v6091
        %v6093 = vsub.f32 %v5734, %v5734
        %v6094 = vand.u32 %v6093, 4294901760
        %6095 = vmatpush.msra.mxu0 %v6094
        %v6096 = vsub.f32 %v5733, %v5733
        %v6097 = vand.u32 %v6096, 4294901760
        %6098 = vmatpush.msra.mxu0 %v6097
        %v6099 = vand.u32 %v5934, 4294901760
        %6100 = vmatmul.f32.gmra.mxu0 %v6099
        %v6101 = vpop.f32.mrf.mxu0
        %v6102 = vadd.f32 %v6065, %v6101
        %6103 = vdwg.mxu0
        %6104 = vmatpush.msra.mxu0 0.0
        %6105 = vmatpush.msra.mxu0 0.0
        %6106 = vmatpush.msra.mxu0 0.0
        %6107 = vmatpush.msra.mxu0 0.0
        %6108 = vmatpush.msra.mxu0 0.0
        %6109 = vmatpush.msra.mxu0 0.0
        %6110 = vmatpush.msra.mxu0 0.0
        %6111 = vmatpush.msra.mxu0 0.0
        %6112 = vmatpush.msra.mxu0 %v5740
        %6113 = vmatpush.msra.mxu0 %v5739
        %6114 = vmatpush.msra.mxu0 %v5738
        %6115 = vmatpush.msra.mxu0 %v5737
        %6116 = vmatpush.msra.mxu0 %v5736
        %6117 = vmatpush.msra.mxu0 %v5735
        %6118 = vmatpush.msra.mxu0 %v5734
        %6119 = vmatpush.msra.mxu0 %v5733
        %v6120 = vand.u32 %v5934, 4294901760
        %6121 = vmatmul.f32.gmra.mxu0 %v6120
        %v6122 = vpop.f32.mrf.mxu0
        %v6123 = vadd.f32 %v6102, %v6122
        %6124 = vdwg.mxu0
        %v6125 = vmul.f32 %v5931, %v5931
        %v6126 = vsub.f32 %v6123, %v6125
        %v6127 = vmax.f32 %v6126, 0.0
        %v6128 = vld [vmem:[%s3] sm:$0x1]
        %v6129 = vadd.f32 %v6127, 1e-05
        %v6130 = vrsqrt.pop %v6129
        %v6131 = vmul.f32 %v6130, %v6129
        %v6132 = vmul.f32 %v6131, %v6130
        %v6133 = vmul.f32 0.5, %v6132
        %v6134 = vsub.f32 1.5, %v6133
        %v6135 = vmul.f32 %v6130, %v6134
        %vm6136 = vweird.f32 %v6129
        %vm6137 = vweird.f32 %v6130
        %vm6138 = vmor %vm6136, %vm6137
        %v6139 = vsel %vm6138, %v6130, %v6135
        %v6140 = vmul.f32 %v6128, %v6139
        %v6141 = vsub.f32 %v5527, %v5931
        %v6142 = vmul.f32 %v6141, %v6140
        %v6143 = vld [vmem:[%s4] sm:$0x1]
        %v6144 = vadd.f32 %v6142, %v6143
        %v6146 = vperm.slane %v6140, 0
        %v6148 = vmul.f32 %v5448, %v6146
        %v6149 = vmul.f32 %v5450, %v6146
        %v6150 = vmul.f32 %v5453, %v6146
        %v6151 = vmul.f32 %v5455, %v6146
        %v6152 = vmul.f32 %v5458, %v6146
        %v6153 = vmul.f32 %v5460, %v6146
        %v6154 = vmul.f32 %v5463, %v6146
        %v6155 = vmul.f32 %v5465, %v6146
        %v6156 = vmul.f32 %v5468, %v6146
        %v6157 = vmul.f32 %v5470, %v6146
        %v6158 = vmul.f32 %v5473, %v6146
        %v6159 = vmul.f32 %v5475, %v6146
        %v6160 = vmul.f32 %v5478, %v6146
        %v6161 = vmul.f32 %v5480, %v6146
        %v6162 = vmul.f32 %v5483, %v6146
        %v6163 = vmul.f32 %v5485, %v6146
        %v6164 = vmul.f32 %v5488, %v6146
        %v6165 = vmul.f32 %v5490, %v6146
        %v6166 = vmul.f32 %v5493, %v6146
        %v6167 = vmul.f32 %v5495, %v6146
        %v6168 = vmul.f32 %v5498, %v6146
        %v6169 = vmul.f32 %v5500, %v6146
        %v6170 = vmul.f32 %v5503, %v6146
        %v6171 = vmul.f32 %v5505, %v6146
        %v6172 = vmul.f32 %v5508, %v6146
        %v6173 = vmul.f32 %v5510, %v6146
        %v6174 = vmul.f32 %v5513, %v6146
        %v6175 = vmul.f32 %v5515, %v6146
        %v6176 = vmul.f32 %v5518, %v6146
        %v6177 = vmul.f32 %v5520, %v6146
        %v6178 = vmul.f32 %v5523, %v6146
        %v6179 = vmul.f32 %v5525, %v6146
        %v6181 = vperm.slane %v6144, 0
        %v6183 = vadd.f32 %v6148, %v6181
        %v6184 = vadd.f32 %v6149, %v6181
        %v6185 = vadd.f32 %v6150, %v6181
        %v6186 = vadd.f32 %v6151, %v6181
        %v6187 = vadd.f32 %v6152, %v6181
        %v6188 = vadd.f32 %v6153, %v6181
        %v6189 = vadd.f32 %v6154, %v6181
        %v6190 = vadd.f32 %v6155, %v6181
        %v6191 = vadd.f32 %v6156, %v6181
        %v6192 = vadd.f32 %v6157, %v6181
        %v6193 = vadd.f32 %v6158, %v6181
        %v6194 = vadd.f32 %v6159, %v6181
        %v6195 = vadd.f32 %v6160, %v6181
        %v6196 = vadd.f32 %v6161, %v6181
        %v6197 = vadd.f32 %v6162, %v6181
        %v6198 = vadd.f32 %v6163, %v6181
        %v6199 = vadd.f32 %v6164, %v6181
        %v6200 = vadd.f32 %v6165, %v6181
        %v6201 = vadd.f32 %v6166, %v6181
        %v6202 = vadd.f32 %v6167, %v6181
        %v6203 = vadd.f32 %v6168, %v6181
        %v6204 = vadd.f32 %v6169, %v6181
        %v6205 = vadd.f32 %v6170, %v6181
        %v6206 = vadd.f32 %v6171, %v6181
        %v6207 = vadd.f32 %v6172, %v6181
        %v6208 = vadd.f32 %v6173, %v6181
        %v6209 = vadd.f32 %v6174, %v6181
        %v6210 = vadd.f32 %v6175, %v6181
        %v6211 = vadd.f32 %v6176, %v6181
        %v6212 = vadd.f32 %v6177, %v6181
        %v6213 = vadd.f32 %v6178, %v6181
        %v6214 = vadd.f32 %v6179, %v6181
        %vm6215 = vcmp.gt.f32.partialorder %v6183, 0.0
        %vm6216 = vcmp.gt.f32.partialorder %v6184, 0.0
        %vm6217 = vcmp.gt.f32.partialorder %v6185, 0.0
        %vm6218 = vcmp.gt.f32.partialorder %v6186, 0.0
        %vm6219 = vcmp.gt.f32.partialorder %v6187, 0.0
        %vm6220 = vcmp.gt.f32.partialorder %v6188, 0.0
        %vm6221 = vcmp.gt.f32.partialorder %v6189, 0.0
        %vm6222 = vcmp.gt.f32.partialorder %v6190, 0.0
        %vm6223 = vcmp.gt.f32.partialorder %v6191, 0.0
        %vm6224 = vcmp.gt.f32.partialorder %v6192, 0.0
        %vm6225 = vcmp.gt.f32.partialorder %v6193, 0.0
        %vm6226 = vcmp.gt.f32.partialorder %v6194, 0.0
        %vm6227 = vcmp.gt.f32.partialorder %v6195, 0.0
        %vm6228 = vcmp.gt.f32.partialorder %v6196, 0.0
        %vm6229 = vcmp.gt.f32.partialorder %v6197, 0.0
        %vm6230 = vcmp.gt.f32.partialorder %v6198, 0.0
        %vm6231 = vcmp.gt.f32.partialorder %v6199, 0.0
        %vm6232 = vcmp.gt.f32.partialorder %v6200, 0.0
        %vm6233 = vcmp.gt.f32.partialorder %v6201, 0.0
        %vm6234 = vcmp.gt.f32.partialorder %v6202, 0.0
        %vm6235 = vcmp.gt.f32.partialorder %v6203, 0.0
        %vm6236 = vcmp.gt.f32.partialorder %v6204, 0.0
        %vm6237 = vcmp.gt.f32.partialorder %v6205, 0.0
        %vm6238 = vcmp.gt.f32.partialorder %v6206, 0.0
        %vm6239 = vcmp.gt.f32.partialorder %v6207, 0.0
        %vm6240 = vcmp.gt.f32.partialorder %v6208, 0.0
        %vm6241 = vcmp.gt.f32.partialorder %v6209, 0.0
        %vm6242 = vcmp.gt.f32.partialorder %v6210, 0.0
        %vm6243 = vcmp.gt.f32.partialorder %v6211, 0.0
        %vm6244 = vcmp.gt.f32.partialorder %v6212, 0.0
        %vm6245 = vcmp.gt.f32.partialorder %v6213, 0.0
        %vm6246 = vcmp.gt.f32.partialorder %v6214, 0.0
        %v6247 = vmin.f32 %v6183, 0.0
        %v6248 = vmin.f32 %v6184, 0.0
        %v6249 = vmin.f32 %v6185, 0.0
        %v6250 = vmin.f32 %v6186, 0.0
        %v6251 = vmin.f32 %v6187, 0.0
        %v6252 = vmin.f32 %v6188, 0.0
        %v6253 = vmin.f32 %v6189, 0.0
        %v6254 = vmin.f32 %v6190, 0.0
        %v6255 = vmin.f32 %v6191, 0.0
        %v6256 = vmin.f32 %v6192, 0.0
        %v6257 = vmin.f32 %v6193, 0.0
        %v6258 = vmin.f32 %v6194, 0.0
        %v6259 = vmin.f32 %v6195, 0.0
        %v6260 = vmin.f32 %v6196, 0.0
        %v6261 = vmin.f32 %v6197, 0.0
        %v6262 = vmin.f32 %v6198, 0.0
        %v6263 = vmin.f32 %v6199, 0.0
        %v6264 = vmin.f32 %v6200, 0.0
        %v6265 = vmin.f32 %v6201, 0.0
        %v6266 = vmin.f32 %v6202, 0.0
        %v6267 = vmin.f32 %v6203, 0.0
        %v6268 = vmin.f32 %v6204, 0.0
        %v6269 = vmin.f32 %v6205, 0.0
        %v6270 = vmin.f32 %v6206, 0.0
        %v6271 = vmin.f32 %v6207, 0.0
        %v6272 = vmin.f32 %v6208, 0.0
        %v6273 = vmin.f32 %v6209, 0.0
        %v6274 = vmin.f32 %v6210, 0.0
        %v6275 = vmin.f32 %v6211, 0.0
        %v6276 = vmin.f32 %v6212, 0.0
        %v6277 = vmin.f32 %v6213, 0.0
        %v6278 = vmin.f32 %v6214, 0.0
        %v6279 = vmul.f32 %v6247, 1.442695
        %v6280 = vpow.pop %v6279
        %v6281 = vmul.f32 %v6248, 1.442695
        %v6282 = vpow.pop %v6281
        %v6283 = vmul.f32 %v6249, 1.442695
        %v6284 = vpow.pop %v6283
        %v6285 = vmul.f32 %v6250, 1.442695
        %v6286 = vpow.pop %v6285
        %v6287 = vmul.f32 %v6251, 1.442695
        %v6288 = vpow.pop %v6287
        %v6289 = vmul.f32 %v6252, 1.442695
        %v6290 = vpow.pop %v6289
        %v6291 = vmul.f32 %v6253, 1.442695
        %v6292 = vpow.pop %v6291
        %v6293 = vmul.f32 %v6254, 1.442695
        %v6294 = vpow.pop %v6293
        %v6295 = vmul.f32 %v6255, 1.442695
        %v6296 = vpow.pop %v6295
        %v6297 = vmul.f32 %v6256, 1.442695
        %v6298 = vpow.pop %v6297
        %v6299 = vmul.f32 %v6257, 1.442695
        %v6300 = vpow.pop %v6299
        %v6301 = vmul.f32 %v6258, 1.442695
        %v6302 = vpow.pop %v6301
        %v6303 = vmul.f32 %v6259, 1.442695
        %v6304 = vpow.pop %v6303
        %v6305 = vmul.f32 %v6260, 1.442695
        %v6306 = vpow.pop %v6305
        %v6307 = vmul.f32 %v6261, 1.442695
        %v6308 = vpow.pop %v6307
        %v6309 = vmul.f32 %v6262, 1.442695
        %v6310 = vpow.pop %v6309
        %v6311 = vmul.f32 %v6263, 1.442695
        %v6312 = vpow.pop %v6311
        %v6313 = vmul.f32 %v6264, 1.442695
        %v6314 = vpow.pop %v6313
        %v6315 = vmul.f32 %v6265, 1.442695
        %v6316 = vpow.pop %v6315
        %v6317 = vmul.f32 %v6266, 1.442695
        %v6318 = vpow.pop %v6317
        %v6319 = vmul.f32 %v6267, 1.442695
        %v6320 = vpow.pop %v6319
        %v6321 = vmul.f32 %v6268, 1.442695
        %v6322 = vpow.pop %v6321
        %v6323 = vmul.f32 %v6269, 1.442695
        %v6324 = vpow.pop %v6323
        %v6325 = vmul.f32 %v6270, 1.442695
        %v6326 = vpow.pop %v6325
        %v6327 = vmul.f32 %v6271, 1.442695
        %v6328 = vpow.pop %v6327
        %v6329 = vmul.f32 %v6272, 1.442695
        %v6330 = vpow.pop %v6329
        %v6331 = vmul.f32 %v6273, 1.442695
        %v6332 = vpow.pop %v6331
        %v6333 = vmul.f32 %v6274, 1.442695
        %v6334 = vpow.pop %v6333
        %v6335 = vmul.f32 %v6275, 1.442695
        %v6336 = vpow.pop %v6335
        %v6337 = vmul.f32 %v6276, 1.442695
        %v6338 = vpow.pop %v6337
        %v6339 = vmul.f32 %v6277, 1.442695
        %v6340 = vpow.pop %v6339
        %v6341 = vmul.f32 %v6278, 1.442695
        %v6342 = vpow.pop %v6341
        %v6343 = vsub.f32 %v6280, 1.0
        %v6344 = vsub.f32 %v6282, 1.0
        %v6345 = vsub.f32 %v6284, 1.0
        %v6346 = vsub.f32 %v6286, 1.0
        %v6347 = vsub.f32 %v6288, 1.0
        %v6348 = vsub.f32 %v6290, 1.0
        %v6349 = vsub.f32 %v6292, 1.0
        %v6350 = vsub.f32 %v6294, 1.0
        %v6351 = vsub.f32 %v6296, 1.0
        %v6352 = vsub.f32 %v6298, 1.0
        %v6353 = vsub.f32 %v6300, 1.0
        %v6354 = vsub.f32 %v6302, 1.0
        %v6355 = vsub.f32 %v6304, 1.0
        %v6356 = vsub.f32 %v6306, 1.0
        %v6357 = vsub.f32 %v6308, 1.0
        %v6358 = vsub.f32 %v6310, 1.0
        %v6359 = vsub.f32 %v6312, 1.0
        %v6360 = vsub.f32 %v6314, 1.0
        %v6361 = vsub.f32 %v6316, 1.0
        %v6362 = vsub.f32 %v6318, 1.0
        %v6363 = vsub.f32 %v6320, 1.0
        %v6364 = vsub.f32 %v6322, 1.0
        %v6365 = vsub.f32 %v6324, 1.0
        %v6366 = vsub.f32 %v6326, 1.0
        %v6367 = vsub.f32 %v6328, 1.0
        %v6368 = vsub.f32 %v6330, 1.0
        %v6369 = vsub.f32 %v6332, 1.0
        %v6370 = vsub.f32 %v6334, 1.0
        %v6371 = vsub.f32 %v6336, 1.0
        %v6372 = vsub.f32 %v6338, 1.0
        %v6373 = vsub.f32 %v6340, 1.0
        %v6374 = vsub.f32 %v6342, 1.0
        %v6375 = vsel %vm6215, %v6183, %v6343
        %v6376 = vsel %vm6216, %v6184, %v6344
        %v6377 = vsel %vm6217, %v6185, %v6345
        %v6378 = vsel %vm6218, %v6186, %v6346
        %v6379 = vsel %vm6219, %v6187, %v6347
        %v6380 = vsel %vm6220, %v6188, %v6348
        %v6381 = vsel %vm6221, %v6189, %v6349
        %v6382 = vsel %vm6222, %v6190, %v6350
        %v6383 = vsel %vm6223, %v6191, %v6351
        %v6384 = vsel %vm6224, %v6192, %v6352
        %v6385 = vsel %vm6225, %v6193, %v6353
        %v6386 = vsel %vm6226, %v6194, %v6354
        %v6387 = vsel %vm6227, %v6195, %v6355
        %v6388 = vsel %vm6228, %v6196, %v6356
        %v6389 = vsel %vm6229, %v6197, %v6357
        %v6390 = vsel %vm6230, %v6198, %v6358
        %v6391 = vsel %vm6231, %v6199, %v6359
        %v6392 = vsel %vm6232, %v6200, %v6360
        %v6393 = vsel %vm6233, %v6201, %v6361
        %v6394 = vsel %vm6234, %v6202, %v6362
        %v6395 = vsel %vm6235, %v6203, %v6363
        %v6396 = vsel %vm6236, %v6204, %v6364
        %v6397 = vsel %vm6237, %v6205, %v6365
        %v6398 = vsel %vm6238, %v6206, %v6366
        %v6399 = vsel %vm6239, %v6207, %v6367
        %v6400 = vsel %vm6240, %v6208, %v6368
        %v6401 = vsel %vm6241, %v6209, %v6369
        %v6402 = vsel %vm6242, %v6210, %v6370
        %v6403 = vsel %vm6243, %v6211, %v6371
        %v6404 = vsel %vm6244, %v6212, %v6372
        %v6405 = vsel %vm6245, %v6213, %v6373
        %v6406 = vsel %vm6246, %v6214, %v6374
        %6407 = vst.msk [vmem:[%s217] sm:$0xff] %vm5528, %v6375
        %6408 = vst.msk [vmem:[%s217 + $0x8] sm:$0xff] %vm5528, %v6376
        %6409 = vst.msk [vmem:[%s217 + $0x10] sm:$0xff] %vm5528, %v6377
        %6410 = vst.msk [vmem:[%s217 + $0x18] sm:$0xff] %vm5528, %v6378
        %6411 = vst.msk [vmem:[%s217 + $0x20] sm:$0xff] %vm5528, %v6379
        %6412 = vst.msk [vmem:[%s217 + $0x28] sm:$0xff] %vm5528, %v6380
        %6413 = vst.msk [vmem:[%s217 + $0x30] sm:$0xff] %vm5528, %v6381
        %6414 = vst.msk [vmem:[%s217 + $0x38] sm:$0xff] %vm5528, %v6382
        %6415 = vst.msk [vmem:[%s217 + $0x40] sm:$0xff] %vm5528, %v6383
        %6416 = vst.msk [vmem:[%s217 + $0x48] sm:$0xff] %vm5528, %v6384
        %6417 = vst.msk [vmem:[%s217 + $0x50] sm:$0xff] %vm5528, %v6385
        %6418 = vst.msk [vmem:[%s217 + $0x58] sm:$0xff] %vm5528, %v6386
        %6419 = vst.msk [vmem:[%s217 + $0x60] sm:$0xff] %vm5528, %v6387
        %6420 = vst.msk [vmem:[%s217 + $0x68] sm:$0xff] %vm5528, %v6388
        %6421 = vst.msk [vmem:[%s217 + $0x70] sm:$0xff] %vm5528, %v6389
        %6422 = vst.msk [vmem:[%s217 + $0x78] sm:$0xff] %vm5528, %v6390
        %6423 = vst.msk [vmem:[%s217 + $0x80] sm:$0xff] %vm5528, %v6391
        %6424 = vst.msk [vmem:[%s217 + $0x88] sm:$0xff] %vm5528, %v6392
        %6425 = vst.msk [vmem:[%s217 + $0x90] sm:$0xff] %vm5528, %v6393
        %6426 = vst.msk [vmem:[%s217 + $0x98] sm:$0xff] %vm5528, %v6394
        %6427 = vst.msk [vmem:[%s217 + $0xa0] sm:$0xff] %vm5528, %v6395
        %6428 = vst.msk [vmem:[%s217 + $0xa8] sm:$0xff] %vm5528, %v6396
        %6429 = vst.msk [vmem:[%s217 + $0xb0] sm:$0xff] %vm5528, %v6397
        %6430 = vst.msk [vmem:[%s217 + $0xb8] sm:$0xff] %vm5528, %v6398
        %6431 = vst.msk [vmem:[%s217 + $0xc0] sm:$0xff] %vm5528, %v6399
        %6432 = vst.msk [vmem:[%s217 + $0xc8] sm:$0xff] %vm5528, %v6400
        %6433 = vst.msk [vmem:[%s217 + $0xd0] sm:$0xff] %vm5528, %v6401
        %6434 = vst.msk [vmem:[%s217 + $0xd8] sm:$0xff] %vm5528, %v6402
        %6435 = vst.msk [vmem:[%s217 + $0xe0] sm:$0xff] %vm5528, %v6403
        %6436 = vst.msk [vmem:[%s217 + $0xe8] sm:$0xff] %vm5528, %v6404
        %6437 = vst.msk [vmem:[%s217 + $0xf0] sm:$0xff] %vm5528, %v6405
        %6438 = vst.msk [vmem:[%s217 + $0xf8] sm:$0xff] %vm5528, %v6406
        %s6439 = sand.u32 %s137, 1
        %s6440 = scalar_lea.sflag [#allocation5], %s6439
        %s6441 = sand.u32 %s137, 1
        %s6442 = smul.addr %s6441, 256
        %s6443 = scalar_lea.vmem [#allocation4], %s6442
        // Predicated region
        $region41: #{conv_forward.1} parent=39 // pred_check
          %p6444 = pneg %p147
        $region42: #{conv_forward.1} parent=39 // pred_check_branch
          %6446 = sbr.rel (%p6444) target = $region44
        $region43: #{conv_forward.1} parent=39 // pred_region
          %6448 = vsyncadd %s6440, 0
          %s6449 = smul.addr %s19, 32
          %s6450 = smul.addr %s6449, 8
          %s6451 = scalar_lea.hbm %s5, %s6450
          %s6452 = sshll.u32 %s6443, 4
          %s6453 = int_to_ptr.vmem [resolvable:$true] %s6452
          %s6454 = sshll.u32 %s6451, 4
          %s6455 = int_to_ptr.hbm [resolvable:$true] %s6454
          %6460 = dma.vmem_to_hbm [thread:$0]  %s6453, 4096, %s6455, %s6440, 128, 128, 8
        $region44: #{conv_forward.1} parent=39 // pred_fallthru
          _
      $region40: #{conv_forward.1} parent=5 // pred_fallthru
        _
      %p6461 = scmp.le.s32.totalorder 2, %s14
      // Predicated region
      $region45: #{conv_forward.1} parent=5 // pred_check
        %p6462 = pneg %p6461
      $region46: #{conv_forward.1} parent=5 // pred_check_branch
        %6464 = sbr.rel (%p6462) target = $region48
      $region47: #{conv_forward.1} parent=5 // pred_region
        %s6465 = ssub.s32 %s14, 2
        // Predicated region
        $region49: #{conv_forward.1} parent=47 // pred_check
          %p6466 = pneg %p153
        $region50: #{conv_forward.1} parent=47 // pred_check_branch
          %6468 = sbr.rel (%p6466) target = $region52
        $region51: #{conv_forward.1} parent=47 // pred_region
          %s6469 = sand.u32 %s138, 1
          %s6470 = scalar_lea.sflag [#allocation5], %s6469
          %s6471 = sand.u32 %s138, 1
          %s6472 = smul.addr %s6471, 256
          %s6473 = scalar_lea.vmem [#allocation4], %s6472
          %6475 = dma.done %s6470, 4096
        $region52: #{conv_forward.1} parent=47 // pred_fallthru
          _
      $region48: #{conv_forward.1} parent=5 // pred_fallthru
        _
    $region6: #{conv_forward.1} parent=1 // loop_footer
      %s18 = sadd.s32 1, %s14
    $region7: #{conv_forward.1} parent=1 // loop_footer_branch
      %13 = sbr.rel target = $region3
    $region8: #{conv_forward.1} parent=1 // loop_exit
      _
    %6476 = vsyncpa [#allocation5], 1
    %s6477 = scalar_lea.sflag [#allocation5], 1
    %6478 = vsyncpa %s6477, 1

</llo_original>
